<compile_context>
chip_gen: v7x
topology: tpu7x:2x2x1
jax: 0.10.0
libtpu: 0.0.40
codegen_flags: <defaults>
</compile_context>

<pallas_src>
from functools import partial

import jax
import jax.numpy as jnp
from jax.experimental import pallas as pl
from jax.experimental.pallas import tpu as pltpu

REVIN_EPS = 1e-5
BN_EPS = 1e-3


# ----------------------------------------------------------------------------
# Pallas kernel: full TSMixer forward for one batch tile (Bt samples folded
# into the lane dimension) per grid step.  All operands are 2-D, lane-dense.
# ----------------------------------------------------------------------------
def tsmixer_kernel(x_ref,
                   ts_scale_ref, ts_shift_ref, wt_ref,
                   fs_scale_ref, fs_shift_ref,
                   w1_ref, b1_ref, w2_ref, b2_ref,
                   wp_ref, bp_ref, rw_ref, rb_ref,
                   out_ref, *, n_block):
    x = x_ref[...]                                   # (L, Bt*N)
    rw = rw_ref[...]                                 # (1, Bt*N)  RevIN weight (tiled)
    rb = rb_ref[...]                                 # (1, Bt*N)  RevIN bias   (tiled)

    # ---- RevIN "norm": per (sample, series) stats over the time axis ----
    mean = jnp.mean(x, axis=0, keepdims=True)                     # (1, Bt*N)
    var = jnp.mean((x - mean) ** 2, axis=0, keepdims=True)        # unbiased=False
    stdev = jnp.sqrt(var + REVIN_EPS)
    x = (x - mean) * (1.0 / stdev)
    x = x * rw + rb

    # ---- n_block MixingLayers (statically unrolled) ----
    for blk in range(n_block):
        # Temporal mixing: BN(scale) -> Linear over time -> (+folded shift/bias)
        #                  -> ReLU -> residual
        t = jnp.dot(wt_ref[blk], x * ts_scale_ref[blk],
                    preferred_element_type=jnp.float32)           # (L, Bt*N)
        t = t + ts_shift_ref[blk]                                 # wt@shift + bias, prefolded
        x = jnp.maximum(t, 0.0) + x

        # Feature mixing: BN -> Linear(N->ff) -> ReLU -> Linear(ff->N) -> residual
        # (per-sample Linears realized as one block-diagonal matmul)
        f = x * fs_scale_ref[blk] + fs_shift_ref[blk]             # (L, Bt*N)
        h = jnp.dot(f, w1_ref[blk],
                    preferred_element_type=jnp.float32) + b1_ref[blk]   # (L, Bt*ff)
        h = jnp.maximum(h, 0.0)
        x = jnp.dot(h, w2_ref[blk],
                    preferred_element_type=jnp.float32) + b2_ref[blk] + x

    # ---- Temporal projection: Linear over time L -> H ----
    y = jnp.dot(wp_ref[...], x,
                preferred_element_type=jnp.float32) + bp_ref[...]       # (H, Bt*N)

    # ---- RevIN "denorm", folded to a single scale/shift ----
    a = stdev / (rw + REVIN_EPS * REVIN_EPS)
    c = mean - rb * a
    out_ref[...] = y * a + c


# ----------------------------------------------------------------------------
# Wrapper: lane-fold batch, pre-tile params to lane-dense shapes, call Pallas.
# ----------------------------------------------------------------------------
def tsmixer_forward(x, params, *, batch_tile=None):
    B, L, N = x.shape
    H = params["wp"].shape[0]
    nb = params["bn_ts"].shape[0]
    ff = params["wf1t"].shape[2]

    Bt = B if batch_tile is None else batch_tile
    assert B % Bt == 0, "batch must be divisible by batch_tile"
    lanes = Bt * N
    flanes = Bt * ff
    ntiles = B // Bt
    f32 = jnp.float32

    # Lane-fold the input: (B, L, N) -> (L, B*N), lane index = b*N + n.
    x2d = jnp.transpose(x, (1, 0, 2)).reshape(L, B * N).astype(f32)

    def tile_lanes(a, reps):
        return jnp.tile(a, (1,) * (a.ndim - 1) + (reps,))

    # Per-block parameter slabs, pre-tiled over the batch-lane dimension.
    ts_scale = tile_lanes(params["bn_ts"], Bt)                         # (nb, L, lanes)
    ts_shift = (jnp.einsum("kij,kjc->kic", params["wt"],
                           tile_lanes(params["bn_tb"], Bt))
                + params["bt"])                                        # wt@shift + bias
    fs_scale = tile_lanes(params["bn_fs"], Bt)                         # (nb, L, lanes)
    fs_shift = tile_lanes(params["bn_fb"], Bt)                         # (nb, L, lanes)

    # Block-diagonal feature-mixing weights: kron(I_Bt, W) so the per-sample
    # Linear(N->ff->N) becomes one dense lane-dense matmul per block.
    eye = jnp.eye(Bt, dtype=f32)
    w1bd = jnp.einsum("ab,knf->kanbf", eye, params["wf1t"]
                      ).reshape(nb, lanes, flanes)                     # (nb, lanes, flanes)
    w2bd = jnp.einsum("ab,kfn->kafbn", eye, params["wf2t"]
                      ).reshape(nb, flanes, lanes)                     # (nb, flanes, lanes)
    b1t = tile_lanes(params["bf1"], Bt)                                # (nb, 1, flanes)
    b2t = tile_lanes(params["bf2"], Bt)                                # (nb, 1, lanes)

    bp_b = jnp.tile(params["bp"], (1, lanes))                          # (H, lanes)
    rw_t = tile_lanes(params["rw"], Bt)                                # (1, lanes)
    rb_t = tile_lanes(params["rb"], Bt)                                # (1, lanes)

    def const_spec(shape):
        # grid-invariant parameter: full-array block, constant index_map
        return pl.BlockSpec(shape, lambda i: (0,) * len(shape))

    kernel = partial(tsmixer_kernel, n_block=nb)
    out2d = pl.pallas_call(
        kernel,
        out_shape=jax.ShapeDtypeStruct((H, B * N), f32),
        grid=(ntiles,),
        in_specs=[
            pl.BlockSpec((L, lanes), lambda i: (0, i)),                # x slab tile
            const_spec((nb, L, lanes)), const_spec((nb, L, lanes)),    # temporal scale / folded shift
            const_spec((nb, L, L)),                                    # temporal Linear W
            const_spec((nb, L, lanes)), const_spec((nb, L, lanes)),    # feature BN scale / shift
            const_spec((nb, lanes, flanes)), const_spec((nb, 1, flanes)),  # feature Linear1 (blockdiag), bias
            const_spec((nb, flanes, lanes)), const_spec((nb, 1, lanes)),   # feature Linear2 (blockdiag), bias
            const_spec((H, L)), const_spec((H, lanes)),                # projection W, bias
            const_spec((1, lanes)), const_spec((1, lanes)),            # RevIN weight, bias
        ],
        out_specs=pl.BlockSpec((H, lanes), lambda i: (0, i)),
        compiler_params=pltpu.CompilerParams(
            dimension_semantics=("parallel",),        # batch tiles are independent
            vmem_limit_bytes=32 * 1024 * 1024,        # above the 16 MiB v5e default
        ),
    )(x2d, ts_scale, ts_shift, params["wt"], fs_scale, fs_shift,
      w1bd, b1t, w2bd, b2t, params["wp"], bp_b, rw_t, rb_t)

    # Undo the lane folding: (H, B*N) -> (B, H, N)
    return jnp.transpose(out2d.reshape(H, B, N), (1, 0, 2))


# ----------------------------------------------------------------------------
# Pure-JAX reference (same math, vectorized over batch) for correctness check.
# ----------------------------------------------------------------------------
def tsmixer_ref(x, params):
    rw, rb = params["rw"], params["rb"]
    mean = jnp.mean(x, axis=1, keepdims=True)
    var = jnp.mean((x - mean) ** 2, axis=1, keepdims=True)
    stdev = jnp.sqrt(var + REVIN_EPS)
    z = (x - mean) / stdev * rw + rb
    n_block = params["bn_ts"].shape[0]
    for blk in range(n_block):
        t = z * params["bn_ts"][blk] + params["bn_tb"][blk]
        t = jnp.einsum("ij,bjn->bin", params["wt"][blk], t) + params["bt"][blk]
        z = jnp.maximum(t, 0.0) + z
        f = z * params["bn_fs"][blk] + params["bn_fb"][blk]
        h1 = jnp.maximum(
            jnp.einsum("bln,nf->blf", f, params["wf1t"][blk]) + params["bf1"][blk], 0.0)
        h2 = jnp.einsum("blf,fn->bln", h1, params["wf2t"][blk]) + params["bf2"][blk]
        z = h2 + z
    y = jnp.einsum("hl,bln->bhn", params["wp"], z) + params["bp"]
    y = (y - rb) / (rw + REVIN_EPS ** 2)
    return y * stdev + mean


# ----------------------------------------------------------------------------
# Deterministic parameter construction (fold BatchNorm into scale/shift maps).
# ----------------------------------------------------------------------------
def make_params(key, *, n_block, L, N, H, ff):
    ks = iter(jax.random.split(key, 64))

    def nrm(shape, scale=0.1):
        return scale * jax.random.normal(next(ks), shape, dtype=jnp.float32)

    def folded_bn(n_feat, reshape_order):
        gamma = 1.0 + nrm((n_feat,), 0.05)
        beta = nrm((n_feat,), 0.05)
        run_mean = nrm((n_feat,), 0.05)
        run_var = 1.0 + 0.05 * jnp.abs(jax.random.normal(next(ks), (n_feat,)))
        scale = gamma / jnp.sqrt(run_var + BN_EPS)
        shift = beta - run_mean * scale
        if reshape_order == "NL":      # temporal: flat index = n*L + l  -> (N,L) -> (L,N)
            return scale.reshape(N, L).T, shift.reshape(N, L).T
        else:                          # feature : flat index = l*N + n  -> (L,N)
            return scale.reshape(L, N), shift.reshape(L, N)

    bn_ts, bn_tb, bn_fs, bn_fb = [], [], [], []
    wt, bt, wf1t, bf1, wf2t, bf2 = [], [], [], [], [], []
    for _ in range(n_block):
        s, b = folded_bn(N * L, "NL"); bn_ts.append(s); bn_tb.append(b)
        wt.append(nrm((L, L)));  bt.append(nrm((L, 1)))
        s, b = folded_bn(L * N, "LN"); bn_fs.append(s); bn_fb.append(b)
        wf1t.append(nrm((N, ff))); bf1.append(nrm((1, ff)))
        wf2t.append(nrm((ff, N))); bf2.append(nrm((1, N)))

    return dict(
        bn_ts=jnp.stack(bn_ts), bn_tb=jnp.stack(bn_tb),
        wt=jnp.stack(wt), bt=jnp.stack(bt),
        bn_fs=jnp.stack(bn_fs), bn_fb=jnp.stack(bn_fb),
        wf1t=jnp.stack(wf1t), bf1=jnp.stack(bf1),
        wf2t=jnp.stack(wf2t), bf2=jnp.stack(bf2),
        wp=nrm((H, L)), bp=nrm((H, 1)),
        rw=1.0 + nrm((1, N), 0.05), rb=nrm((1, N), 0.05),
    )


if __name__ == "__main__":
    B, L, N = 64, 16, 4          # batch, input_size (time), n_series
    H, FF, NBLOCK = 8, 32, 2     # forecast horizon, ff_dim, n_block
    BATCH_TILE = 32              # 32 samples * 4 series = 128 lanes per grid step

    x = jax.random.normal(jax.random.PRNGKey(0), (B, L, N), dtype=jnp.float32)
    params = make_params(jax.random.PRNGKey(42), n_block=NBLOCK, L=L, N=N, H=H, ff=FF)

    out = tsmixer_forward(x, params, batch_tile=BATCH_TILE)
    out = jax.block_until_ready(out)

    ref = tsmixer_ref(x, params)
    assert out.shape == (B, H, N)
    assert jnp.allclose(out, ref, atol=5e-4, rtol=5e-4), "mismatch vs pure-JAX reference"
    print("KERNEL_OK")
</pallas_src>

<mosaic_0001>
module attributes {stable_mosaic.version = 11 : i64} {
  func.func @tsmixer_kernel(%arg0: i32, %arg1: memref<16x128xf32, #tpu.memory_space<vmem>>, %arg2: memref<2x16x128xf32, #tpu.memory_space<vmem>>, %arg3: memref<2x16x128xf32, #tpu.memory_space<vmem>>, %arg4: memref<2x16x16xf32, #tpu.memory_space<vmem>>, %arg5: memref<2x16x128xf32, #tpu.memory_space<vmem>>, %arg6: memref<2x16x128xf32, #tpu.memory_space<vmem>>, %arg7: memref<2x128x1024xf32, #tpu.memory_space<vmem>>, %arg8: memref<2x1x1024xf32, #tpu.memory_space<vmem>>, %arg9: memref<2x1024x128xf32, #tpu.memory_space<vmem>>, %arg10: memref<2x1x128xf32, #tpu.memory_space<vmem>>, %arg11: memref<8x16xf32, #tpu.memory_space<vmem>>, %arg12: memref<8x128xf32, #tpu.memory_space<vmem>>, %arg13: memref<1x128xf32, #tpu.memory_space<vmem>>, %arg14: memref<1x128xf32, #tpu.memory_space<vmem>>, %arg15: memref<8x128xf32, #tpu.memory_space<vmem>>) attributes {dimension_semantics = [#tpu.dimension_semantics<parallel>], iteration_bounds = array<i64: 2>, scalar_prefetch = 0 : i64, scratch_operands = 0 : i64, tpu.core_type = #tpu.core_type<tc>, window_params = [{transform_indices = @transform_0, window_bounds = array<i64: 16, 128>}, {pipeline_mode = #tpu.pipeline_mode<synchronous>, transform_indices = @transform_1, window_bounds = array<i64: 2, 16, 128>}, {pipeline_mode = #tpu.pipeline_mode<synchronous>, transform_indices = @transform_2, window_bounds = array<i64: 2, 16, 128>}, {pipeline_mode = #tpu.pipeline_mode<synchronous>, transform_indices = @transform_3, window_bounds = array<i64: 2, 16, 16>}, {pipeline_mode = #tpu.pipeline_mode<synchronous>, transform_indices = @transform_4, window_bounds = array<i64: 2, 16, 128>}, {pipeline_mode = #tpu.pipeline_mode<synchronous>, transform_indices = @transform_5, window_bounds = array<i64: 2, 16, 128>}, {pipeline_mode = #tpu.pipeline_mode<synchronous>, transform_indices = @transform_6, window_bounds = array<i64: 2, 128, 1024>}, {pipeline_mode = #tpu.pipeline_mode<synchronous>, transform_indices = @transform_7, window_bounds = array<i64: 2, 1, 1024>}, {pipeline_mode = #tpu.pipeline_mode<synchronous>, transform_indices = @transform_8, window_bounds = array<i64: 2, 1024, 128>}, {pipeline_mode = #tpu.pipeline_mode<synchronous>, transform_indices = @transform_9, window_bounds = array<i64: 2, 1, 128>}, {pipeline_mode = #tpu.pipeline_mode<synchronous>, transform_indices = @transform_10, window_bounds = array<i64: 8, 16>}, {pipeline_mode = #tpu.pipeline_mode<synchronous>, transform_indices = @transform_11, window_bounds = array<i64: 8, 128>}, {pipeline_mode = #tpu.pipeline_mode<synchronous>, transform_indices = @transform_12, window_bounds = array<i64: 1, 128>}, {pipeline_mode = #tpu.pipeline_mode<synchronous>, transform_indices = @transform_13, window_bounds = array<i64: 1, 128>}, {transform_indices = @transform_14, window_bounds = array<i64: 8, 128>}]} {
    %c0 = arith.constant 0 : index
    %c0_0 = arith.constant 0 : index
    %0 = vector.load %arg1[%c0, %c0_0] : memref<16x128xf32, #tpu.memory_space<vmem>>, vector<16x128xf32>
    %c0_1 = arith.constant 0 : index
    %c0_2 = arith.constant 0 : index
    %1 = vector.load %arg13[%c0_1, %c0_2] : memref<1x128xf32, #tpu.memory_space<vmem>>, vector<1x128xf32>
    %c0_3 = arith.constant 0 : index
    %c0_4 = arith.constant 0 : index
    %2 = vector.load %arg14[%c0_3, %c0_4] : memref<1x128xf32, #tpu.memory_space<vmem>>, vector<1x128xf32>
    %cst = arith.constant dense<0.000000e+00> : vector<128xf32>
    %3 = vector.multi_reduction <add>, %0, %cst [0] : vector<16x128xf32> to vector<128xf32>
    %4 = vector.shape_cast %3 : vector<128xf32> to vector<1x128xf32>
    %cst_5 = arith.constant 1.600000e+01 : f32
    %5 = vector.broadcast %cst_5 : f32 to vector<1x128xf32>
    %6 = arith.divf %4, %5 : vector<1x128xf32>
    %7 = vector.broadcast %6 : vector<1x128xf32> to vector<16x128xf32>
    %8 = arith.subf %0, %7 : vector<16x128xf32>
    %9 = arith.mulf %8, %8 : vector<16x128xf32>
    %cst_6 = arith.constant dense<0.000000e+00> : vector<128xf32>
    %10 = vector.multi_reduction <add>, %9, %cst_6 [0] : vector<16x128xf32> to vector<128xf32>
    %11 = vector.shape_cast %10 : vector<128xf32> to vector<1x128xf32>
    %cst_7 = arith.constant 1.600000e+01 : f32
    %12 = vector.broadcast %cst_7 : f32 to vector<1x128xf32>
    %13 = arith.divf %11, %12 : vector<1x128xf32>
    %cst_8 = arith.constant 9.99999974E-6 : f32
    %14 = vector.broadcast %cst_8 : f32 to vector<1x128xf32>
    %15 = arith.addf %13, %14 : vector<1x128xf32>
    %16 = math.sqrt %15 : vector<1x128xf32>
    %17 = vector.broadcast %6 : vector<1x128xf32> to vector<16x128xf32>
    %18 = arith.subf %0, %17 : vector<16x128xf32>
    %cst_9 = arith.constant 1.000000e+00 : f32
    %19 = vector.broadcast %cst_9 : f32 to vector<1x128xf32>
    %20 = arith.divf %19, %16 : vector<1x128xf32>
    %21 = vector.broadcast %20 : vector<1x128xf32> to vector<16x128xf32>
    %22 = arith.mulf %18, %21 : vector<16x128xf32>
    %23 = vector.broadcast %1 : vector<1x128xf32> to vector<16x128xf32>
    %24 = arith.mulf %22, %23 : vector<16x128xf32>
    %25 = vector.broadcast %2 : vector<1x128xf32> to vector<16x128xf32>
    %26 = arith.addf %24, %25 : vector<16x128xf32>
    %c0_10 = arith.constant 0 : index
    %c0_11 = arith.constant 0 : index
    %c0_12 = arith.constant 0 : index
    %27 = vector.load %arg4[%c0_10, %c0_11, %c0_12] : memref<2x16x16xf32, #tpu.memory_space<vmem>>, vector<1x16x16xf32>
    %28 = vector.shape_cast %27 : vector<1x16x16xf32> to vector<16x16xf32>
    %c0_13 = arith.constant 0 : index
    %c0_14 = arith.constant 0 : index
    %c0_15 = arith.constant 0 : index
    %29 = vector.load %arg2[%c0_13, %c0_14, %c0_15] : memref<2x16x128xf32, #tpu.memory_space<vmem>>, vector<1x16x128xf32>
    %30 = vector.shape_cast %29 : vector<1x16x128xf32> to vector<16x128xf32>
    %31 = arith.mulf %26, %30 : vector<16x128xf32>
    %cst_16 = arith.constant dense<0.000000e+00> : vector<16x128xf32>
    %32 = tpu.matmul %28, %31, %cst_16 {dimension_numbers = #tpu.dot_dimension_numbers<[1], [0], [0], [1], [0, 0, 1, 1], [], []>} : vector<16x16xf32>, vector<16x128xf32>, vector<16x128xf32> -> vector<16x128xf32>
    %c0_17 = arith.constant 0 : index
    %c0_18 = arith.constant 0 : index
    %c0_19 = arith.constant 0 : index
    %33 = vector.load %arg3[%c0_17, %c0_18, %c0_19] : memref<2x16x128xf32, #tpu.memory_space<vmem>>, vector<1x16x128xf32>
    %34 = vector.shape_cast %33 : vector<1x16x128xf32> to vector<16x128xf32>
    %35 = arith.addf %32, %34 : vector<16x128xf32>
    %cst_20 = arith.constant 0.000000e+00 : f32
    %36 = vector.broadcast %cst_20 : f32 to vector<16x128xf32>
    %37 = arith.maximumf %35, %36 : vector<16x128xf32>
    %38 = arith.addf %37, %26 : vector<16x128xf32>
    %c0_21 = arith.constant 0 : index
    %c0_22 = arith.constant 0 : index
    %c0_23 = arith.constant 0 : index
    %39 = vector.load %arg5[%c0_21, %c0_22, %c0_23] : memref<2x16x128xf32, #tpu.memory_space<vmem>>, vector<1x16x128xf32>
    %40 = vector.shape_cast %39 : vector<1x16x128xf32> to vector<16x128xf32>
    %41 = arith.mulf %38, %40 : vector<16x128xf32>
    %c0_24 = arith.constant 0 : index
    %c0_25 = arith.constant 0 : index
    %c0_26 = arith.constant 0 : index
    %42 = vector.load %arg6[%c0_24, %c0_25, %c0_26] : memref<2x16x128xf32, #tpu.memory_space<vmem>>, vector<1x16x128xf32>
    %43 = vector.shape_cast %42 : vector<1x16x128xf32> to vector<16x128xf32>
    %44 = arith.addf %41, %43 : vector<16x128xf32>
    %c0_27 = arith.constant 0 : index
    %c0_28 = arith.constant 0 : index
    %c0_29 = arith.constant 0 : index
    %45 = vector.load %arg7[%c0_27, %c0_28, %c0_29] : memref<2x128x1024xf32, #tpu.memory_space<vmem>>, vector<1x128x1024xf32>
    %46 = vector.shape_cast %45 : vector<1x128x1024xf32> to vector<128x1024xf32>
    %cst_30 = arith.constant dense<0.000000e+00> : vector<16x1024xf32>
    %47 = tpu.matmul %44, %46, %cst_30 {dimension_numbers = #tpu.dot_dimension_numbers<[1], [0], [0], [1], [0, 0, 1, 1], [], []>} : vector<16x128xf32>, vector<128x1024xf32>, vector<16x1024xf32> -> vector<16x1024xf32>
    %c0_31 = arith.constant 0 : index
    %c0_32 = arith.constant 0 : index
    %c0_33 = arith.constant 0 : index
    %48 = vector.load %arg8[%c0_31, %c0_32, %c0_33] : memref<2x1x1024xf32, #tpu.memory_space<vmem>>, vector<1x1x1024xf32>
    %49 = vector.shape_cast %48 : vector<1x1x1024xf32> to vector<1x1024xf32>
    %50 = vector.broadcast %49 : vector<1x1024xf32> to vector<16x1024xf32>
    %51 = arith.addf %47, %50 : vector<16x1024xf32>
    %cst_34 = arith.constant 0.000000e+00 : f32
    %52 = vector.broadcast %cst_34 : f32 to vector<16x1024xf32>
    %53 = arith.maximumf %51, %52 : vector<16x1024xf32>
    %c0_35 = arith.constant 0 : index
    %c0_36 = arith.constant 0 : index
    %c0_37 = arith.constant 0 : index
    %54 = vector.load %arg9[%c0_35, %c0_36, %c0_37] : memref<2x1024x128xf32, #tpu.memory_space<vmem>>, vector<1x1024x128xf32>
    %55 = vector.shape_cast %54 : vector<1x1024x128xf32> to vector<1024x128xf32>
    %cst_38 = arith.constant dense<0.000000e+00> : vector<16x128xf32>
    %56 = tpu.matmul %53, %55, %cst_38 {dimension_numbers = #tpu.dot_dimension_numbers<[1], [0], [0], [1], [0, 0, 1, 1], [], []>} : vector<16x1024xf32>, vector<1024x128xf32>, vector<16x128xf32> -> vector<16x128xf32>
    %c0_39 = arith.constant 0 : index
    %c0_40 = arith.constant 0 : index
    %c0_41 = arith.constant 0 : index
    %57 = vector.load %arg10[%c0_39, %c0_40, %c0_41] : memref<2x1x128xf32, #tpu.memory_space<vmem>>, vector<1x1x128xf32>
    %58 = vector.shape_cast %57 : vector<1x1x128xf32> to vector<1x128xf32>
    %59 = vector.broadcast %58 : vector<1x128xf32> to vector<16x128xf32>
    %60 = arith.addf %56, %59 : vector<16x128xf32>
    %61 = arith.addf %60, %38 : vector<16x128xf32>
    %c1 = arith.constant 1 : index
    %c0_42 = arith.constant 0 : index
    %c0_43 = arith.constant 0 : index
    %62 = vector.load %arg4[%c1, %c0_42, %c0_43] : memref<2x16x16xf32, #tpu.memory_space<vmem>>, vector<1x16x16xf32>
    %63 = vector.shape_cast %62 : vector<1x16x16xf32> to vector<16x16xf32>
    %c1_44 = arith.constant 1 : index
    %c0_45 = arith.constant 0 : index
    %c0_46 = arith.constant 0 : index
    %64 = vector.load %arg2[%c1_44, %c0_45, %c0_46] : memref<2x16x128xf32, #tpu.memory_space<vmem>>, vector<1x16x128xf32>
    %65 = vector.shape_cast %64 : vector<1x16x128xf32> to vector<16x128xf32>
    %66 = arith.mulf %61, %65 : vector<16x128xf32>
    %cst_47 = arith.constant dense<0.000000e+00> : vector<16x128xf32>
    %67 = tpu.matmul %63, %66, %cst_47 {dimension_numbers = #tpu.dot_dimension_numbers<[1], [0], [0], [1], [0, 0, 1, 1], [], []>} : vector<16x16xf32>, vector<16x128xf32>, vector<16x128xf32> -> vector<16x128xf32>
    %c1_48 = arith.constant 1 : index
    %c0_49 = arith.constant 0 : index
    %c0_50 = arith.constant 0 : index
    %68 = vector.load %arg3[%c1_48, %c0_49, %c0_50] : memref<2x16x128xf32, #tpu.memory_space<vmem>>, vector<1x16x128xf32>
    %69 = vector.shape_cast %68 : vector<1x16x128xf32> to vector<16x128xf32>
    %70 = arith.addf %67, %69 : vector<16x128xf32>
    %cst_51 = arith.constant 0.000000e+00 : f32
    %71 = vector.broadcast %cst_51 : f32 to vector<16x128xf32>
    %72 = arith.maximumf %70, %71 : vector<16x128xf32>
    %73 = arith.addf %72, %61 : vector<16x128xf32>
    %c1_52 = arith.constant 1 : index
    %c0_53 = arith.constant 0 : index
    %c0_54 = arith.constant 0 : index
    %74 = vector.load %arg5[%c1_52, %c0_53, %c0_54] : memref<2x16x128xf32, #tpu.memory_space<vmem>>, vector<1x16x128xf32>
    %75 = vector.shape_cast %74 : vector<1x16x128xf32> to vector<16x128xf32>
    %76 = arith.mulf %73, %75 : vector<16x128xf32>
    %c1_55 = arith.constant 1 : index
    %c0_56 = arith.constant 0 : index
    %c0_57 = arith.constant 0 : index
    %77 = vector.load %arg6[%c1_55, %c0_56, %c0_57] : memref<2x16x128xf32, #tpu.memory_space<vmem>>, vector<1x16x128xf32>
    %78 = vector.shape_cast %77 : vector<1x16x128xf32> to vector<16x128xf32>
    %79 = arith.addf %76, %78 : vector<16x128xf32>
    %c1_58 = arith.constant 1 : index
    %c0_59 = arith.constant 0 : index
    %c0_60 = arith.constant 0 : index
    %80 = vector.load %arg7[%c1_58, %c0_59, %c0_60] : memref<2x128x1024xf32, #tpu.memory_space<vmem>>, vector<1x128x1024xf32>
    %81 = vector.shape_cast %80 : vector<1x128x1024xf32> to vector<128x1024xf32>
    %cst_61 = arith.constant dense<0.000000e+00> : vector<16x1024xf32>
    %82 = tpu.matmul %79, %81, %cst_61 {dimension_numbers = #tpu.dot_dimension_numbers<[1], [0], [0], [1], [0, 0, 1, 1], [], []>} : vector<16x128xf32>, vector<128x1024xf32>, vector<16x1024xf32> -> vector<16x1024xf32>
    %c1_62 = arith.constant 1 : index
    %c0_63 = arith.constant 0 : index
    %c0_64 = arith.constant 0 : index
    %83 = vector.load %arg8[%c1_62, %c0_63, %c0_64] : memref<2x1x1024xf32, #tpu.memory_space<vmem>>, vector<1x1x1024xf32>
    %84 = vector.shape_cast %83 : vector<1x1x1024xf32> to vector<1x1024xf32>
    %85 = vector.broadcast %84 : vector<1x1024xf32> to vector<16x1024xf32>
    %86 = arith.addf %82, %85 : vector<16x1024xf32>
    %cst_65 = arith.constant 0.000000e+00 : f32
    %87 = vector.broadcast %cst_65 : f32 to vector<16x1024xf32>
    %88 = arith.maximumf %86, %87 : vector<16x1024xf32>
    %c1_66 = arith.constant 1 : index
    %c0_67 = arith.constant 0 : index
    %c0_68 = arith.constant 0 : index
    %89 = vector.load %arg9[%c1_66, %c0_67, %c0_68] : memref<2x1024x128xf32, #tpu.memory_space<vmem>>, vector<1x1024x128xf32>
    %90 = vector.shape_cast %89 : vector<1x1024x128xf32> to vector<1024x128xf32>
    %cst_69 = arith.constant dense<0.000000e+00> : vector<16x128xf32>
    %91 = tpu.matmul %88, %90, %cst_69 {dimension_numbers = #tpu.dot_dimension_numbers<[1], [0], [0], [1], [0, 0, 1, 1], [], []>} : vector<16x1024xf32>, vector<1024x128xf32>, vector<16x128xf32> -> vector<16x128xf32>
    %c1_70 = arith.constant 1 : index
    %c0_71 = arith.constant 0 : index
    %c0_72 = arith.constant 0 : index
    %92 = vector.load %arg10[%c1_70, %c0_71, %c0_72] : memref<2x1x128xf32, #tpu.memory_space<vmem>>, vector<1x1x128xf32>
    %93 = vector.shape_cast %92 : vector<1x1x128xf32> to vector<1x128xf32>
    %94 = vector.broadcast %93 : vector<1x128xf32> to vector<16x128xf32>
    %95 = arith.addf %91, %94 : vector<16x128xf32>
    %96 = arith.addf %95, %73 : vector<16x128xf32>
    %c0_73 = arith.constant 0 : index
    %c0_74 = arith.constant 0 : index
    %97 = vector.load %arg11[%c0_73, %c0_74] : memref<8x16xf32, #tpu.memory_space<vmem>>, vector<8x16xf32>
    %cst_75 = arith.constant dense<0.000000e+00> : vector<8x128xf32>
    %98 = tpu.matmul %97, %96, %cst_75 {dimension_numbers = #tpu.dot_dimension_numbers<[1], [0], [0], [1], [0, 0, 1, 1], [], []>} : vector<8x16xf32>, vector<16x128xf32>, vector<8x128xf32> -> vector<8x128xf32>
    %c0_76 = arith.constant 0 : index
    %c0_77 = arith.constant 0 : index
    %99 = vector.load %arg12[%c0_76, %c0_77] : memref<8x128xf32, #tpu.memory_space<vmem>>, vector<8x128xf32>
    %100 = arith.addf %98, %99 : vector<8x128xf32>
    %cst_78 = arith.constant 1.000000e-10 : f32
    %101 = vector.broadcast %cst_78 : f32 to vector<1x128xf32>
    %102 = arith.addf %1, %101 : vector<1x128xf32>
    %103 = arith.divf %16, %102 : vector<1x128xf32>
    %104 = arith.mulf %2, %103 : vector<1x128xf32>
    %105 = arith.subf %6, %104 : vector<1x128xf32>
    %106 = vector.broadcast %103 : vector<1x128xf32> to vector<8x128xf32>
    %107 = arith.mulf %100, %106 : vector<8x128xf32>
    %108 = vector.broadcast %105 : vector<1x128xf32> to vector<8x128xf32>
    %109 = arith.addf %107, %108 : vector<8x128xf32>
    %c0_79 = arith.constant 0 : index
    %c0_80 = arith.constant 0 : index
    %110 = vector.load %arg15[%c0_79, %c0_80] : memref<8x128xf32, #tpu.memory_space<vmem>>, vector<8x128xf32>
    tpu.vector_store %arg15[%c0_79, %c0_80], %109 {strides = array<i32>} : memref<8x128xf32, #tpu.memory_space<vmem>>, vector<8x128xf32>,
    return
  }
  func.func @transform_0(%arg0: i32) -> (i32, i32) {
    %c0_i32 = arith.constant 0 : i32
    %c0_i32_0 = arith.constant 0 : i32
    return %c0_i32, %arg0 : i32, i32
  }
  func.func @transform_1(%arg0: i32) -> (i32, i32, i32) {
    %c0_i32 = arith.constant 0 : i32
    %c0_i32_0 = arith.constant 0 : i32
    %c0_i32_1 = arith.constant 0 : i32
    %c0_i32_2 = arith.constant 0 : i32
    return %c0_i32, %c0_i32_0, %c0_i32_1 : i32, i32, i32
  }
  func.func @transform_2(%arg0: i32) -> (i32, i32, i32) {
    %c0_i32 = arith.constant 0 : i32
    %c0_i32_0 = arith.constant 0 : i32
    %c0_i32_1 = arith.constant 0 : i32
    %c0_i32_2 = arith.constant 0 : i32
    return %c0_i32, %c0_i32_0, %c0_i32_1 : i32, i32, i32
  }
  func.func @transform_3(%arg0: i32) -> (i32, i32, i32) {
    %c0_i32 = arith.constant 0 : i32
    %c0_i32_0 = arith.constant 0 : i32
    %c0_i32_1 = arith.constant 0 : i32
    %c0_i32_2 = arith.constant 0 : i32
    return %c0_i32, %c0_i32_0, %c0_i32_1 : i32, i32, i32
  }
  func.func @transform_4(%arg0: i32) -> (i32, i32, i32) {
    %c0_i32 = arith.constant 0 : i32
    %c0_i32_0 = arith.constant 0 : i32
    %c0_i32_1 = arith.constant 0 : i32
    %c0_i32_2 = arith.constant 0 : i32
    return %c0_i32, %c0_i32_0, %c0_i32_1 : i32, i32, i32
  }
  func.func @transform_5(%arg0: i32) -> (i32, i32, i32) {
    %c0_i32 = arith.constant 0 : i32
    %c0_i32_0 = arith.constant 0 : i32
    %c0_i32_1 = arith.constant 0 : i32
    %c0_i32_2 = arith.constant 0 : i32
    return %c0_i32, %c0_i32_0, %c0_i32_1 : i32, i32, i32
  }
  func.func @transform_6(%arg0: i32) -> (i32, i32, i32) {
    %c0_i32 = arith.constant 0 : i32
    %c0_i32_0 = arith.constant 0 : i32
    %c0_i32_1 = arith.constant 0 : i32
    %c0_i32_2 = arith.constant 0 : i32
    return %c0_i32, %c0_i32_0, %c0_i32_1 : i32, i32, i32
  }
  func.func @transform_7(%arg0: i32) -> (i32, i32, i32) {
    %c0_i32 = arith.constant 0 : i32
    %c0_i32_0 = arith.constant 0 : i32
    %c0_i32_1 = arith.constant 0 : i32
    %c0_i32_2 = arith.constant 0 : i32
    return %c0_i32, %c0_i32_0, %c0_i32_1 : i32, i32, i32
  }
  func.func @transform_8(%arg0: i32) -> (i32, i32, i32) {
    %c0_i32 = arith.constant 0 : i32
    %c0_i32_0 = arith.constant 0 : i32
    %c0_i32_1 = arith.constant 0 : i32
    %c0_i32_2 = arith.constant 0 : i32
    return %c0_i32, %c0_i32_0, %c0_i32_1 : i32, i32, i32
  }
  func.func @transform_9(%arg0: i32) -> (i32, i32, i32) {
    %c0_i32 = arith.constant 0 : i32
    %c0_i32_0 = arith.constant 0 : i32
    %c0_i32_1 = arith.constant 0 : i32
    %c0_i32_2 = arith.constant 0 : i32
    return %c0_i32, %c0_i32_0, %c0_i32_1 : i32, i32, i32
  }
  func.func @transform_10(%arg0: i32) -> (i32, i32) {
    %c0_i32 = arith.constant 0 : i32
    %c0_i32_0 = arith.constant 0 : i32
    %c0_i32_1 = arith.constant 0 : i32
    return %c0_i32, %c0_i32_0 : i32, i32
  }
  func.func @transform_11(%arg0: i32) -> (i32, i32) {
    %c0_i32 = arith.constant 0 : i32
    %c0_i32_0 = arith.constant 0 : i32
    %c0_i32_1 = arith.constant 0 : i32
    return %c0_i32, %c0_i32_0 : i32, i32
  }
  func.func @transform_12(%arg0: i32) -> (i32, i32) {
    %c0_i32 = arith.constant 0 : i32
    %c0_i32_0 = arith.constant 0 : i32
    %c0_i32_1 = arith.constant 0 : i32
    return %c0_i32, %c0_i32_0 : i32, i32
  }
  func.func @transform_13(%arg0: i32) -> (i32, i32) {
    %c0_i32 = arith.constant 0 : i32
    %c0_i32_0 = arith.constant 0 : i32
    %c0_i32_1 = arith.constant 0 : i32
    return %c0_i32, %c0_i32_0 : i32, i32
  }
  func.func @transform_14(%arg0: i32) -> (i32, i32) {
    %c0_i32 = arith.constant 0 : i32
    %c0_i32_0 = arith.constant 0 : i32
    return %c0_i32, %arg0 : i32, i32
  }
}

</mosaic_0001>

<llo_original>
// kernel: tpu_custom_call.1
$region0: #{tpu_custom_call.1}
  #allocation0 [shape = 'u32[]', space=smem, size = 0x4, offset = 0x4, fixed_abs, tag = 'smem constant byte address 0x4 - core index']
  #allocation1 [shape = 'u32[144,128]{1,0:T(1,128)}', space=vmem, size = 0x12000, scoped, tag = 'internal scratch']
  %s0 = inlined_call_operand.hbm [shape: f32[16,256], index: 0, kind: input, shape index: {}]
  %s1 = inlined_call_operand.hbm [shape: f32[2,16,128], index: 1, kind: input, shape index: {}]
  %s2 = inlined_call_operand.hbm [shape: f32[2,16,128], index: 2, kind: input, shape index: {}]
  %s3 = inlined_call_operand.hbm [shape: f32[2,16,16], index: 3, kind: input, shape index: {}]
  %s4 = inlined_call_operand.hbm [shape: f32[2,16,128], index: 4, kind: input, shape index: {}]
  %s5 = inlined_call_operand.hbm [shape: f32[2,16,128], index: 5, kind: input, shape index: {}]
  %s6 = inlined_call_operand.hbm [shape: f32[2,128,1024], index: 6, kind: input, shape index: {}]
  %s7 = inlined_call_operand.vmem [shape: f32[2,1,1024], index: 7, kind: input, shape index: {}]
  %s8 = inlined_call_operand.hbm [shape: f32[2,1024,128], index: 8, kind: input, shape index: {}]
  %s9 = inlined_call_operand.vmem [shape: f32[2,1,128], index: 9, kind: input, shape index: {}]
  %s10 = inlined_call_operand.vmem [shape: f32[8,16], index: 10, kind: input, shape index: {}]
  %s11 = inlined_call_operand.vmem [shape: f32[8,128], index: 11, kind: input, shape index: {}]
  %s12 = inlined_call_operand.vmem [shape: f32[1,128], index: 12, kind: input, shape index: {}]
  %s13 = inlined_call_operand.vmem [shape: f32[1,128], index: 13, kind: input, shape index: {}]
  %s14 = inlined_call_operand.hbm [shape: f32[8,256], index: 14, kind: output, shape index: {}]
  %s15 = sld [smem:[#allocation0]]
  $region121: #{tpu_custom_call.1} parent=0
    _
  %s17 = ssub.s32 1, %s15
  %s18 = scalar_select 0, %s17, %s15
  $region1: #{tpu_custom_call.1} parent=0
    #allocation2 [shape = 'u8[16384]{0}', space=vmem, size = 0x4000, scoped, tag = 'input window, operand 0']
    #allocation3 [shape = 's32[2]{0}', space=sflag, size = 0x8, scoped, tag = 'scoped memory for tpu_custom_call.1']
    #allocation4 [shape = 's32[2]{0}', space=sflag, size = 0x8, scoped, tag = 'scoped memory for tpu_custom_call.1']
    #allocation5 [shape = 'u8[16384]{0}', space=vmem, size = 0x4000, scoped, tag = 'input window, operand 1, single buffered']
    #allocation6 [shape = 's32[1]{0}', space=sflag, size = 0x4, scoped, tag = 'scoped memory for tpu_custom_call.1']
    #allocation7 [shape = 'u8[16384]{0}', space=vmem, size = 0x4000, scoped, tag = 'input window, operand 2, single buffered']
    #allocation8 [shape = 'u8[16384]{0}', space=vmem, size = 0x4000, scoped, tag = 'input window, operand 3, single buffered']
    #allocation9 [shape = 's32[1]{0}', space=sflag, size = 0x4, scoped, tag = 'scoped memory for tpu_custom_call.1']
    #allocation10 [shape = 'u8[16384]{0}', space=vmem, size = 0x4000, scoped, tag = 'input window, operand 4, single buffered']
    #allocation11 [shape = 'u8[16384]{0}', space=vmem, size = 0x4000, scoped, tag = 'input window, operand 5, single buffered']
    #allocation12 [shape = 's32[1]{0}', space=sflag, size = 0x4, scoped, tag = 'scoped memory for tpu_custom_call.1']
    #allocation13 [shape = 'u8[1048576]{0}', space=vmem, size = 0x100000, scoped, tag = 'input window, operand 6, single buffered']
    #allocation14 [shape = 'u8[1048576]{0}', space=vmem, size = 0x100000, scoped, tag = 'input window, operand 8, single buffered']
    #allocation15 [shape = 's32[1]{0}', space=sflag, size = 0x4, scoped, tag = 'scoped memory for tpu_custom_call.1']
    #allocation16 [shape = 'u8[8192]{0}', space=vmem, size = 0x2000, scoped, tag = 'output window, operand 0']
    %19 = vsyncpa [#allocation3], 0
    %s20 = scalar_lea.sflag [#allocation3], 1
    %21 = vsyncpa %s20, 0
    %22 = vsyncpa [#allocation6], 0
    %23 = vsyncpa [#allocation9], 0
    %24 = vsyncpa [#allocation12], 0
    %25 = vsyncpa [#allocation15], 0
    %26 = vsyncpa [#allocation4], 0
    %s27 = scalar_lea.sflag [#allocation4], 1
    %28 = vsyncpa %s27, 0
    loop: start=0, step=1, limit=4
    $region2: #{tpu_custom_call.1} parent=1 // loop_pre_header
      _
    $region3: #{tpu_custom_call.1} parent=1 // loop_header
      %s30 = sphi 0, %s34
      %p31 = scmp.ge.s32.totalorder %s30, 4
      %s40 = sphi 0, %s42
      %s43 = sphi 0, %s40
      %s44 = sphi 0, %s43
      %s60 = sphi 0, %s44
      %s64 = sphi 0, %s64
      %s66 = sphi 0, %s64
      %s67 = sphi 0, %s66
      %s81 = sphi 0, %s67
      %s85 = sphi 0, %s85
      %s87 = sphi 0, %s85
      %s88 = sphi 0, %s87
      %s102 = sphi 0, %s88
      %s106 = sphi 0, %s106
      %s108 = sphi 0, %s106
      %s109 = sphi 0, %s108
      %s123 = sphi 0, %s109
      %s127 = sphi 0, %s127
      %s129 = sphi 0, %s127
      %s130 = sphi 0, %s129
      %s144 = sphi 0, %s130
      %s148 = sphi 0, %s148
      %s150 = sphi 0, %s148
      %s151 = sphi 0, %s150
      %s165 = sphi 0, %s151
      %s169 = sphi 0, %s169
      %s171 = sphi 0, %s169
      %s172 = sphi 0, %s171
      %s186 = sphi 0, %s172
      %s190 = sphi 0, %s190
      %s192 = sphi 0, %s190
      %s193 = sphi 0, %s192
      %s207 = sphi 0, %s193
      %s211 = sphi 0, %s211
      %s213 = sphi 0, %s211
      %s214 = sphi 0, %s213
      %s228 = sphi 0, %s214
      %s232 = sphi 0, %s232
      %s234 = sphi 0, %s232
      %s235 = sphi 0, %s234
      %s249 = sphi 0, %s235
      %s253 = sphi 0, %s253
      %s255 = sphi 0, %s253
      %s256 = sphi 0, %s255
      %s270 = sphi 0, %s256
      %s274 = sphi 0, %s274
      %s276 = sphi 0, %s274
      %s277 = sphi 0, %s276
      %s291 = sphi 0, %s277
      %s295 = sphi 0, %s295
      %s297 = sphi 0, %s295
      %s298 = sphi 0, %s297
      %s312 = sphi 0, %s298
      %s316 = sphi 0, %s316
      %s318 = sphi 0, %s316
      %s319 = sphi 0, %s318
      %s333 = sphi 0, %s319
      %s339 = sphi 0, %s341
      %s342 = sphi 0, %s339
      %s343 = sphi 0, %s342
      %s359 = sphi 0, %s343
    $region4: #{tpu_custom_call.1} parent=1 // loop_header_branch
      %33 = sbr.rel (%p31) target = $region8
    $region5: #{tpu_custom_call.1} parent=1 // loop_body
      %s35 = ssub.s32 %s30, 1
      %s36 = ssub.s32 %s30, 2
      %s37 = sadd.s32 %s30, 1
      %s38 = ssub.s32 %s30, %s37
      %p39 = scmp.eq.s32.totalorder %s38, 0
      %s41 = sadd.s32 %s40, 1
      %s42 = scalar_select %p39, %s40, %s41
      %p45 = pneg %p39
      %p46 = scmp.eq.s32.totalorder %s30, 1
      %p47 = por %p45, %p46
      %p48 = scmp.ne.s32.totalorder %s40, %s43
      %p49 = scmp.eq.s32.totalorder %s30, 0
      %p50 = por %p48, %p49
      %p51 = scmp.ne.s32.totalorder %s40, %s43
      %p52 = scmp.eq.s32.totalorder %s35, 1
      %p53 = por %p51, %p52
      %p54 = scmp.ne.s32.totalorder %s43, %s44
      %p55 = scmp.eq.s32.totalorder %s35, 0
      %p56 = por %p54, %p55
      %p57 = scmp.ne.s32.totalorder %s43, %s44
      %p58 = scmp.eq.s32.totalorder %s36, 1
      %p59 = por %p57, %p58
      %p61 = scmp.ne.s32.totalorder %s44, %s60
      %p62 = scmp.eq.s32.totalorder %s36, 0
      %p63 = por %p61, %p62
      %s65 = sadd.s32 %s64, 1
      %p68 = scmp.eq.s32.totalorder %s30, 1
      %p69 = scmp.ne.s32.totalorder %s64, %s66
      %p70 = scmp.eq.s32.totalorder %s30, 0
      %p71 = por %p69, %p70
      %p72 = scmp.ne.s32.totalorder %s64, %s66
      %p73 = scmp.eq.s32.totalorder %s35, 1
      %p74 = por %p72, %p73
      %p75 = scmp.ne.s32.totalorder %s66, %s67
      %p76 = scmp.eq.s32.totalorder %s35, 0
      %p77 = por %p75, %p76
      %p78 = scmp.ne.s32.totalorder %s66, %s67
      %p79 = scmp.eq.s32.totalorder %s36, 1
      %p80 = por %p78, %p79
      %p82 = scmp.ne.s32.totalorder %s67, %s81
      %p83 = scmp.eq.s32.totalorder %s36, 0
      %p84 = por %p82, %p83
      %s86 = sadd.s32 %s85, 1
      %p89 = scmp.eq.s32.totalorder %s30, 1
      %p90 = scmp.ne.s32.totalorder %s85, %s87
      %p91 = scmp.eq.s32.totalorder %s30, 0
      %p92 = por %p90, %p91
      %p93 = scmp.ne.s32.totalorder %s85, %s87
      %p94 = scmp.eq.s32.totalorder %s35, 1
      %p95 = por %p93, %p94
      %p96 = scmp.ne.s32.totalorder %s87, %s88
      %p97 = scmp.eq.s32.totalorder %s35, 0
      %p98 = por %p96, %p97
      %p99 = scmp.ne.s32.totalorder %s87, %s88
      %p100 = scmp.eq.s32.totalorder %s36, 1
      %p101 = por %p99, %p100
      %p103 = scmp.ne.s32.totalorder %s88, %s102
      %p104 = scmp.eq.s32.totalorder %s36, 0
      %p105 = por %p103, %p104
      %s107 = sadd.s32 %s106, 1
      %p110 = scmp.eq.s32.totalorder %s30, 1
      %p111 = scmp.ne.s32.totalorder %s106, %s108
      %p112 = scmp.eq.s32.totalorder %s30, 0
      %p113 = por %p111, %p112
      %p114 = scmp.ne.s32.totalorder %s106, %s108
      %p115 = scmp.eq.s32.totalorder %s35, 1
      %p116 = por %p114, %p115
      %p117 = scmp.ne.s32.totalorder %s108, %s109
      %p118 = scmp.eq.s32.totalorder %s35, 0
      %p119 = por %p117, %p118
      %p120 = scmp.ne.s32.totalorder %s108, %s109
      %p121 = scmp.eq.s32.totalorder %s36, 1
      %p122 = por %p120, %p121
      %p124 = scmp.ne.s32.totalorder %s109, %s123
      %p125 = scmp.eq.s32.totalorder %s36, 0
      %p126 = por %p124, %p125
      %s128 = sadd.s32 %s127, 1
      %p131 = scmp.eq.s32.totalorder %s30, 1
      %p132 = scmp.ne.s32.totalorder %s127, %s129
      %p133 = scmp.eq.s32.totalorder %s30, 0
      %p134 = por %p132, %p133
      %p135 = scmp.ne.s32.totalorder %s127, %s129
      %p136 = scmp.eq.s32.totalorder %s35, 1
      %p137 = por %p135, %p136
      %p138 = scmp.ne.s32.totalorder %s129, %s130
      %p139 = scmp.eq.s32.totalorder %s35, 0
      %p140 = por %p138, %p139
      %p141 = scmp.ne.s32.totalorder %s129, %s130
      %p142 = scmp.eq.s32.totalorder %s36, 1
      %p143 = por %p141, %p142
      %p145 = scmp.ne.s32.totalorder %s130, %s144
      %p146 = scmp.eq.s32.totalorder %s36, 0
      %p147 = por %p145, %p146
      %s149 = sadd.s32 %s148, 1
      %p152 = scmp.eq.s32.totalorder %s30, 1
      %p153 = scmp.ne.s32.totalorder %s148, %s150
      %p154 = scmp.eq.s32.totalorder %s30, 0
      %p155 = por %p153, %p154
      %p156 = scmp.ne.s32.totalorder %s148, %s150
      %p157 = scmp.eq.s32.totalorder %s35, 1
      %p158 = por %p156, %p157
      %p159 = scmp.ne.s32.totalorder %s150, %s151
      %p160 = scmp.eq.s32.totalorder %s35, 0
      %p161 = por %p159, %p160
      %p162 = scmp.ne.s32.totalorder %s150, %s151
      %p163 = scmp.eq.s32.totalorder %s36, 1
      %p164 = por %p162, %p163
      %p166 = scmp.ne.s32.totalorder %s151, %s165
      %p167 = scmp.eq.s32.totalorder %s36, 0
      %p168 = por %p166, %p167
      %s170 = sadd.s32 %s169, 1
      %p173 = scmp.eq.s32.totalorder %s30, 1
      %p174 = scmp.ne.s32.totalorder %s169, %s171
      %p175 = scmp.eq.s32.totalorder %s30, 0
      %p176 = por %p174, %p175
      %p177 = scmp.ne.s32.totalorder %s169, %s171
      %p178 = scmp.eq.s32.totalorder %s35, 1
      %p179 = por %p177, %p178
      %p180 = scmp.ne.s32.totalorder %s171, %s172
      %p181 = scmp.eq.s32.totalorder %s35, 0
      %p182 = por %p180, %p181
      %p183 = scmp.ne.s32.totalorder %s171, %s172
      %p184 = scmp.eq.s32.totalorder %s36, 1
      %p185 = por %p183, %p184
      %p187 = scmp.ne.s32.totalorder %s172, %s186
      %p188 = scmp.eq.s32.totalorder %s36, 0
      %p189 = por %p187, %p188
      %s191 = sadd.s32 %s190, 1
      %p194 = scmp.eq.s32.totalorder %s30, 1
      %p195 = scmp.ne.s32.totalorder %s190, %s192
      %p196 = scmp.eq.s32.totalorder %s30, 0
      %p197 = por %p195, %p196
      %p198 = scmp.ne.s32.totalorder %s190, %s192
      %p199 = scmp.eq.s32.totalorder %s35, 1
      %p200 = por %p198, %p199
      %p201 = scmp.ne.s32.totalorder %s192, %s193
      %p202 = scmp.eq.s32.totalorder %s35, 0
      %p203 = por %p201, %p202
      %p204 = scmp.ne.s32.totalorder %s192, %s193
      %p205 = scmp.eq.s32.totalorder %s36, 1
      %p206 = por %p204, %p205
      %p208 = scmp.ne.s32.totalorder %s193, %s207
      %p209 = scmp.eq.s32.totalorder %s36, 0
      %p210 = por %p208, %p209
      %s212 = sadd.s32 %s211, 1
      %p215 = scmp.eq.s32.totalorder %s30, 1
      %p216 = scmp.ne.s32.totalorder %s211, %s213
      %p217 = scmp.eq.s32.totalorder %s30, 0
      %p218 = por %p216, %p217
      %p219 = scmp.ne.s32.totalorder %s211, %s213
      %p220 = scmp.eq.s32.totalorder %s35, 1
      %p221 = por %p219, %p220
      %p222 = scmp.ne.s32.totalorder %s213, %s214
      %p223 = scmp.eq.s32.totalorder %s35, 0
      %p224 = por %p222, %p223
      %p225 = scmp.ne.s32.totalorder %s213, %s214
      %p226 = scmp.eq.s32.totalorder %s36, 1
      %p227 = por %p225, %p226
      %p229 = scmp.ne.s32.totalorder %s214, %s228
      %p230 = scmp.eq.s32.totalorder %s36, 0
      %p231 = por %p229, %p230
      %s233 = sadd.s32 %s232, 1
      %p236 = scmp.eq.s32.totalorder %s30, 1
      %p237 = scmp.ne.s32.totalorder %s232, %s234
      %p238 = scmp.eq.s32.totalorder %s30, 0
      %p239 = por %p237, %p238
      %p240 = scmp.ne.s32.totalorder %s232, %s234
      %p241 = scmp.eq.s32.totalorder %s35, 1
      %p242 = por %p240, %p241
      %p243 = scmp.ne.s32.totalorder %s234, %s235
      %p244 = scmp.eq.s32.totalorder %s35, 0
      %p245 = por %p243, %p244
      %p246 = scmp.ne.s32.totalorder %s234, %s235
      %p247 = scmp.eq.s32.totalorder %s36, 1
      %p248 = por %p246, %p247
      %p250 = scmp.ne.s32.totalorder %s235, %s249
      %p251 = scmp.eq.s32.totalorder %s36, 0
      %p252 = por %p250, %p251
      %s254 = sadd.s32 %s253, 1
      %p257 = scmp.eq.s32.totalorder %s30, 1
      %p258 = scmp.ne.s32.totalorder %s253, %s255
      %p259 = scmp.eq.s32.totalorder %s30, 0
      %p260 = por %p258, %p259
      %p261 = scmp.ne.s32.totalorder %s253, %s255
      %p262 = scmp.eq.s32.totalorder %s35, 1
      %p263 = por %p261, %p262
      %p264 = scmp.ne.s32.totalorder %s255, %s256
      %p265 = scmp.eq.s32.totalorder %s35, 0
      %p266 = por %p264, %p265
      %p267 = scmp.ne.s32.totalorder %s255, %s256
      %p268 = scmp.eq.s32.totalorder %s36, 1
      %p269 = por %p267, %p268
      %p271 = scmp.ne.s32.totalorder %s256, %s270
      %p272 = scmp.eq.s32.totalorder %s36, 0
      %p273 = por %p271, %p272
      %s275 = sadd.s32 %s274, 1
      %p278 = scmp.eq.s32.totalorder %s30, 1
      %p279 = scmp.ne.s32.totalorder %s274, %s276
      %p280 = scmp.eq.s32.totalorder %s30, 0
      %p281 = por %p279, %p280
      %p282 = scmp.ne.s32.totalorder %s274, %s276
      %p283 = scmp.eq.s32.totalorder %s35, 1
      %p284 = por %p282, %p283
      %p285 = scmp.ne.s32.totalorder %s276, %s277
      %p286 = scmp.eq.s32.totalorder %s35, 0
      %p287 = por %p285, %p286
      %p288 = scmp.ne.s32.totalorder %s276, %s277
      %p289 = scmp.eq.s32.totalorder %s36, 1
      %p290 = por %p288, %p289
      %p292 = scmp.ne.s32.totalorder %s277, %s291
      %p293 = scmp.eq.s32.totalorder %s36, 0
      %p294 = por %p292, %p293
      %s296 = sadd.s32 %s295, 1
      %p299 = scmp.eq.s32.totalorder %s30, 1
      %p300 = scmp.ne.s32.totalorder %s295, %s297
      %p301 = scmp.eq.s32.totalorder %s30, 0
      %p302 = por %p300, %p301
      %p303 = scmp.ne.s32.totalorder %s295, %s297
      %p304 = scmp.eq.s32.totalorder %s35, 1
      %p305 = por %p303, %p304
      %p306 = scmp.ne.s32.totalorder %s297, %s298
      %p307 = scmp.eq.s32.totalorder %s35, 0
      %p308 = por %p306, %p307
      %p309 = scmp.ne.s32.totalorder %s297, %s298
      %p310 = scmp.eq.s32.totalorder %s36, 1
      %p311 = por %p309, %p310
      %p313 = scmp.ne.s32.totalorder %s298, %s312
      %p314 = scmp.eq.s32.totalorder %s36, 0
      %p315 = por %p313, %p314
      %s317 = sadd.s32 %s316, 1
      %p320 = scmp.eq.s32.totalorder %s30, 1
      %p321 = scmp.ne.s32.totalorder %s316, %s318
      %p322 = scmp.eq.s32.totalorder %s30, 0
      %p323 = por %p321, %p322
      %p324 = scmp.ne.s32.totalorder %s316, %s318
      %p325 = scmp.eq.s32.totalorder %s35, 1
      %p326 = por %p324, %p325
      %p327 = scmp.ne.s32.totalorder %s318, %s319
      %p328 = scmp.eq.s32.totalorder %s35, 0
      %p329 = por %p327, %p328
      %p330 = scmp.ne.s32.totalorder %s318, %s319
      %p331 = scmp.eq.s32.totalorder %s36, 1
      %p332 = por %p330, %p331
      %p334 = scmp.ne.s32.totalorder %s319, %s333
      %p335 = scmp.eq.s32.totalorder %s36, 0
      %p336 = por %p334, %p335
      %s337 = ssub.s32 %s30, %s37
      %p338 = scmp.eq.s32.totalorder %s337, 0
      %s340 = sadd.s32 %s339, 1
      %s341 = scalar_select %p338, %s339, %s340
      %p344 = pneg %p338
      %p345 = scmp.eq.s32.totalorder %s30, 1
      %p346 = por %p344, %p345
      %p347 = scmp.ne.s32.totalorder %s339, %s342
      %p348 = scmp.eq.s32.totalorder %s30, 0
      %p349 = por %p347, %p348
      %p350 = scmp.ne.s32.totalorder %s339, %s342
      %p351 = scmp.eq.s32.totalorder %s35, 1
      %p352 = por %p350, %p351
      %p353 = scmp.ne.s32.totalorder %s342, %s343
      %p354 = scmp.eq.s32.totalorder %s35, 0
      %p355 = por %p353, %p354
      %p356 = scmp.ne.s32.totalorder %s342, %s343
      %p357 = scmp.eq.s32.totalorder %s36, 1
      %p358 = por %p356, %p357
      %p360 = scmp.ne.s32.totalorder %s343, %s359
      %p361 = scmp.eq.s32.totalorder %s36, 0
      %p362 = por %p360, %p361
      %p363 = scmp.le.s32.totalorder 1, %s30
      %p364 = scmp.lt.s32.totalorder %s30, 3
      %p365 = pnand %p363, %p364
      %p366 = pneg %p365
      // Predicated region
      $region9: #{tpu_custom_call.1} parent=5 // pred_check
        _
      $region10: #{tpu_custom_call.1} parent=5 // pred_check_branch
        %368 = sbr.rel (%p365) target = $region12
      $region11: #{tpu_custom_call.1} parent=5 // pred_region
        %s369 = ssub.s32 %s30, 1
        // Predicated region
        $region13: #{tpu_custom_call.1} parent=11 // pred_check
          %p370 = pneg %p77
        $region14: #{tpu_custom_call.1} parent=11 // pred_check_branch
          %372 = sbr.rel (%p370) target = $region16
        $region15: #{tpu_custom_call.1} parent=11 // pred_region
          %s374 = ssub.s32 512, 512
          %375 = vsyncadd [#allocation6], %s374
          %s376 = sshll.u32 [#allocation5], 4
          %s377 = int_to_ptr.vmem [resolvable:$true] %s376
          %382 = dma.hbm_to_vmem [thread:$0]  %s1, 512, %s377, [#allocation6], 128, 128, 8
        $region16: #{tpu_custom_call.1} parent=11 // pred_fallthru
          _
        // Predicated region
        $region17: #{tpu_custom_call.1} parent=11 // pred_check
          %p383 = pneg %p98
        $region18: #{tpu_custom_call.1} parent=11 // pred_check_branch
          %385 = sbr.rel (%p383) target = $region20
        $region19: #{tpu_custom_call.1} parent=11 // pred_region
          %s387 = ssub.s32 512, 512
          %388 = vsyncadd [#allocation6], %s387
          %s389 = sshll.u32 [#allocation7], 4
          %s390 = int_to_ptr.vmem [resolvable:$true] %s389
          %395 = dma.hbm_to_vmem [thread:$0]  %s2, 512, %s390, [#allocation6], 128, 128, 8
        $region20: #{tpu_custom_call.1} parent=11 // pred_fallthru
          _
        // Predicated region
        $region21: #{tpu_custom_call.1} parent=11 // pred_check
          %p396 = pneg %p119
        $region22: #{tpu_custom_call.1} parent=11 // pred_check_branch
          %398 = sbr.rel (%p396) target = $region24
        $region23: #{tpu_custom_call.1} parent=11 // pred_region
          %s400 = ssub.s32 512, 512
          %401 = vsyncadd [#allocation9], %s400
          %s402 = sshll.u32 [#allocation8], 4
          %s403 = int_to_ptr.vmem [resolvable:$true] %s402
          %408 = dma.hbm_to_vmem [thread:$0]  %s3, 512, %s403, [#allocation9], 128, 128, 8
        $region24: #{tpu_custom_call.1} parent=11 // pred_fallthru
          _
        // Predicated region
        $region25: #{tpu_custom_call.1} parent=11 // pred_check
          %p409 = pneg %p140
        $region26: #{tpu_custom_call.1} parent=11 // pred_check_branch
          %411 = sbr.rel (%p409) target = $region28
        $region27: #{tpu_custom_call.1} parent=11 // pred_region
          %s413 = ssub.s32 512, 512
          %414 = vsyncadd [#allocation9], %s413
          %s415 = sshll.u32 [#allocation10], 4
          %s416 = int_to_ptr.vmem [resolvable:$true] %s415
          %421 = dma.hbm_to_vmem [thread:$0]  %s4, 512, %s416, [#allocation9], 128, 128, 8
        $region28: #{tpu_custom_call.1} parent=11 // pred_fallthru
          _
        // Predicated region
        $region29: #{tpu_custom_call.1} parent=11 // pred_check
          %p422 = pneg %p161
        $region30: #{tpu_custom_call.1} parent=11 // pred_check_branch
          %424 = sbr.rel (%p422) target = $region32
        $region31: #{tpu_custom_call.1} parent=11 // pred_region
          %s426 = ssub.s32 512, 512
          %427 = vsyncadd [#allocation12], %s426
          %s428 = sshll.u32 [#allocation11], 4
          %s429 = int_to_ptr.vmem [resolvable:$true] %s428
          %434 = dma.hbm_to_vmem [thread:$0]  %s5, 512, %s429, [#allocation12], 128, 128, 8
        $region32: #{tpu_custom_call.1} parent=11 // pred_fallthru
          _
        // Predicated region
        $region33: #{tpu_custom_call.1} parent=11 // pred_check
          %p435 = pneg %p182
        $region34: #{tpu_custom_call.1} parent=11 // pred_check_branch
          %437 = sbr.rel (%p435) target = $region36
        $region35: #{tpu_custom_call.1} parent=11 // pred_region
          %s439 = ssub.s32 32768, 32768
          %440 = vsyncadd [#allocation12], %s439
          %s441 = sshll.u32 [#allocation13], 4
          %s442 = int_to_ptr.vmem [resolvable:$true] %s441
          %447 = dma.hbm_to_vmem [thread:$0]  %s6, 32768, %s442, [#allocation12], 1024, 1024, 64
        $region36: #{tpu_custom_call.1} parent=11 // pred_fallthru
          _
        // Predicated region
        $region37: #{tpu_custom_call.1} parent=11 // pred_check
          %p448 = pneg %p203
        $region38: #{tpu_custom_call.1} parent=11 // pred_check_branch
          %450 = sbr.rel (%p448) target = $region40
        $region39: #{tpu_custom_call.1} parent=11 // pred_region
          _
        $region40: #{tpu_custom_call.1} parent=11 // pred_fallthru
          _
        // Predicated region
        $region41: #{tpu_custom_call.1} parent=11 // pred_check
          %p451 = pneg %p224
        $region42: #{tpu_custom_call.1} parent=11 // pred_check_branch
          %453 = sbr.rel (%p451) target = $region44
        $region43: #{tpu_custom_call.1} parent=11 // pred_region
          %s455 = ssub.s32 32768, 32768
          %456 = vsyncadd [#allocation15], %s455
          %s457 = sshll.u32 [#allocation14], 4
          %s458 = int_to_ptr.vmem [resolvable:$true] %s457
          %463 = dma.hbm_to_vmem [thread:$0]  %s8, 32768, %s458, [#allocation15], 128, 128, 8
        $region44: #{tpu_custom_call.1} parent=11 // pred_fallthru
          _
        // Predicated region
        $region45: #{tpu_custom_call.1} parent=11 // pred_check
          %p464 = pneg %p245
        $region46: #{tpu_custom_call.1} parent=11 // pred_check_branch
          %466 = sbr.rel (%p464) target = $region48
        $region47: #{tpu_custom_call.1} parent=11 // pred_region
          _
        $region48: #{tpu_custom_call.1} parent=11 // pred_fallthru
          _
        // Predicated region
        $region49: #{tpu_custom_call.1} parent=11 // pred_check
          %p467 = pneg %p266
        $region50: #{tpu_custom_call.1} parent=11 // pred_check_branch
          %469 = sbr.rel (%p467) target = $region52
        $region51: #{tpu_custom_call.1} parent=11 // pred_region
          _
        $region52: #{tpu_custom_call.1} parent=11 // pred_fallthru
          _
        // Predicated region
        $region53: #{tpu_custom_call.1} parent=11 // pred_check
          %p470 = pneg %p287
        $region54: #{tpu_custom_call.1} parent=11 // pred_check_branch
          %472 = sbr.rel (%p470) target = $region56
        $region55: #{tpu_custom_call.1} parent=11 // pred_region
          _
        $region56: #{tpu_custom_call.1} parent=11 // pred_fallthru
          _
        // Predicated region
        $region57: #{tpu_custom_call.1} parent=11 // pred_check
          %p473 = pneg %p308
        $region58: #{tpu_custom_call.1} parent=11 // pred_check_branch
          %475 = sbr.rel (%p473) target = $region60
        $region59: #{tpu_custom_call.1} parent=11 // pred_region
          _
        $region60: #{tpu_custom_call.1} parent=11 // pred_fallthru
          _
        // Predicated region
        $region61: #{tpu_custom_call.1} parent=11 // pred_check
          %p476 = pneg %p329
        $region62: #{tpu_custom_call.1} parent=11 // pred_check_branch
          %478 = sbr.rel (%p476) target = $region64
        $region63: #{tpu_custom_call.1} parent=11 // pred_region
          _
        $region64: #{tpu_custom_call.1} parent=11 // pred_fallthru
          _
      $region12: #{tpu_custom_call.1} parent=5 // pred_fallthru
        _
      %p479 = scmp.lt.s32.totalorder %s30, 2
      // Predicated region
      $region65: #{tpu_custom_call.1} parent=5 // pred_check
        %p480 = pneg %p479
      $region66: #{tpu_custom_call.1} parent=5 // pred_check_branch
        %482 = sbr.rel (%p480) target = $region68
      $region67: #{tpu_custom_call.1} parent=5 // pred_region
        // Predicated region
        $region69: #{tpu_custom_call.1} parent=67 // pred_check
          %p483 = pneg %p50
        $region70: #{tpu_custom_call.1} parent=67 // pred_check_branch
          %485 = sbr.rel (%p483) target = $region72
        $region71: #{tpu_custom_call.1} parent=67 // pred_region
          %s486 = sand.u32 %s40, 1
          %s487 = scalar_lea.sflag [#allocation3], %s486
          %s488 = sand.u32 %s40, 1
          %s489 = smul.addr %s488, 16
          %s490 = scalar_lea.vmem [#allocation2], %s489
          %s492 = ssub.s32 256, 256
          %493 = vsyncadd %s487, %s492
          %s494 = smul.addr %s30, 128
          %s495 = scalar_lea.hbm %s0, %s494
          %s496 = sshll.u32 %s490, 4
          %s497 = int_to_ptr.vmem [resolvable:$true] %s496
          %502 = dma.hbm_to_vmem [thread:$0]  %s495, 256, %s497, %s487, 256, 128, 8
        $region72: #{tpu_custom_call.1} parent=67 // pred_fallthru
          _
      $region68: #{tpu_custom_call.1} parent=5 // pred_fallthru
        _
      %p503 = scmp.le.s32.totalorder 1, %s30
      %p504 = scmp.lt.s32.totalorder %s30, 3
      %p505 = pnand %p503, %p504
      %p506 = pneg %p505
      // Predicated region
      $region73: #{tpu_custom_call.1} parent=5 // pred_check
        _
      $region74: #{tpu_custom_call.1} parent=5 // pred_check_branch
        %508 = sbr.rel (%p505) target = $region76
      $region75: #{tpu_custom_call.1} parent=5 // pred_region
        %s509 = ssub.s32 %s30, 1
        %s510 = sand.u32 %s43, 1
        %s511 = scalar_lea.sflag [#allocation3], %s510
        %s512 = sand.u32 %s43, 1
        %s513 = smul.addr %s512, 16
        %s514 = scalar_lea.vmem [#allocation2], %s513
        // Predicated region
        $region77: #{tpu_custom_call.1} parent=75 // pred_check
          %p515 = pneg %p56
        $region78: #{tpu_custom_call.1} parent=75 // pred_check_branch
          %517 = sbr.rel (%p515) target = $region80
        $region79: #{tpu_custom_call.1} parent=75 // pred_region
          %518 = dma.done %s511, 256
        $region80: #{tpu_custom_call.1} parent=75 // pred_fallthru
          _
        // Predicated region
        $region81: #{tpu_custom_call.1} parent=75 // pred_check
          %p519 = pneg %p77
        $region82: #{tpu_custom_call.1} parent=75 // pred_check_branch
          %521 = sbr.rel (%p519) target = $region84
        $region83: #{tpu_custom_call.1} parent=75 // pred_region
          %522 = dma.done [#allocation6], 512
        $region84: #{tpu_custom_call.1} parent=75 // pred_fallthru
          _
        // Predicated region
        $region85: #{tpu_custom_call.1} parent=75 // pred_check
          %p523 = pneg %p98
        $region86: #{tpu_custom_call.1} parent=75 // pred_check_branch
          %525 = sbr.rel (%p523) target = $region88
        $region87: #{tpu_custom_call.1} parent=75 // pred_region
          %526 = dma.done [#allocation6], 512
        $region88: #{tpu_custom_call.1} parent=75 // pred_fallthru
          _
        // Predicated region
        $region89: #{tpu_custom_call.1} parent=75 // pred_check
          %p527 = pneg %p119
        $region90: #{tpu_custom_call.1} parent=75 // pred_check_branch
          %529 = sbr.rel (%p527) target = $region92
        $region91: #{tpu_custom_call.1} parent=75 // pred_region
          %530 = dma.done [#allocation9], 512
        $region92: #{tpu_custom_call.1} parent=75 // pred_fallthru
          _
        // Predicated region
        $region93: #{tpu_custom_call.1} parent=75 // pred_check
          %p531 = pneg %p140
        $region94: #{tpu_custom_call.1} parent=75 // pred_check_branch
          %533 = sbr.rel (%p531) target = $region96
        $region95: #{tpu_custom_call.1} parent=75 // pred_region
          %534 = dma.done [#allocation9], 512
        $region96: #{tpu_custom_call.1} parent=75 // pred_fallthru
          _
        // Predicated region
        $region97: #{tpu_custom_call.1} parent=75 // pred_check
          %p535 = pneg %p161
        $region98: #{tpu_custom_call.1} parent=75 // pred_check_branch
          %537 = sbr.rel (%p535) target = $region100
        $region99: #{tpu_custom_call.1} parent=75 // pred_region
          %538 = dma.done [#allocation12], 512
        $region100: #{tpu_custom_call.1} parent=75 // pred_fallthru
          _
        // Predicated region
        $region101: #{tpu_custom_call.1} parent=75 // pred_check
          %p539 = pneg %p182
        $region102: #{tpu_custom_call.1} parent=75 // pred_check_branch
          %541 = sbr.rel (%p539) target = $region104
        $region103: #{tpu_custom_call.1} parent=75 // pred_region
          %542 = dma.done [#allocation12], 32768
        $region104: #{tpu_custom_call.1} parent=75 // pred_fallthru
          _
        // Predicated region
        $region105: #{tpu_custom_call.1} parent=75 // pred_check
          %p543 = pneg %p224
        $region106: #{tpu_custom_call.1} parent=75 // pred_check_branch
          %545 = sbr.rel (%p543) target = $region108
        $region107: #{tpu_custom_call.1} parent=75 // pred_region
          %546 = dma.done [#allocation15], 32768
        $region108: #{tpu_custom_call.1} parent=75 // pred_fallthru
          _
        %s547 = sand.u32 %s43, 1
        %s548 = scalar_lea.sflag [#allocation3], %s547
        %s549 = sand.u32 %s43, 1
        %s550 = smul.addr %s549, 16
        %s551 = scalar_lea.vmem [#allocation2], %s550
        %p552 = pneg %p56
        %p553 = pneg %p53
        %p554 = pneg %p77
        %p555 = pneg %p74
        %p556 = pneg %p98
        %p557 = pneg %p95
        %p558 = pneg %p119
        %p559 = pneg %p116
        %p560 = pneg %p140
        %p561 = pneg %p137
        %p562 = pneg %p161
        %p563 = pneg %p158
        %p564 = pneg %p182
        %p565 = pneg %p179
        %p566 = pneg %p203
        %p567 = pneg %p200
        %p568 = pneg %p224
        %p569 = pneg %p221
        %p570 = pneg %p245
        %p571 = pneg %p242
        %p572 = pneg %p266
        %p573 = pneg %p263
        %p574 = pneg %p287
        %p575 = pneg %p284
        %p576 = pneg %p308
        %p577 = pneg %p305
        %p578 = pneg %p329
        %p579 = pneg %p326
        %p580 = pneg %p355
        %p581 = pneg %p352
        %s582 = sand.u32 %s342, 1
        %s583 = scalar_lea.sflag [#allocation4], %s582
        %s584 = sand.u32 %s342, 1
        %s585 = smul.addr %s584, 8
        %s586 = scalar_lea.vmem [#allocation16], %s585
        %v587 = vld [vmem:[%s514] sm:$0xff]
        %v588 = vld [vmem:[%s514 + $0x8] sm:$0xff]
        %v589 = vld [vmem:[%s12] sm:$0x1]
        %v590 = vld [vmem:[%s13] sm:$0x1]
        %v591 = vadd.f32 %v587, %v588
        %v592 = vrot.slane %v591, 4
        %v593 = vadd.f32 %v591, %v592
        %v594 = vrot.slane %v593, 2
        %v595 = vadd.f32 %v593, %v594
        %v596 = vrot.slane %v595, 1
        %v597 = vadd.f32 %v595, %v596
        %v598 = vrcp.pop 16.0
        %v599 = vmul.f32 %v597, %v598
        %v600 = vsub.f32 %v587, %v599
        %v601 = vsub.f32 %v588, %v599
        %v602 = vmul.f32 %v600, %v600
        %v603 = vmul.f32 %v601, %v601
        %v604 = vadd.f32 %v602, %v603
        %v605 = vrot.slane %v604, 4
        %v606 = vadd.f32 %v604, %v605
        %v607 = vrot.slane %v606, 2
        %v608 = vadd.f32 %v606, %v607
        %v609 = vrot.slane %v608, 1
        %v610 = vadd.f32 %v608, %v609
        %v611 = vmul.f32 %v610, %v598
        %v612 = vadd.f32 %v611, 1e-05
        %v613 = vrsqrt.pop %v612
        %v614 = vmul.f32 %v612, %v613
        %vm615 = vcmp.eq.f32.partialorder %v612, inf
        %v616 = vsel %vm615, %v612, %v614
        %vm617 = vcmp.eq.f32.partialorder %v612, 0.0
        %v618 = vand.u32 %v612, 2147483648
        %v619 = vsel %vm617, %v618, %v616
        %v620 = vrcp.pop %v619
        %v621 = vmul.f32 1.0, %v620
        %v622 = vmul.f32 %v600, %v621
        %v623 = vmul.f32 %v601, %v621
        %v625 = vlaneseq
        %v626 = vshrl.u32 %v625, 7
        %v627 = vsub.s32 0, %v626
        %v628 = vrot.slane %v589, %v627
        %v630 = vmul.f32 %v622, %v628
        %v631 = vmul.f32 %v623, %v628
        %v633 = vlaneseq
        %v634 = vshrl.u32 %v633, 7
        %v635 = vsub.s32 0, %v634
        %v636 = vrot.slane %v590, %v635
        %v638 = vadd.f32 %v630, %v636
        %v639 = vadd.f32 %v631, %v636
        %v640 = vld [vmem:[#allocation8] sm:$0xff]
        %v641 = vld [vmem:[#allocation8 + $0x8] sm:$0xff]
        %v642 = vld [vmem:[#allocation5] sm:$0xff]
        %v643 = vld [vmem:[#allocation5 + $0x8] sm:$0xff]
        %v644 = vmul.f32 %v638, %v642
        %v645 = vmul.f32 %v639, %v643
        %v646 = vld [vmem:[#allocation7] sm:$0xff]
        %v647 = vld [vmem:[#allocation7 + $0x8] sm:$0xff]
        %vm648 = vcmask 130048
        %v650 = vsel %vm648, %v640, 0
        %v653 = vsel %vm648, %v641, 0
        %655 = vmatprep.subr.mxu0 0.0
        %656 = vmatpush1.msra.mxu0 %v644
        %657 = vmatprep.subr.mxu0 0.0
        %658 = vmatpush1.msra.mxu0 %v645
        %659 = vmatprep.subr.mxu0 0.0
        %660 = vmatpush1.msra.mxu0 0.0
        %661 = vmatprep.subr.mxu0 0.0
        %662 = vmatpush1.msra.mxu0 0.0
        %663 = vmatprep.subr.mxu0 0.0
        %664 = vmatpush1.msra.mxu0 0.0
        %665 = vmatprep.subr.mxu0 0.0
        %666 = vmatpush1.msra.mxu0 0.0
        %667 = vmatprep.subr.mxu0 0.0
        %668 = vmatpush1.msra.mxu0 0.0
        %669 = vmatprep.subr.mxu0 0.0
        %670 = vmatpush1.msra.mxu0 0.0
        %671 = vmatprep.subr.mxu0 0.0
        %672 = vmatpush1.msra.mxu0 0.0
        %673 = vmatprep.subr.mxu0 0.0
        %674 = vmatpush1.msra.mxu0 0.0
        %675 = vmatprep.subr.mxu0 0.0
        %676 = vmatpush1.msra.mxu0 0.0
        %677 = vmatprep.subr.mxu0 0.0
        %678 = vmatpush1.msra.mxu0 0.0
        %679 = vmatprep.subr.mxu0 0.0
        %680 = vmatpush1.msra.mxu0 0.0
        %681 = vmatprep.subr.mxu0 0.0
        %682 = vmatpush1.msra.mxu0 0.0
        %683 = vmatprep.subr.mxu0 0.0
        %684 = vmatpush1.msra.mxu0 0.0
        %685 = vmatprep.subr.mxu0 0.0
        %686 = vmatpush1.msra.mxu0 0.0
        %687 = vmatprep.subr.mxu0 0.0
        %688 = vmatpush1.msra.mxu0 0.0
        %689 = vmatprep.subr.mxu0 0.0
        %690 = vmatpush1.msra.mxu0 0.0
        %691 = vmatprep.subr.mxu0 0.0
        %692 = vmatpush1.msra.mxu0 0.0
        %693 = vmatprep.subr.mxu0 0.0
        %694 = vmatpush1.msra.mxu0 0.0
        %695 = vmatprep.subr.mxu0 0.0
        %696 = vmatpush1.msra.mxu0 0.0
        %697 = vmatprep.subr.mxu0 0.0
        %698 = vmatpush1.msra.mxu0 0.0
        %699 = vmatprep.subr.mxu0 0.0
        %700 = vmatpush1.msra.mxu0 0.0
        %701 = vmatprep.subr.mxu0 0.0
        %702 = vmatpush1.msra.mxu0 0.0
        %703 = vmatprep.subr.mxu0 0.0
        %704 = vmatpush1.msra.mxu0 0.0
        %705 = vmatprep.subr.mxu0 0.0
        %706 = vmatpush1.msra.mxu0 0.0
        %707 = vmatprep.subr.mxu0 0.0
        %708 = vmatpush1.msra.mxu0 0.0
        %709 = vmatprep.subr.mxu0 0.0
        %710 = vmatpush1.msra.mxu0 0.0
        %711 = vmatprep.subr.mxu0 0.0
        %712 = vmatpush1.msra.mxu0 0.0
        %713 = vmatprep.subr.mxu0 0.0
        %714 = vmatpush1.msra.mxu0 0.0
        %715 = vmatprep.subr.mxu0 0.0
        %716 = vmatpush1.msra.mxu0 0.0
        %717 = vmatprep.subr.mxu0 0.0
        %718 = vmatpush1.msra.mxu0 0.0
        %719 = vmatprep.mubr.f32.mxu0 0.0
        %720 = vmatmul.mubr.f32.gmra.mrb[0].mxu0 %v650
        %v721 = vpop.f32.mrb[0].mxu0
        %v722 = vadd.f32 %v646, %v721
        %v723 = vpop.f32.mrb[0].mxu0
        %724 = vmatprep.mubr.f32.mxu0 0.0
        %725 = vmatmul.mubr.f32.gmra.mrb[0].mxu0 %v653
        %v726 = vpop.f32.mrb[0].mxu0
        %v727 = vadd.f32 %v647, %v726
        %v728 = vpop.f32.mrb[0].mxu0
        %729 = vdwg.mxu0
        %v730 = vmax.f32 %v722, 0.0
        %v731 = vmax.f32 %v727, 0.0
        %v732 = vadd.f32 %v730, %v638
        %v733 = vadd.f32 %v731, %v639
        %v734 = vld [vmem:[#allocation10] sm:$0xff]
        %v735 = vld [vmem:[#allocation10 + $0x8] sm:$0xff]
        %v736 = vmul.f32 %v732, %v734
        %v737 = vmul.f32 %v733, %v735
        %v738 = vld [vmem:[#allocation11] sm:$0xff]
        %v739 = vld [vmem:[#allocation11 + $0x8] sm:$0xff]
        %v740 = vadd.f32 %v736, %v738
        %v741 = vadd.f32 %v737, %v739
        %v742 = vld [vmem:[#allocation13] sm:$0xff]
        %v743 = vld [vmem:[#allocation13 + $0x8] sm:$0xff]
        %v744 = vld [vmem:[#allocation13 + $0x10] sm:$0xff]
        %v745 = vld [vmem:[#allocation13 + $0x18] sm:$0xff]
        %v746 = vld [vmem:[#allocation13 + $0x20] sm:$0xff]
        %v747 = vld [vmem:[#allocation13 + $0x28] sm:$0xff]
        %v748 = vld [vmem:[#allocation13 + $0x30] sm:$0xff]
        %v749 = vld [vmem:[#allocation13 + $0x38] sm:$0xff]
        %v750 = vld [vmem:[#allocation13 + $0x40] sm:$0xff]
        %v751 = vld [vmem:[#allocation13 + $0x48] sm:$0xff]
        %v752 = vld [vmem:[#allocation13 + $0x50] sm:$0xff]
        %v753 = vld [vmem:[#allocation13 + $0x58] sm:$0xff]
        %v754 = vld [vmem:[#allocation13 + $0x60] sm:$0xff]
        %v755 = vld [vmem:[#allocation13 + $0x68] sm:$0xff]
        %v756 = vld [vmem:[#allocation13 + $0x70] sm:$0xff]
        %v757 = vld [vmem:[#allocation13 + $0x78] sm:$0xff]
        %v758 = vld [vmem:[#allocation13 + $0x80] sm:$0xff]
        %v759 = vld [vmem:[#allocation13 + $0x88] sm:$0xff]
        %v760 = vld [vmem:[#allocation13 + $0x90] sm:$0xff]
        %v761 = vld [vmem:[#allocation13 + $0x98] sm:$0xff]
        %v762 = vld [vmem:[#allocation13 + $0xa0] sm:$0xff]
        %v763 = vld [vmem:[#allocation13 + $0xa8] sm:$0xff]
        %v764 = vld [vmem:[#allocation13 + $0xb0] sm:$0xff]
        %v765 = vld [vmem:[#allocation13 + $0xb8] sm:$0xff]
        %v766 = vld [vmem:[#allocation13 + $0xc0] sm:$0xff]
        %v767 = vld [vmem:[#allocation13 + $0xc8] sm:$0xff]
        %v768 = vld [vmem:[#allocation13 + $0xd0] sm:$0xff]
        %v769 = vld [vmem:[#allocation13 + $0xd8] sm:$0xff]
        %v770 = vld [vmem:[#allocation13 + $0xe0] sm:$0xff]
        %v771 = vld [vmem:[#allocation13 + $0xe8] sm:$0xff]
        %v772 = vld [vmem:[#allocation13 + $0xf0] sm:$0xff]
        %v773 = vld [vmem:[#allocation13 + $0xf8] sm:$0xff]
        %v774 = vld [vmem:[#allocation13 + $0x100] sm:$0xff]
        %v775 = vld [vmem:[#allocation13 + $0x108] sm:$0xff]
        %v776 = vld [vmem:[#allocation13 + $0x110] sm:$0xff]
        %v777 = vld [vmem:[#allocation13 + $0x118] sm:$0xff]
        %v778 = vld [vmem:[#allocation13 + $0x120] sm:$0xff]
        %v779 = vld [vmem:[#allocation13 + $0x128] sm:$0xff]
        %v780 = vld [vmem:[#allocation13 + $0x130] sm:$0xff]
        %v781 = vld [vmem:[#allocation13 + $0x138] sm:$0xff]
        %v782 = vld [vmem:[#allocation13 + $0x140] sm:$0xff]
        %v783 = vld [vmem:[#allocation13 + $0x148] sm:$0xff]
        %v784 = vld [vmem:[#allocation13 + $0x150] sm:$0xff]
        %v785 = vld [vmem:[#allocation13 + $0x158] sm:$0xff]
        %v786 = vld [vmem:[#allocation13 + $0x160] sm:$0xff]
        %v787 = vld [vmem:[#allocation13 + $0x168] sm:$0xff]
        %v788 = vld [vmem:[#allocation13 + $0x170] sm:$0xff]
        %v789 = vld [vmem:[#allocation13 + $0x178] sm:$0xff]
        %v790 = vld [vmem:[#allocation13 + $0x180] sm:$0xff]
        %v791 = vld [vmem:[#allocation13 + $0x188] sm:$0xff]
        %v792 = vld [vmem:[#allocation13 + $0x190] sm:$0xff]
        %v793 = vld [vmem:[#allocation13 + $0x198] sm:$0xff]
        %v794 = vld [vmem:[#allocation13 + $0x1a0] sm:$0xff]
        %v795 = vld [vmem:[#allocation13 + $0x1a8] sm:$0xff]
        %v796 = vld [vmem:[#allocation13 + $0x1b0] sm:$0xff]
        %v797 = vld [vmem:[#allocation13 + $0x1b8] sm:$0xff]
        %v798 = vld [vmem:[#allocation13 + $0x1c0] sm:$0xff]
        %v799 = vld [vmem:[#allocation13 + $0x1c8] sm:$0xff]
        %v800 = vld [vmem:[#allocation13 + $0x1d0] sm:$0xff]
        %v801 = vld [vmem:[#allocation13 + $0x1d8] sm:$0xff]
        %v802 = vld [vmem:[#allocation13 + $0x1e0] sm:$0xff]
        %v803 = vld [vmem:[#allocation13 + $0x1e8] sm:$0xff]
        %v804 = vld [vmem:[#allocation13 + $0x1f0] sm:$0xff]
        %v805 = vld [vmem:[#allocation13 + $0x1f8] sm:$0xff]
        %v806 = vld [vmem:[#allocation13 + $0x200] sm:$0xff]
        %v807 = vld [vmem:[#allocation13 + $0x208] sm:$0xff]
        %v808 = vld [vmem:[#allocation13 + $0x210] sm:$0xff]
        %v809 = vld [vmem:[#allocation13 + $0x218] sm:$0xff]
        %v810 = vld [vmem:[#allocation13 + $0x220] sm:$0xff]
        %v811 = vld [vmem:[#allocation13 + $0x228] sm:$0xff]
        %v812 = vld [vmem:[#allocation13 + $0x230] sm:$0xff]
        %v813 = vld [vmem:[#allocation13 + $0x238] sm:$0xff]
        %v814 = vld [vmem:[#allocation13 + $0x240] sm:$0xff]
        %v815 = vld [vmem:[#allocation13 + $0x248] sm:$0xff]
        %v816 = vld [vmem:[#allocation13 + $0x250] sm:$0xff]
        %v817 = vld [vmem:[#allocation13 + $0x258] sm:$0xff]
        %v818 = vld [vmem:[#allocation13 + $0x260] sm:$0xff]
        %v819 = vld [vmem:[#allocation13 + $0x268] sm:$0xff]
        %v820 = vld [vmem:[#allocation13 + $0x270] sm:$0xff]
        %v821 = vld [vmem:[#allocation13 + $0x278] sm:$0xff]
        %v822 = vld [vmem:[#allocation13 + $0x280] sm:$0xff]
        %v823 = vld [vmem:[#allocation13 + $0x288] sm:$0xff]
        %v824 = vld [vmem:[#allocation13 + $0x290] sm:$0xff]
        %v825 = vld [vmem:[#allocation13 + $0x298] sm:$0xff]
        %v826 = vld [vmem:[#allocation13 + $0x2a0] sm:$0xff]
        %v827 = vld [vmem:[#allocation13 + $0x2a8] sm:$0xff]
        %v828 = vld [vmem:[#allocation13 + $0x2b0] sm:$0xff]
        %v829 = vld [vmem:[#allocation13 + $0x2b8] sm:$0xff]
        %v830 = vld [vmem:[#allocation13 + $0x2c0] sm:$0xff]
        %v831 = vld [vmem:[#allocation13 + $0x2c8] sm:$0xff]
        %v832 = vld [vmem:[#allocation13 + $0x2d0] sm:$0xff]
        %v833 = vld [vmem:[#allocation13 + $0x2d8] sm:$0xff]
        %v834 = vld [vmem:[#allocation13 + $0x2e0] sm:$0xff]
        %v835 = vld [vmem:[#allocation13 + $0x2e8] sm:$0xff]
        %v836 = vld [vmem:[#allocation13 + $0x2f0] sm:$0xff]
        %v837 = vld [vmem:[#allocation13 + $0x2f8] sm:$0xff]
        %v838 = vld [vmem:[#allocation13 + $0x300] sm:$0xff]
        %v839 = vld [vmem:[#allocation13 + $0x308] sm:$0xff]
        %v840 = vld [vmem:[#allocation13 + $0x310] sm:$0xff]
        %v841 = vld [vmem:[#allocation13 + $0x318] sm:$0xff]
        %v842 = vld [vmem:[#allocation13 + $0x320] sm:$0xff]
        %v843 = vld [vmem:[#allocation13 + $0x328] sm:$0xff]
        %v844 = vld [vmem:[#allocation13 + $0x330] sm:$0xff]
        %v845 = vld [vmem:[#allocation13 + $0x338] sm:$0xff]
        %v846 = vld [vmem:[#allocation13 + $0x340] sm:$0xff]
        %v847 = vld [vmem:[#allocation13 + $0x348] sm:$0xff]
        %v848 = vld [vmem:[#allocation13 + $0x350] sm:$0xff]
        %v849 = vld [vmem:[#allocation13 + $0x358] sm:$0xff]
        %v850 = vld [vmem:[#allocation13 + $0x360] sm:$0xff]
        %v851 = vld [vmem:[#allocation13 + $0x368] sm:$0xff]
        %v852 = vld [vmem:[#allocation13 + $0x370] sm:$0xff]
        %v853 = vld [vmem:[#allocation13 + $0x378] sm:$0xff]
        %v854 = vld [vmem:[#allocation13 + $0x380] sm:$0xff]
        %v855 = vld [vmem:[#allocation13 + $0x388] sm:$0xff]
        %v856 = vld [vmem:[#allocation13 + $0x390] sm:$0xff]
        %v857 = vld [vmem:[#allocation13 + $0x398] sm:$0xff]
        %v858 = vld [vmem:[#allocation13 + $0x3a0] sm:$0xff]
        %v859 = vld [vmem:[#allocation13 + $0x3a8] sm:$0xff]
        %v860 = vld [vmem:[#allocation13 + $0x3b0] sm:$0xff]
        %v861 = vld [vmem:[#allocation13 + $0x3b8] sm:$0xff]
        %v862 = vld [vmem:[#allocation13 + $0x3c0] sm:$0xff]
        %v863 = vld [vmem:[#allocation13 + $0x3c8] sm:$0xff]
        %v864 = vld [vmem:[#allocation13 + $0x3d0] sm:$0xff]
        %v865 = vld [vmem:[#allocation13 + $0x3d8] sm:$0xff]
        %v866 = vld [vmem:[#allocation13 + $0x3e0] sm:$0xff]
        %v867 = vld [vmem:[#allocation13 + $0x3e8] sm:$0xff]
        %v868 = vld [vmem:[#allocation13 + $0x3f0] sm:$0xff]
        %v869 = vld [vmem:[#allocation13 + $0x3f8] sm:$0xff]
        %v870 = vld [vmem:[%s7] sm:$0xff]
        %v872 = vlaneseq
        %v873 = vshrl.u32 %v872, 7
        %v874 = vsub.s32 0, %v873
        %v875 = vrot.slane %v870, %v874
        %v876 = vlaneseq
        %v877 = vshrl.u32 %v876, 7
        %v878 = vsub.s32 1, %v877
        %v879 = vrot.slane %v870, %v878
        %v880 = vlaneseq
        %v881 = vshrl.u32 %v880, 7
        %v882 = vsub.s32 2, %v881
        %v883 = vrot.slane %v870, %v882
        %v884 = vlaneseq
        %v885 = vshrl.u32 %v884, 7
        %v886 = vsub.s32 3, %v885
        %v887 = vrot.slane %v870, %v886
        %v888 = vlaneseq
        %v889 = vshrl.u32 %v888, 7
        %v890 = vsub.s32 4, %v889
        %v891 = vrot.slane %v870, %v890
        %v892 = vlaneseq
        %v893 = vshrl.u32 %v892, 7
        %v894 = vsub.s32 5, %v893
        %v895 = vrot.slane %v870, %v894
        %v896 = vlaneseq
        %v897 = vshrl.u32 %v896, 7
        %v898 = vsub.s32 6, %v897
        %v899 = vrot.slane %v870, %v898
        %v900 = vlaneseq
        %v901 = vshrl.u32 %v900, 7
        %v902 = vsub.s32 7, %v901
        %v903 = vrot.slane %v870, %v902
        %912 = vmatprep.subr.mxu0 %v743
        %913 = vmatpush1.msra.mxu0 %v742
        %914 = vmatprep.subr.mxu0 %v751
        %915 = vmatpush1.msra.mxu0 %v750
        %916 = vmatprep.subr.mxu0 %v759
        %917 = vmatpush1.msra.mxu0 %v758
        %918 = vmatprep.subr.mxu0 %v767
        %919 = vmatpush1.msra.mxu0 %v766
        %920 = vmatprep.subr.mxu0 %v775
        %921 = vmatpush1.msra.mxu0 %v774
        %922 = vmatprep.subr.mxu0 %v783
        %923 = vmatpush1.msra.mxu0 %v782
        %924 = vmatprep.subr.mxu0 %v791
        %925 = vmatpush1.msra.mxu0 %v790
        %926 = vmatprep.subr.mxu0 %v799
        %927 = vmatpush1.msra.mxu0 %v798
        %928 = vmatprep.subr.mxu0 %v807
        %929 = vmatpush1.msra.mxu0 %v806
        %930 = vmatprep.subr.mxu0 %v815
        %931 = vmatpush1.msra.mxu0 %v814
        %932 = vmatprep.subr.mxu0 %v823
        %933 = vmatpush1.msra.mxu0 %v822
        %934 = vmatprep.subr.mxu0 %v831
        %935 = vmatpush1.msra.mxu0 %v830
        %936 = vmatprep.subr.mxu0 %v839
        %937 = vmatpush1.msra.mxu0 %v838
        %938 = vmatprep.subr.mxu0 %v847
        %939 = vmatpush1.msra.mxu0 %v846
        %940 = vmatprep.subr.mxu0 %v855
        %941 = vmatpush1.msra.mxu0 %v854
        %942 = vmatprep.subr.mxu0 %v863
        %943 = vmatpush1.msra.mxu0 %v862
        %944 = vmatprep.subr.mxu0 0.0
        %945 = vmatpush1.msra.mxu0 0.0
        %946 = vmatprep.subr.mxu0 0.0
        %947 = vmatpush1.msra.mxu0 0.0
        %948 = vmatprep.subr.mxu0 0.0
        %949 = vmatpush1.msra.mxu0 0.0
        %950 = vmatprep.subr.mxu0 0.0
        %951 = vmatpush1.msra.mxu0 0.0
        %952 = vmatprep.subr.mxu0 0.0
        %953 = vmatpush1.msra.mxu0 0.0
        %954 = vmatprep.subr.mxu0 0.0
        %955 = vmatpush1.msra.mxu0 0.0
        %956 = vmatprep.subr.mxu0 0.0
        %957 = vmatpush1.msra.mxu0 0.0
        %958 = vmatprep.subr.mxu0 0.0
        %959 = vmatpush1.msra.mxu0 0.0
        %960 = vmatprep.subr.mxu0 0.0
        %961 = vmatpush1.msra.mxu0 0.0
        %962 = vmatprep.subr.mxu0 0.0
        %963 = vmatpush1.msra.mxu0 0.0
        %964 = vmatprep.subr.mxu0 0.0
        %965 = vmatpush1.msra.mxu0 0.0
        %966 = vmatprep.subr.mxu0 0.0
        %967 = vmatpush1.msra.mxu0 0.0
        %968 = vmatprep.subr.mxu0 0.0
        %969 = vmatpush1.msra.mxu0 0.0
        %970 = vmatprep.subr.mxu0 0.0
        %971 = vmatpush1.msra.mxu0 0.0
        %972 = vmatprep.subr.mxu0 0.0
        %973 = vmatpush1.msra.mxu0 0.0
        %974 = vmatprep.subr.mxu0 0.0
        %975 = vmatpush1.msra.mxu0 0.0
        %976 = vmatprep.mubr.f32.mxu0 0.0
        %977 = vmatmul.mubr.f32.gmra.mrb[0].mxu0 %v740
        %v978 = vpop.f32.mrb[0].mxu0
        %v979 = vadd.f32 %v875, %v978
        %v980 = vpop.f32.mrb[0].mxu0
        %v981 = vadd.f32 %v879, %v980
        %982 = vmatprep.mubr.f32.mxu0 0.0
        %983 = vmatmul.mubr.f32.gmra.mrb[0].mxu0 %v741
        %v984 = vpop.f32.mrb[0].mxu0
        %v985 = vadd.f32 %v875, %v984
        %v986 = vpop.f32.mrb[0].mxu0
        %v987 = vadd.f32 %v879, %v986
        %988 = vdwg.mxu0
        %989 = vmatprep.subr.mxu0 %v745
        %990 = vmatpush1.msra.mxu0 %v744
        %991 = vmatprep.subr.mxu0 %v753
        %992 = vmatpush1.msra.mxu0 %v752
        %993 = vmatprep.subr.mxu0 %v761
        %994 = vmatpush1.msra.mxu0 %v760
        %995 = vmatprep.subr.mxu0 %v769
        %996 = vmatpush1.msra.mxu0 %v768
        %997 = vmatprep.subr.mxu0 %v777
        %998 = vmatpush1.msra.mxu0 %v776
        %999 = vmatprep.subr.mxu0 %v785
        %1000 = vmatpush1.msra.mxu0 %v784
        %1001 = vmatprep.subr.mxu0 %v793
        %1002 = vmatpush1.msra.mxu0 %v792
        %1003 = vmatprep.subr.mxu0 %v801
        %1004 = vmatpush1.msra.mxu0 %v800
        %1005 = vmatprep.subr.mxu0 %v809
        %1006 = vmatpush1.msra.mxu0 %v808
        %1007 = vmatprep.subr.mxu0 %v817
        %1008 = vmatpush1.msra.mxu0 %v816
        %1009 = vmatprep.subr.mxu0 %v825
        %1010 = vmatpush1.msra.mxu0 %v824
        %1011 = vmatprep.subr.mxu0 %v833
        %1012 = vmatpush1.msra.mxu0 %v832
        %1013 = vmatprep.subr.mxu0 %v841
        %1014 = vmatpush1.msra.mxu0 %v840
        %1015 = vmatprep.subr.mxu0 %v849
        %1016 = vmatpush1.msra.mxu0 %v848
        %1017 = vmatprep.subr.mxu0 %v857
        %1018 = vmatpush1.msra.mxu0 %v856
        %1019 = vmatprep.subr.mxu0 %v865
        %1020 = vmatpush1.msra.mxu0 %v864
        %1021 = vmatprep.subr.mxu0 0.0
        %1022 = vmatpush1.msra.mxu0 0.0
        %1023 = vmatprep.subr.mxu0 0.0
        %1024 = vmatpush1.msra.mxu0 0.0
        %1025 = vmatprep.subr.mxu0 0.0
        %1026 = vmatpush1.msra.mxu0 0.0
        %1027 = vmatprep.subr.mxu0 0.0
        %1028 = vmatpush1.msra.mxu0 0.0
        %1029 = vmatprep.subr.mxu0 0.0
        %1030 = vmatpush1.msra.mxu0 0.0
        %1031 = vmatprep.subr.mxu0 0.0
        %1032 = vmatpush1.msra.mxu0 0.0
        %1033 = vmatprep.subr.mxu0 0.0
        %1034 = vmatpush1.msra.mxu0 0.0
        %1035 = vmatprep.subr.mxu0 0.0
        %1036 = vmatpush1.msra.mxu0 0.0
        %1037 = vmatprep.subr.mxu0 0.0
        %1038 = vmatpush1.msra.mxu0 0.0
        %1039 = vmatprep.subr.mxu0 0.0
        %1040 = vmatpush1.msra.mxu0 0.0
        %1041 = vmatprep.subr.mxu0 0.0
        %1042 = vmatpush1.msra.mxu0 0.0
        %1043 = vmatprep.subr.mxu0 0.0
        %1044 = vmatpush1.msra.mxu0 0.0
        %1045 = vmatprep.subr.mxu0 0.0
        %1046 = vmatpush1.msra.mxu0 0.0
        %1047 = vmatprep.subr.mxu0 0.0
        %1048 = vmatpush1.msra.mxu0 0.0
        %1049 = vmatprep.subr.mxu0 0.0
        %1050 = vmatpush1.msra.mxu0 0.0
        %1051 = vmatprep.subr.mxu0 0.0
        %1052 = vmatpush1.msra.mxu0 0.0
        %1053 = vmatprep.mubr.f32.mxu0 0.0
        %1054 = vmatmul.mubr.f32.gmra.mrb[0].mxu0 %v740
        %v1055 = vpop.f32.mrb[0].mxu0
        %v1056 = vadd.f32 %v883, %v1055
        %v1057 = vpop.f32.mrb[0].mxu0
        %v1058 = vadd.f32 %v887, %v1057
        %1059 = vmatprep.mubr.f32.mxu0 0.0
        %1060 = vmatmul.mubr.f32.gmra.mrb[0].mxu0 %v741
        %v1061 = vpop.f32.mrb[0].mxu0
        %v1062 = vadd.f32 %v883, %v1061
        %v1063 = vpop.f32.mrb[0].mxu0
        %v1064 = vadd.f32 %v887, %v1063
        %1065 = vdwg.mxu0
        %1066 = vmatprep.subr.mxu0 %v747
        %1067 = vmatpush1.msra.mxu0 %v746
        %1068 = vmatprep.subr.mxu0 %v755
        %1069 = vmatpush1.msra.mxu0 %v754
        %1070 = vmatprep.subr.mxu0 %v763
        %1071 = vmatpush1.msra.mxu0 %v762
        %1072 = vmatprep.subr.mxu0 %v771
        %1073 = vmatpush1.msra.mxu0 %v770
        %1074 = vmatprep.subr.mxu0 %v779
        %1075 = vmatpush1.msra.mxu0 %v778
        %1076 = vmatprep.subr.mxu0 %v787
        %1077 = vmatpush1.msra.mxu0 %v786
        %1078 = vmatprep.subr.mxu0 %v795
        %1079 = vmatpush1.msra.mxu0 %v794
        %1080 = vmatprep.subr.mxu0 %v803
        %1081 = vmatpush1.msra.mxu0 %v802
        %1082 = vmatprep.subr.mxu0 %v811
        %1083 = vmatpush1.msra.mxu0 %v810
        %1084 = vmatprep.subr.mxu0 %v819
        %1085 = vmatpush1.msra.mxu0 %v818
        %1086 = vmatprep.subr.mxu0 %v827
        %1087 = vmatpush1.msra.mxu0 %v826
        %1088 = vmatprep.subr.mxu0 %v835
        %1089 = vmatpush1.msra.mxu0 %v834
        %1090 = vmatprep.subr.mxu0 %v843
        %1091 = vmatpush1.msra.mxu0 %v842
        %1092 = vmatprep.subr.mxu0 %v851
        %1093 = vmatpush1.msra.mxu0 %v850
        %1094 = vmatprep.subr.mxu0 %v859
        %1095 = vmatpush1.msra.mxu0 %v858
        %1096 = vmatprep.subr.mxu0 %v867
        %1097 = vmatpush1.msra.mxu0 %v866
        %1098 = vmatprep.subr.mxu0 0.0
        %1099 = vmatpush1.msra.mxu0 0.0
        %1100 = vmatprep.subr.mxu0 0.0
        %1101 = vmatpush1.msra.mxu0 0.0
        %1102 = vmatprep.subr.mxu0 0.0
        %1103 = vmatpush1.msra.mxu0 0.0
        %1104 = vmatprep.subr.mxu0 0.0
        %1105 = vmatpush1.msra.mxu0 0.0
        %1106 = vmatprep.subr.mxu0 0.0
        %1107 = vmatpush1.msra.mxu0 0.0
        %1108 = vmatprep.subr.mxu0 0.0
        %1109 = vmatpush1.msra.mxu0 0.0
        %1110 = vmatprep.subr.mxu0 0.0
        %1111 = vmatpush1.msra.mxu0 0.0
        %1112 = vmatprep.subr.mxu0 0.0
        %1113 = vmatpush1.msra.mxu0 0.0
        %1114 = vmatprep.subr.mxu0 0.0
        %1115 = vmatpush1.msra.mxu0 0.0
        %1116 = vmatprep.subr.mxu0 0.0
        %1117 = vmatpush1.msra.mxu0 0.0
        %1118 = vmatprep.subr.mxu0 0.0
        %1119 = vmatpush1.msra.mxu0 0.0
        %1120 = vmatprep.subr.mxu0 0.0
        %1121 = vmatpush1.msra.mxu0 0.0
        %1122 = vmatprep.subr.mxu0 0.0
        %1123 = vmatpush1.msra.mxu0 0.0
        %1124 = vmatprep.subr.mxu0 0.0
        %1125 = vmatpush1.msra.mxu0 0.0
        %1126 = vmatprep.subr.mxu0 0.0
        %1127 = vmatpush1.msra.mxu0 0.0
        %1128 = vmatprep.subr.mxu0 0.0
        %1129 = vmatpush1.msra.mxu0 0.0
        %1130 = vmatprep.mubr.f32.mxu0 0.0
        %1131 = vmatmul.mubr.f32.gmra.mrb[0].mxu0 %v740
        %v1132 = vpop.f32.mrb[0].mxu0
        %v1133 = vadd.f32 %v891, %v1132
        %v1134 = vpop.f32.mrb[0].mxu0
        %v1135 = vadd.f32 %v895, %v1134
        %1136 = vmatprep.mubr.f32.mxu0 0.0
        %1137 = vmatmul.mubr.f32.gmra.mrb[0].mxu0 %v741
        %v1138 = vpop.f32.mrb[0].mxu0
        %v1139 = vadd.f32 %v891, %v1138
        %v1140 = vpop.f32.mrb[0].mxu0
        %v1141 = vadd.f32 %v895, %v1140
        %1142 = vdwg.mxu0
        %1143 = vmatprep.subr.mxu0 %v749
        %1144 = vmatpush1.msra.mxu0 %v748
        %1145 = vmatprep.subr.mxu0 %v757
        %1146 = vmatpush1.msra.mxu0 %v756
        %1147 = vmatprep.subr.mxu0 %v765
        %1148 = vmatpush1.msra.mxu0 %v764
        %1149 = vmatprep.subr.mxu0 %v773
        %1150 = vmatpush1.msra.mxu0 %v772
        %1151 = vmatprep.subr.mxu0 %v781
        %1152 = vmatpush1.msra.mxu0 %v780
        %1153 = vmatprep.subr.mxu0 %v789
        %1154 = vmatpush1.msra.mxu0 %v788
        %1155 = vmatprep.subr.mxu0 %v797
        %1156 = vmatpush1.msra.mxu0 %v796
        %1157 = vmatprep.subr.mxu0 %v805
        %1158 = vmatpush1.msra.mxu0 %v804
        %1159 = vmatprep.subr.mxu0 %v813
        %1160 = vmatpush1.msra.mxu0 %v812
        %1161 = vmatprep.subr.mxu0 %v821
        %1162 = vmatpush1.msra.mxu0 %v820
        %1163 = vmatprep.subr.mxu0 %v829
        %1164 = vmatpush1.msra.mxu0 %v828
        %1165 = vmatprep.subr.mxu0 %v837
        %1166 = vmatpush1.msra.mxu0 %v836
        %1167 = vmatprep.subr.mxu0 %v845
        %1168 = vmatpush1.msra.mxu0 %v844
        %1169 = vmatprep.subr.mxu0 %v853
        %1170 = vmatpush1.msra.mxu0 %v852
        %1171 = vmatprep.subr.mxu0 %v861
        %1172 = vmatpush1.msra.mxu0 %v860
        %1173 = vmatprep.subr.mxu0 %v869
        %1174 = vmatpush1.msra.mxu0 %v868
        %1175 = vmatprep.subr.mxu0 0.0
        %1176 = vmatpush1.msra.mxu0 0.0
        %1177 = vmatprep.subr.mxu0 0.0
        %1178 = vmatpush1.msra.mxu0 0.0
        %1179 = vmatprep.subr.mxu0 0.0
        %1180 = vmatpush1.msra.mxu0 0.0
        %1181 = vmatprep.subr.mxu0 0.0
        %1182 = vmatpush1.msra.mxu0 0.0
        %1183 = vmatprep.subr.mxu0 0.0
        %1184 = vmatpush1.msra.mxu0 0.0
        %1185 = vmatprep.subr.mxu0 0.0
        %1186 = vmatpush1.msra.mxu0 0.0
        %1187 = vmatprep.subr.mxu0 0.0
        %1188 = vmatpush1.msra.mxu0 0.0
        %1189 = vmatprep.subr.mxu0 0.0
        %1190 = vmatpush1.msra.mxu0 0.0
        %1191 = vmatprep.subr.mxu0 0.0
        %1192 = vmatpush1.msra.mxu0 0.0
        %1193 = vmatprep.subr.mxu0 0.0
        %1194 = vmatpush1.msra.mxu0 0.0
        %1195 = vmatprep.subr.mxu0 0.0
        %1196 = vmatpush1.msra.mxu0 0.0
        %1197 = vmatprep.subr.mxu0 0.0
        %1198 = vmatpush1.msra.mxu0 0.0
        %1199 = vmatprep.subr.mxu0 0.0
        %1200 = vmatpush1.msra.mxu0 0.0
        %1201 = vmatprep.subr.mxu0 0.0
        %1202 = vmatpush1.msra.mxu0 0.0
        %1203 = vmatprep.subr.mxu0 0.0
        %1204 = vmatpush1.msra.mxu0 0.0
        %1205 = vmatprep.subr.mxu0 0.0
        %1206 = vmatpush1.msra.mxu0 0.0
        %1207 = vmatprep.mubr.f32.mxu0 0.0
        %1208 = vmatmul.mubr.f32.gmra.mrb[0].mxu0 %v740
        %v1209 = vpop.f32.mrb[0].mxu0
        %v1210 = vadd.f32 %v899, %v1209
        %v1211 = vpop.f32.mrb[0].mxu0
        %v1212 = vadd.f32 %v903, %v1211
        %1213 = vmatprep.mubr.f32.mxu0 0.0
        %1214 = vmatmul.mubr.f32.gmra.mrb[0].mxu0 %v741
        %v1215 = vpop.f32.mrb[0].mxu0
        %v1216 = vadd.f32 %v899, %v1215
        %v1217 = vpop.f32.mrb[0].mxu0
        %v1218 = vadd.f32 %v903, %v1217
        %1219 = vdwg.mxu0
        %v1220 = vmax.f32 %v979, 0.0
        %v1221 = vmax.f32 %v981, 0.0
        %v1222 = vmax.f32 %v1056, 0.0
        %v1223 = vmax.f32 %v1058, 0.0
        %v1224 = vmax.f32 %v1133, 0.0
        %v1225 = vmax.f32 %v1135, 0.0
        %v1226 = vmax.f32 %v1210, 0.0
        %v1227 = vmax.f32 %v1212, 0.0
        %v1228 = vmax.f32 %v985, 0.0
        %v1229 = vmax.f32 %v987, 0.0
        %v1230 = vmax.f32 %v1062, 0.0
        %v1231 = vmax.f32 %v1064, 0.0
        %v1232 = vmax.f32 %v1139, 0.0
        %v1233 = vmax.f32 %v1141, 0.0
        %v1234 = vmax.f32 %v1216, 0.0
        %v1235 = vmax.f32 %v1218, 0.0
        %v1236 = vld [vmem:[#allocation14] sm:$0xff]
        %v1237 = vld [vmem:[#allocation14 + $0x8] sm:$0xff]
        %v1238 = vld [vmem:[#allocation14 + $0x10] sm:$0xff]
        %v1239 = vld [vmem:[#allocation14 + $0x18] sm:$0xff]
        %v1240 = vld [vmem:[#allocation14 + $0x20] sm:$0xff]
        %v1241 = vld [vmem:[#allocation14 + $0x28] sm:$0xff]
        %v1242 = vld [vmem:[#allocation14 + $0x30] sm:$0xff]
        %v1243 = vld [vmem:[#allocation14 + $0x38] sm:$0xff]
        %v1244 = vld [vmem:[#allocation14 + $0x40] sm:$0xff]
        %v1245 = vld [vmem:[#allocation14 + $0x48] sm:$0xff]
        %v1246 = vld [vmem:[#allocation14 + $0x50] sm:$0xff]
        %v1247 = vld [vmem:[#allocation14 + $0x58] sm:$0xff]
        %v1248 = vld [vmem:[#allocation14 + $0x60] sm:$0xff]
        %v1249 = vld [vmem:[#allocation14 + $0x68] sm:$0xff]
        %v1250 = vld [vmem:[#allocation14 + $0x70] sm:$0xff]
        %v1251 = vld [vmem:[#allocation14 + $0x78] sm:$0xff]
        %v1252 = vld [vmem:[#allocation14 + $0x80] sm:$0xff]
        %v1253 = vld [vmem:[#allocation14 + $0x88] sm:$0xff]
        %v1254 = vld [vmem:[#allocation14 + $0x90] sm:$0xff]
        %v1255 = vld [vmem:[#allocation14 + $0x98] sm:$0xff]
        %v1256 = vld [vmem:[#allocation14 + $0xa0] sm:$0xff]
        %v1257 = vld [vmem:[#allocation14 + $0xa8] sm:$0xff]
        %v1258 = vld [vmem:[#allocation14 + $0xb0] sm:$0xff]
        %v1259 = vld [vmem:[#allocation14 + $0xb8] sm:$0xff]
        %v1260 = vld [vmem:[#allocation14 + $0xc0] sm:$0xff]
        %v1261 = vld [vmem:[#allocation14 + $0xc8] sm:$0xff]
        %v1262 = vld [vmem:[#allocation14 + $0xd0] sm:$0xff]
        %v1263 = vld [vmem:[#allocation14 + $0xd8] sm:$0xff]
        %v1264 = vld [vmem:[#allocation14 + $0xe0] sm:$0xff]
        %v1265 = vld [vmem:[#allocation14 + $0xe8] sm:$0xff]
        %v1266 = vld [vmem:[#allocation14 + $0xf0] sm:$0xff]
        %v1267 = vld [vmem:[#allocation14 + $0xf8] sm:$0xff]
        %v1268 = vld [vmem:[#allocation14 + $0x100] sm:$0xff]
        %v1269 = vld [vmem:[#allocation14 + $0x108] sm:$0xff]
        %v1270 = vld [vmem:[#allocation14 + $0x110] sm:$0xff]
        %v1271 = vld [vmem:[#allocation14 + $0x118] sm:$0xff]
        %v1272 = vld [vmem:[#allocation14 + $0x120] sm:$0xff]
        %v1273 = vld [vmem:[#allocation14 + $0x128] sm:$0xff]
        %v1274 = vld [vmem:[#allocation14 + $0x130] sm:$0xff]
        %v1275 = vld [vmem:[#allocation14 + $0x138] sm:$0xff]
        %v1276 = vld [vmem:[#allocation14 + $0x140] sm:$0xff]
        %v1277 = vld [vmem:[#allocation14 + $0x148] sm:$0xff]
        %v1278 = vld [vmem:[#allocation14 + $0x150] sm:$0xff]
        %v1279 = vld [vmem:[#allocation14 + $0x158] sm:$0xff]
        %v1280 = vld [vmem:[#allocation14 + $0x160] sm:$0xff]
        %v1281 = vld [vmem:[#allocation14 + $0x168] sm:$0xff]
        %v1282 = vld [vmem:[#allocation14 + $0x170] sm:$0xff]
        %v1283 = vld [vmem:[#allocation14 + $0x178] sm:$0xff]
        %v1284 = vld [vmem:[#allocation14 + $0x180] sm:$0xff]
        %v1285 = vld [vmem:[#allocation14 + $0x188] sm:$0xff]
        %v1286 = vld [vmem:[#allocation14 + $0x190] sm:$0xff]
        %v1287 = vld [vmem:[#allocation14 + $0x198] sm:$0xff]
        %v1288 = vld [vmem:[#allocation14 + $0x1a0] sm:$0xff]
        %v1289 = vld [vmem:[#allocation14 + $0x1a8] sm:$0xff]
        %v1290 = vld [vmem:[#allocation14 + $0x1b0] sm:$0xff]
        %v1291 = vld [vmem:[#allocation14 + $0x1b8] sm:$0xff]
        %v1292 = vld [vmem:[#allocation14 + $0x1c0] sm:$0xff]
        %v1293 = vld [vmem:[#allocation14 + $0x1c8] sm:$0xff]
        %v1294 = vld [vmem:[#allocation14 + $0x1d0] sm:$0xff]
        %v1295 = vld [vmem:[#allocation14 + $0x1d8] sm:$0xff]
        %v1296 = vld [vmem:[#allocation14 + $0x1e0] sm:$0xff]
        %v1297 = vld [vmem:[#allocation14 + $0x1e8] sm:$0xff]
        %v1298 = vld [vmem:[#allocation14 + $0x1f0] sm:$0xff]
        %v1299 = vld [vmem:[#allocation14 + $0x1f8] sm:$0xff]
        %v1300 = vld [vmem:[#allocation14 + $0x200] sm:$0xff]
        %v1301 = vld [vmem:[#allocation14 + $0x208] sm:$0xff]
        %v1302 = vld [vmem:[#allocation14 + $0x210] sm:$0xff]
        %v1303 = vld [vmem:[#allocation14 + $0x218] sm:$0xff]
        %v1304 = vld [vmem:[#allocation14 + $0x220] sm:$0xff]
        %v1305 = vld [vmem:[#allocation14 + $0x228] sm:$0xff]
        %v1306 = vld [vmem:[#allocation14 + $0x230] sm:$0xff]
        %v1307 = vld [vmem:[#allocation14 + $0x238] sm:$0xff]
        %v1308 = vld [vmem:[#allocation14 + $0x240] sm:$0xff]
        %v1309 = vld [vmem:[#allocation14 + $0x248] sm:$0xff]
        %v1310 = vld [vmem:[#allocation14 + $0x250] sm:$0xff]
        %v1311 = vld [vmem:[#allocation14 + $0x258] sm:$0xff]
        %v1312 = vld [vmem:[#allocation14 + $0x260] sm:$0xff]
        %v1313 = vld [vmem:[#allocation14 + $0x268] sm:$0xff]
        %v1314 = vld [vmem:[#allocation14 + $0x270] sm:$0xff]
        %v1315 = vld [vmem:[#allocation14 + $0x278] sm:$0xff]
        %v1316 = vld [vmem:[#allocation14 + $0x280] sm:$0xff]
        %v1317 = vld [vmem:[#allocation14 + $0x288] sm:$0xff]
        %v1318 = vld [vmem:[#allocation14 + $0x290] sm:$0xff]
        %v1319 = vld [vmem:[#allocation14 + $0x298] sm:$0xff]
        %v1320 = vld [vmem:[#allocation14 + $0x2a0] sm:$0xff]
        %v1321 = vld [vmem:[#allocation14 + $0x2a8] sm:$0xff]
        %v1322 = vld [vmem:[#allocation14 + $0x2b0] sm:$0xff]
        %v1323 = vld [vmem:[#allocation14 + $0x2b8] sm:$0xff]
        %v1324 = vld [vmem:[#allocation14 + $0x2c0] sm:$0xff]
        %v1325 = vld [vmem:[#allocation14 + $0x2c8] sm:$0xff]
        %v1326 = vld [vmem:[#allocation14 + $0x2d0] sm:$0xff]
        %v1327 = vld [vmem:[#allocation14 + $0x2d8] sm:$0xff]
        %v1328 = vld [vmem:[#allocation14 + $0x2e0] sm:$0xff]
        %v1329 = vld [vmem:[#allocation14 + $0x2e8] sm:$0xff]
        %v1330 = vld [vmem:[#allocation14 + $0x2f0] sm:$0xff]
        %v1331 = vld [vmem:[#allocation14 + $0x2f8] sm:$0xff]
        %v1332 = vld [vmem:[#allocation14 + $0x300] sm:$0xff]
        %v1333 = vld [vmem:[#allocation14 + $0x308] sm:$0xff]
        %v1334 = vld [vmem:[#allocation14 + $0x310] sm:$0xff]
        %v1335 = vld [vmem:[#allocation14 + $0x318] sm:$0xff]
        %v1336 = vld [vmem:[#allocation14 + $0x320] sm:$0xff]
        %v1337 = vld [vmem:[#allocation14 + $0x328] sm:$0xff]
        %v1338 = vld [vmem:[#allocation14 + $0x330] sm:$0xff]
        %v1339 = vld [vmem:[#allocation14 + $0x338] sm:$0xff]
        %v1340 = vld [vmem:[#allocation14 + $0x340] sm:$0xff]
        %v1341 = vld [vmem:[#allocation14 + $0x348] sm:$0xff]
        %v1342 = vld [vmem:[#allocation14 + $0x350] sm:$0xff]
        %v1343 = vld [vmem:[#allocation14 + $0x358] sm:$0xff]
        %v1344 = vld [vmem:[#allocation14 + $0x360] sm:$0xff]
        %v1345 = vld [vmem:[#allocation14 + $0x368] sm:$0xff]
        %v1346 = vld [vmem:[#allocation14 + $0x370] sm:$0xff]
        %v1347 = vld [vmem:[#allocation14 + $0x378] sm:$0xff]
        %v1348 = vld [vmem:[#allocation14 + $0x380] sm:$0xff]
        %v1349 = vld [vmem:[#allocation14 + $0x388] sm:$0xff]
        %v1350 = vld [vmem:[#allocation14 + $0x390] sm:$0xff]
        %v1351 = vld [vmem:[#allocation14 + $0x398] sm:$0xff]
        %v1352 = vld [vmem:[#allocation14 + $0x3a0] sm:$0xff]
        %v1353 = vld [vmem:[#allocation14 + $0x3a8] sm:$0xff]
        %v1354 = vld [vmem:[#allocation14 + $0x3b0] sm:$0xff]
        %v1355 = vld [vmem:[#allocation14 + $0x3b8] sm:$0xff]
        %v1356 = vld [vmem:[#allocation14 + $0x3c0] sm:$0xff]
        %v1357 = vld [vmem:[#allocation14 + $0x3c8] sm:$0xff]
        %v1358 = vld [vmem:[#allocation14 + $0x3d0] sm:$0xff]
        %v1359 = vld [vmem:[#allocation14 + $0x3d8] sm:$0xff]
        %v1360 = vld [vmem:[#allocation14 + $0x3e0] sm:$0xff]
        %v1361 = vld [vmem:[#allocation14 + $0x3e8] sm:$0xff]
        %v1362 = vld [vmem:[#allocation14 + $0x3f0] sm:$0xff]
        %v1363 = vld [vmem:[#allocation14 + $0x3f8] sm:$0xff]
        %v1364 = vld [vmem:[%s9] sm:$0x1]
        %v1366 = vlaneseq
        %v1367 = vshrl.u32 %v1366, 7
        %v1368 = vsub.s32 0, %v1367
        %v1369 = vrot.slane %v1364, %v1368
        %1371 = vmatprep.subr.mxu0 0.0
        %1372 = vmatpush1.msra.mxu0 %v1236
        %1373 = vmatprep.subr.mxu0 0.0
        %1374 = vmatpush1.msra.mxu0 %v1237
        %1375 = vmatprep.subr.mxu0 0.0
        %1376 = vmatpush1.msra.mxu0 %v1238
        %1377 = vmatprep.subr.mxu0 0.0
        %1378 = vmatpush1.msra.mxu0 %v1239
        %1379 = vmatprep.subr.mxu0 0.0
        %1380 = vmatpush1.msra.mxu0 %v1240
        %1381 = vmatprep.subr.mxu0 0.0
        %1382 = vmatpush1.msra.mxu0 %v1241
        %1383 = vmatprep.subr.mxu0 0.0
        %1384 = vmatpush1.msra.mxu0 %v1242
        %1385 = vmatprep.subr.mxu0 0.0
        %1386 = vmatpush1.msra.mxu0 %v1243
        %1387 = vmatprep.subr.mxu0 0.0
        %1388 = vmatpush1.msra.mxu0 %v1244
        %1389 = vmatprep.subr.mxu0 0.0
        %1390 = vmatpush1.msra.mxu0 %v1245
        %1391 = vmatprep.subr.mxu0 0.0
        %1392 = vmatpush1.msra.mxu0 %v1246
        %1393 = vmatprep.subr.mxu0 0.0
        %1394 = vmatpush1.msra.mxu0 %v1247
        %1395 = vmatprep.subr.mxu0 0.0
        %1396 = vmatpush1.msra.mxu0 %v1248
        %1397 = vmatprep.subr.mxu0 0.0
        %1398 = vmatpush1.msra.mxu0 %v1249
        %1399 = vmatprep.subr.mxu0 0.0
        %1400 = vmatpush1.msra.mxu0 %v1250
        %1401 = vmatprep.subr.mxu0 0.0
        %1402 = vmatpush1.msra.mxu0 %v1251
        %1403 = vmatprep.subr.mxu0 0.0
        %1404 = vmatpush1.msra.mxu0 %v1252
        %1405 = vmatprep.subr.mxu0 0.0
        %1406 = vmatpush1.msra.mxu0 %v1253
        %1407 = vmatprep.subr.mxu0 0.0
        %1408 = vmatpush1.msra.mxu0 %v1254
        %1409 = vmatprep.subr.mxu0 0.0
        %1410 = vmatpush1.msra.mxu0 %v1255
        %1411 = vmatprep.subr.mxu0 0.0
        %1412 = vmatpush1.msra.mxu0 %v1256
        %1413 = vmatprep.subr.mxu0 0.0
        %1414 = vmatpush1.msra.mxu0 %v1257
        %1415 = vmatprep.subr.mxu0 0.0
        %1416 = vmatpush1.msra.mxu0 %v1258
        %1417 = vmatprep.subr.mxu0 0.0
        %1418 = vmatpush1.msra.mxu0 %v1259
        %1419 = vmatprep.subr.mxu0 0.0
        %1420 = vmatpush1.msra.mxu0 %v1260
        %1421 = vmatprep.subr.mxu0 0.0
        %1422 = vmatpush1.msra.mxu0 %v1261
        %1423 = vmatprep.subr.mxu0 0.0
        %1424 = vmatpush1.msra.mxu0 %v1262
        %1425 = vmatprep.subr.mxu0 0.0
        %1426 = vmatpush1.msra.mxu0 %v1263
        %1427 = vmatprep.subr.mxu0 0.0
        %1428 = vmatpush1.msra.mxu0 %v1264
        %1429 = vmatprep.subr.mxu0 0.0
        %1430 = vmatpush1.msra.mxu0 %v1265
        %1431 = vmatprep.subr.mxu0 0.0
        %1432 = vmatpush1.msra.mxu0 %v1266
        %1433 = vmatprep.subr.mxu0 0.0
        %1434 = vmatpush1.msra.mxu0 %v1267
        %1435 = vmatprep.mubr.f32.mxu0 %v1221
        %1436 = vmatmul.mubr.f32.gmra.mrb[0].mxu0 %v1220
        %v1437 = vpop.f32.mrb[0].mxu0
        %v1438 = vadd.f32 %v1369, %v1437
        %v1439 = vpop.f32.mrb[0].mxu0
        %1440 = vmatprep.mubr.f32.mxu0 %v1229
        %1441 = vmatmul.mubr.f32.gmra.mrb[0].mxu0 %v1228
        %v1442 = vpop.f32.mrb[0].mxu0
        %v1443 = vadd.f32 %v1369, %v1442
        %v1444 = vpop.f32.mrb[0].mxu0
        %1445 = vdwg.mxu0
        %1446 = vmatprep.subr.mxu0 0.0
        %1447 = vmatpush1.msra.mxu0 %v1268
        %1448 = vmatprep.subr.mxu0 0.0
        %1449 = vmatpush1.msra.mxu0 %v1269
        %1450 = vmatprep.subr.mxu0 0.0
        %1451 = vmatpush1.msra.mxu0 %v1270
        %1452 = vmatprep.subr.mxu0 0.0
        %1453 = vmatpush1.msra.mxu0 %v1271
        %1454 = vmatprep.subr.mxu0 0.0
        %1455 = vmatpush1.msra.mxu0 %v1272
        %1456 = vmatprep.subr.mxu0 0.0
        %1457 = vmatpush1.msra.mxu0 %v1273
        %1458 = vmatprep.subr.mxu0 0.0
        %1459 = vmatpush1.msra.mxu0 %v1274
        %1460 = vmatprep.subr.mxu0 0.0
        %1461 = vmatpush1.msra.mxu0 %v1275
        %1462 = vmatprep.subr.mxu0 0.0
        %1463 = vmatpush1.msra.mxu0 %v1276
        %1464 = vmatprep.subr.mxu0 0.0
        %1465 = vmatpush1.msra.mxu0 %v1277
        %1466 = vmatprep.subr.mxu0 0.0
        %1467 = vmatpush1.msra.mxu0 %v1278
        %1468 = vmatprep.subr.mxu0 0.0
        %1469 = vmatpush1.msra.mxu0 %v1279
        %1470 = vmatprep.subr.mxu0 0.0
        %1471 = vmatpush1.msra.mxu0 %v1280
        %1472 = vmatprep.subr.mxu0 0.0
        %1473 = vmatpush1.msra.mxu0 %v1281
        %1474 = vmatprep.subr.mxu0 0.0
        %1475 = vmatpush1.msra.mxu0 %v1282
        %1476 = vmatprep.subr.mxu0 0.0
        %1477 = vmatpush1.msra.mxu0 %v1283
        %1478 = vmatprep.subr.mxu0 0.0
        %1479 = vmatpush1.msra.mxu0 %v1284
        %1480 = vmatprep.subr.mxu0 0.0
        %1481 = vmatpush1.msra.mxu0 %v1285
        %1482 = vmatprep.subr.mxu0 0.0
        %1483 = vmatpush1.msra.mxu0 %v1286
        %1484 = vmatprep.subr.mxu0 0.0
        %1485 = vmatpush1.msra.mxu0 %v1287
        %1486 = vmatprep.subr.mxu0 0.0
        %1487 = vmatpush1.msra.mxu0 %v1288
        %1488 = vmatprep.subr.mxu0 0.0
        %1489 = vmatpush1.msra.mxu0 %v1289
        %1490 = vmatprep.subr.mxu0 0.0
        %1491 = vmatpush1.msra.mxu0 %v1290
        %1492 = vmatprep.subr.mxu0 0.0
        %1493 = vmatpush1.msra.mxu0 %v1291
        %1494 = vmatprep.subr.mxu0 0.0
        %1495 = vmatpush1.msra.mxu0 %v1292
        %1496 = vmatprep.subr.mxu0 0.0
        %1497 = vmatpush1.msra.mxu0 %v1293
        %1498 = vmatprep.subr.mxu0 0.0
        %1499 = vmatpush1.msra.mxu0 %v1294
        %1500 = vmatprep.subr.mxu0 0.0
        %1501 = vmatpush1.msra.mxu0 %v1295
        %1502 = vmatprep.subr.mxu0 0.0
        %1503 = vmatpush1.msra.mxu0 %v1296
        %1504 = vmatprep.subr.mxu0 0.0
        %1505 = vmatpush1.msra.mxu0 %v1297
        %1506 = vmatprep.subr.mxu0 0.0
        %1507 = vmatpush1.msra.mxu0 %v1298
        %1508 = vmatprep.subr.mxu0 0.0
        %1509 = vmatpush1.msra.mxu0 %v1299
        %1510 = vmatprep.mubr.f32.mxu0 %v1223
        %1511 = vmatmul.mubr.f32.gmra.mrb[0].mxu0 %v1222
        %v1512 = vpop.f32.mrb[0].mxu0
        %v1513 = vadd.f32 %v1438, %v1512
        %v1514 = vpop.f32.mrb[0].mxu0
        %1515 = vmatprep.mubr.f32.mxu0 %v1231
        %1516 = vmatmul.mubr.f32.gmra.mrb[0].mxu0 %v1230
        %v1517 = vpop.f32.mrb[0].mxu0
        %v1518 = vadd.f32 %v1443, %v1517
        %v1519 = vpop.f32.mrb[0].mxu0
        %1520 = vdwg.mxu0
        %1521 = vmatprep.subr.mxu0 0.0
        %1522 = vmatpush1.msra.mxu0 %v1300
        %1523 = vmatprep.subr.mxu0 0.0
        %1524 = vmatpush1.msra.mxu0 %v1301
        %1525 = vmatprep.subr.mxu0 0.0
        %1526 = vmatpush1.msra.mxu0 %v1302
        %1527 = vmatprep.subr.mxu0 0.0
        %1528 = vmatpush1.msra.mxu0 %v1303
        %1529 = vmatprep.subr.mxu0 0.0
        %1530 = vmatpush1.msra.mxu0 %v1304
        %1531 = vmatprep.subr.mxu0 0.0
        %1532 = vmatpush1.msra.mxu0 %v1305
        %1533 = vmatprep.subr.mxu0 0.0
        %1534 = vmatpush1.msra.mxu0 %v1306
        %1535 = vmatprep.subr.mxu0 0.0
        %1536 = vmatpush1.msra.mxu0 %v1307
        %1537 = vmatprep.subr.mxu0 0.0
        %1538 = vmatpush1.msra.mxu0 %v1308
        %1539 = vmatprep.subr.mxu0 0.0
        %1540 = vmatpush1.msra.mxu0 %v1309
        %1541 = vmatprep.subr.mxu0 0.0
        %1542 = vmatpush1.msra.mxu0 %v1310
        %1543 = vmatprep.subr.mxu0 0.0
        %1544 = vmatpush1.msra.mxu0 %v1311
        %1545 = vmatprep.subr.mxu0 0.0
        %1546 = vmatpush1.msra.mxu0 %v1312
        %1547 = vmatprep.subr.mxu0 0.0
        %1548 = vmatpush1.msra.mxu0 %v1313
        %1549 = vmatprep.subr.mxu0 0.0
        %1550 = vmatpush1.msra.mxu0 %v1314
        %1551 = vmatprep.subr.mxu0 0.0
        %1552 = vmatpush1.msra.mxu0 %v1315
        %1553 = vmatprep.subr.mxu0 0.0
        %1554 = vmatpush1.msra.mxu0 %v1316
        %1555 = vmatprep.subr.mxu0 0.0
        %1556 = vmatpush1.msra.mxu0 %v1317
        %1557 = vmatprep.subr.mxu0 0.0
        %1558 = vmatpush1.msra.mxu0 %v1318
        %1559 = vmatprep.subr.mxu0 0.0
        %1560 = vmatpush1.msra.mxu0 %v1319
        %1561 = vmatprep.subr.mxu0 0.0
        %1562 = vmatpush1.msra.mxu0 %v1320
        %1563 = vmatprep.subr.mxu0 0.0
        %1564 = vmatpush1.msra.mxu0 %v1321
        %1565 = vmatprep.subr.mxu0 0.0
        %1566 = vmatpush1.msra.mxu0 %v1322
        %1567 = vmatprep.subr.mxu0 0.0
        %1568 = vmatpush1.msra.mxu0 %v1323
        %1569 = vmatprep.subr.mxu0 0.0
        %1570 = vmatpush1.msra.mxu0 %v1324
        %1571 = vmatprep.subr.mxu0 0.0
        %1572 = vmatpush1.msra.mxu0 %v1325
        %1573 = vmatprep.subr.mxu0 0.0
        %1574 = vmatpush1.msra.mxu0 %v1326
        %1575 = vmatprep.subr.mxu0 0.0
        %1576 = vmatpush1.msra.mxu0 %v1327
        %1577 = vmatprep.subr.mxu0 0.0
        %1578 = vmatpush1.msra.mxu0 %v1328
        %1579 = vmatprep.subr.mxu0 0.0
        %1580 = vmatpush1.msra.mxu0 %v1329
        %1581 = vmatprep.subr.mxu0 0.0
        %1582 = vmatpush1.msra.mxu0 %v1330
        %1583 = vmatprep.subr.mxu0 0.0
        %1584 = vmatpush1.msra.mxu0 %v1331
        %1585 = vmatprep.mubr.f32.mxu0 %v1225
        %1586 = vmatmul.mubr.f32.gmra.mrb[0].mxu0 %v1224
        %v1587 = vpop.f32.mrb[0].mxu0
        %v1588 = vadd.f32 %v1513, %v1587
        %v1589 = vpop.f32.mrb[0].mxu0
        %1590 = vmatprep.mubr.f32.mxu0 %v1233
        %1591 = vmatmul.mubr.f32.gmra.mrb[0].mxu0 %v1232
        %v1592 = vpop.f32.mrb[0].mxu0
        %v1593 = vadd.f32 %v1518, %v1592
        %v1594 = vpop.f32.mrb[0].mxu0
        %1595 = vdwg.mxu0
        %1596 = vmatprep.subr.mxu0 0.0
        %1597 = vmatpush1.msra.mxu0 %v1332
        %1598 = vmatprep.subr.mxu0 0.0
        %1599 = vmatpush1.msra.mxu0 %v1333
        %1600 = vmatprep.subr.mxu0 0.0
        %1601 = vmatpush1.msra.mxu0 %v1334
        %1602 = vmatprep.subr.mxu0 0.0
        %1603 = vmatpush1.msra.mxu0 %v1335
        %1604 = vmatprep.subr.mxu0 0.0
        %1605 = vmatpush1.msra.mxu0 %v1336
        %1606 = vmatprep.subr.mxu0 0.0
        %1607 = vmatpush1.msra.mxu0 %v1337
        %1608 = vmatprep.subr.mxu0 0.0
        %1609 = vmatpush1.msra.mxu0 %v1338
        %1610 = vmatprep.subr.mxu0 0.0
        %1611 = vmatpush1.msra.mxu0 %v1339
        %1612 = vmatprep.subr.mxu0 0.0
        %1613 = vmatpush1.msra.mxu0 %v1340
        %1614 = vmatprep.subr.mxu0 0.0
        %1615 = vmatpush1.msra.mxu0 %v1341
        %1616 = vmatprep.subr.mxu0 0.0
        %1617 = vmatpush1.msra.mxu0 %v1342
        %1618 = vmatprep.subr.mxu0 0.0
        %1619 = vmatpush1.msra.mxu0 %v1343
        %1620 = vmatprep.subr.mxu0 0.0
        %1621 = vmatpush1.msra.mxu0 %v1344
        %1622 = vmatprep.subr.mxu0 0.0
        %1623 = vmatpush1.msra.mxu0 %v1345
        %1624 = vmatprep.subr.mxu0 0.0
        %1625 = vmatpush1.msra.mxu0 %v1346
        %1626 = vmatprep.subr.mxu0 0.0
        %1627 = vmatpush1.msra.mxu0 %v1347
        %1628 = vmatprep.subr.mxu0 0.0
        %1629 = vmatpush1.msra.mxu0 %v1348
        %1630 = vmatprep.subr.mxu0 0.0
        %1631 = vmatpush1.msra.mxu0 %v1349
        %1632 = vmatprep.subr.mxu0 0.0
        %1633 = vmatpush1.msra.mxu0 %v1350
        %1634 = vmatprep.subr.mxu0 0.0
        %1635 = vmatpush1.msra.mxu0 %v1351
        %1636 = vmatprep.subr.mxu0 0.0
        %1637 = vmatpush1.msra.mxu0 %v1352
        %1638 = vmatprep.subr.mxu0 0.0
        %1639 = vmatpush1.msra.mxu0 %v1353
        %1640 = vmatprep.subr.mxu0 0.0
        %1641 = vmatpush1.msra.mxu0 %v1354
        %1642 = vmatprep.subr.mxu0 0.0
        %1643 = vmatpush1.msra.mxu0 %v1355
        %1644 = vmatprep.subr.mxu0 0.0
        %1645 = vmatpush1.msra.mxu0 %v1356
        %1646 = vmatprep.subr.mxu0 0.0
        %1647 = vmatpush1.msra.mxu0 %v1357
        %1648 = vmatprep.subr.mxu0 0.0
        %1649 = vmatpush1.msra.mxu0 %v1358
        %1650 = vmatprep.subr.mxu0 0.0
        %1651 = vmatpush1.msra.mxu0 %v1359
        %1652 = vmatprep.subr.mxu0 0.0
        %1653 = vmatpush1.msra.mxu0 %v1360
        %1654 = vmatprep.subr.mxu0 0.0
        %1655 = vmatpush1.msra.mxu0 %v1361
        %1656 = vmatprep.subr.mxu0 0.0
        %1657 = vmatpush1.msra.mxu0 %v1362
        %1658 = vmatprep.subr.mxu0 0.0
        %1659 = vmatpush1.msra.mxu0 %v1363
        %1660 = vmatprep.mubr.f32.mxu0 %v1227
        %1661 = vmatmul.mubr.f32.gmra.mrb[0].mxu0 %v1226
        %v1662 = vpop.f32.mrb[0].mxu0
        %v1663 = vadd.f32 %v1588, %v1662
        %v1664 = vpop.f32.mrb[0].mxu0
        %1665 = vmatprep.mubr.f32.mxu0 %v1235
        %1666 = vmatmul.mubr.f32.gmra.mrb[0].mxu0 %v1234
        %v1667 = vpop.f32.mrb[0].mxu0
        %v1668 = vadd.f32 %v1593, %v1667
        %v1669 = vpop.f32.mrb[0].mxu0
        %1670 = vdwg.mxu0
        %v1671 = vadd.f32 %v1663, %v732
        %v1672 = vadd.f32 %v1668, %v733
        %s1673 = scalar_lea.vmem [#allocation8], 16
        %v1674 = vld [vmem:[%s1673] sm:$0xff]
        %v1675 = vld [vmem:[%s1673 + $0x8] sm:$0xff]
        %s1676 = scalar_lea.vmem [#allocation5], 16
        %v1677 = vld [vmem:[%s1676] sm:$0xff]
        %v1678 = vld [vmem:[%s1676 + $0x8] sm:$0xff]
        %v1679 = vmul.f32 %v1671, %v1677
        %v1680 = vmul.f32 %v1672, %v1678
        %s1681 = scalar_lea.vmem [#allocation7], 16
        %v1682 = vld [vmem:[%s1681] sm:$0xff]
        %v1683 = vld [vmem:[%s1681 + $0x8] sm:$0xff]
        %v1685 = vsel %vm648, %v1674, 0
        %v1688 = vsel %vm648, %v1675, 0
        %1690 = vmatprep.subr.mxu0 0.0
        %1691 = vmatpush1.msra.mxu0 %v1679
        %1692 = vmatprep.subr.mxu0 0.0
        %1693 = vmatpush1.msra.mxu0 %v1680
        %1694 = vmatprep.subr.mxu0 0.0
        %1695 = vmatpush1.msra.mxu0 0.0
        %1696 = vmatprep.subr.mxu0 0.0
        %1697 = vmatpush1.msra.mxu0 0.0
        %1698 = vmatprep.subr.mxu0 0.0
        %1699 = vmatpush1.msra.mxu0 0.0
        %1700 = vmatprep.subr.mxu0 0.0
        %1701 = vmatpush1.msra.mxu0 0.0
        %1702 = vmatprep.subr.mxu0 0.0
        %1703 = vmatpush1.msra.mxu0 0.0
        %1704 = vmatprep.subr.mxu0 0.0
        %1705 = vmatpush1.msra.mxu0 0.0
        %1706 = vmatprep.subr.mxu0 0.0
        %1707 = vmatpush1.msra.mxu0 0.0
        %1708 = vmatprep.subr.mxu0 0.0
        %1709 = vmatpush1.msra.mxu0 0.0
        %1710 = vmatprep.subr.mxu0 0.0
        %1711 = vmatpush1.msra.mxu0 0.0
        %1712 = vmatprep.subr.mxu0 0.0
        %1713 = vmatpush1.msra.mxu0 0.0
        %1714 = vmatprep.subr.mxu0 0.0
        %1715 = vmatpush1.msra.mxu0 0.0
        %1716 = vmatprep.subr.mxu0 0.0
        %1717 = vmatpush1.msra.mxu0 0.0
        %1718 = vmatprep.subr.mxu0 0.0
        %1719 = vmatpush1.msra.mxu0 0.0
        %1720 = vmatprep.subr.mxu0 0.0
        %1721 = vmatpush1.msra.mxu0 0.0
        %1722 = vmatprep.subr.mxu0 0.0
        %1723 = vmatpush1.msra.mxu0 0.0
        %1724 = vmatprep.subr.mxu0 0.0
        %1725 = vmatpush1.msra.mxu0 0.0
        %1726 = vmatprep.subr.mxu0 0.0
        %1727 = vmatpush1.msra.mxu0 0.0
        %1728 = vmatprep.subr.mxu0 0.0
        %1729 = vmatpush1.msra.mxu0 0.0
        %1730 = vmatprep.subr.mxu0 0.0
        %1731 = vmatpush1.msra.mxu0 0.0
        %1732 = vmatprep.subr.mxu0 0.0
        %1733 = vmatpush1.msra.mxu0 0.0
        %1734 = vmatprep.subr.mxu0 0.0
        %1735 = vmatpush1.msra.mxu0 0.0
        %1736 = vmatprep.subr.mxu0 0.0
        %1737 = vmatpush1.msra.mxu0 0.0
        %1738 = vmatprep.subr.mxu0 0.0
        %1739 = vmatpush1.msra.mxu0 0.0
        %1740 = vmatprep.subr.mxu0 0.0
        %1741 = vmatpush1.msra.mxu0 0.0
        %1742 = vmatprep.subr.mxu0 0.0
        %1743 = vmatpush1.msra.mxu0 0.0
        %1744 = vmatprep.subr.mxu0 0.0
        %1745 = vmatpush1.msra.mxu0 0.0
        %1746 = vmatprep.subr.mxu0 0.0
        %1747 = vmatpush1.msra.mxu0 0.0
        %1748 = vmatprep.subr.mxu0 0.0
        %1749 = vmatpush1.msra.mxu0 0.0
        %1750 = vmatprep.subr.mxu0 0.0
        %1751 = vmatpush1.msra.mxu0 0.0
        %1752 = vmatprep.subr.mxu0 0.0
        %1753 = vmatpush1.msra.mxu0 0.0
        %1754 = vmatprep.mubr.f32.mxu0 0.0
        %1755 = vmatmul.mubr.f32.gmra.mrb[0].mxu0 %v1685
        %v1756 = vpop.f32.mrb[0].mxu0
        %v1757 = vadd.f32 %v1682, %v1756
        %v1758 = vpop.f32.mrb[0].mxu0
        %1759 = vmatprep.mubr.f32.mxu0 0.0
        %1760 = vmatmul.mubr.f32.gmra.mrb[0].mxu0 %v1688
        %v1761 = vpop.f32.mrb[0].mxu0
        %v1762 = vadd.f32 %v1683, %v1761
        %v1763 = vpop.f32.mrb[0].mxu0
        %1764 = vdwg.mxu0
        %v1765 = vmax.f32 %v1757, 0.0
        %v1766 = vmax.f32 %v1762, 0.0
        %v1767 = vadd.f32 %v1765, %v1671
        %v1768 = vadd.f32 %v1766, %v1672
        %s1769 = scalar_lea.vmem [#allocation10], 16
        %v1770 = vld [vmem:[%s1769] sm:$0xff]
        %v1771 = vld [vmem:[%s1769 + $0x8] sm:$0xff]
        %v1772 = vmul.f32 %v1767, %v1770
        %v1773 = vmul.f32 %v1768, %v1771
        %s1774 = scalar_lea.vmem [#allocation11], 16
        %v1775 = vld [vmem:[%s1774] sm:$0xff]
        %v1776 = vld [vmem:[%s1774 + $0x8] sm:$0xff]
        %v1777 = vadd.f32 %v1772, %v1775
        %v1778 = vadd.f32 %v1773, %v1776
        %s1779 = scalar_lea.vmem [#allocation13], 1024
        %v1780 = vld [vmem:[%s1779] sm:$0xff]
        %v1781 = vld [vmem:[%s1779 + $0x8] sm:$0xff]
        %v1782 = vld [vmem:[%s1779 + $0x10] sm:$0xff]
        %v1783 = vld [vmem:[%s1779 + $0x18] sm:$0xff]
        %v1784 = vld [vmem:[%s1779 + $0x20] sm:$0xff]
        %v1785 = vld [vmem:[%s1779 + $0x28] sm:$0xff]
        %v1786 = vld [vmem:[%s1779 + $0x30] sm:$0xff]
        %v1787 = vld [vmem:[%s1779 + $0x38] sm:$0xff]
        %v1788 = vld [vmem:[%s1779 + $0x40] sm:$0xff]
        %v1789 = vld [vmem:[%s1779 + $0x48] sm:$0xff]
        %v1790 = vld [vmem:[%s1779 + $0x50] sm:$0xff]
        %v1791 = vld [vmem:[%s1779 + $0x58] sm:$0xff]
        %v1792 = vld [vmem:[%s1779 + $0x60] sm:$0xff]
        %v1793 = vld [vmem:[%s1779 + $0x68] sm:$0xff]
        %v1794 = vld [vmem:[%s1779 + $0x70] sm:$0xff]
        %v1795 = vld [vmem:[%s1779 + $0x78] sm:$0xff]
        %v1796 = vld [vmem:[%s1779 + $0x80] sm:$0xff]
        %v1797 = vld [vmem:[%s1779 + $0x88] sm:$0xff]
        %v1798 = vld [vmem:[%s1779 + $0x90] sm:$0xff]
        %v1799 = vld [vmem:[%s1779 + $0x98] sm:$0xff]
        %v1800 = vld [vmem:[%s1779 + $0xa0] sm:$0xff]
        %v1801 = vld [vmem:[%s1779 + $0xa8] sm:$0xff]
        %v1802 = vld [vmem:[%s1779 + $0xb0] sm:$0xff]
        %v1803 = vld [vmem:[%s1779 + $0xb8] sm:$0xff]
        %v1804 = vld [vmem:[%s1779 + $0xc0] sm:$0xff]
        %v1805 = vld [vmem:[%s1779 + $0xc8] sm:$0xff]
        %v1806 = vld [vmem:[%s1779 + $0xd0] sm:$0xff]
        %v1807 = vld [vmem:[%s1779 + $0xd8] sm:$0xff]
        %v1808 = vld [vmem:[%s1779 + $0xe0] sm:$0xff]
        %v1809 = vld [vmem:[%s1779 + $0xe8] sm:$0xff]
        %v1810 = vld [vmem:[%s1779 + $0xf0] sm:$0xff]
        %v1811 = vld [vmem:[%s1779 + $0xf8] sm:$0xff]
        %v1812 = vld [vmem:[%s1779 + $0x100] sm:$0xff]
        %v1813 = vld [vmem:[%s1779 + $0x108] sm:$0xff]
        %v1814 = vld [vmem:[%s1779 + $0x110] sm:$0xff]
        %v1815 = vld [vmem:[%s1779 + $0x118] sm:$0xff]
        %v1816 = vld [vmem:[%s1779 + $0x120] sm:$0xff]
        %v1817 = vld [vmem:[%s1779 + $0x128] sm:$0xff]
        %v1818 = vld [vmem:[%s1779 + $0x130] sm:$0xff]
        %v1819 = vld [vmem:[%s1779 + $0x138] sm:$0xff]
        %v1820 = vld [vmem:[%s1779 + $0x140] sm:$0xff]
        %v1821 = vld [vmem:[%s1779 + $0x148] sm:$0xff]
        %v1822 = vld [vmem:[%s1779 + $0x150] sm:$0xff]
        %v1823 = vld [vmem:[%s1779 + $0x158] sm:$0xff]
        %v1824 = vld [vmem:[%s1779 + $0x160] sm:$0xff]
        %v1825 = vld [vmem:[%s1779 + $0x168] sm:$0xff]
        %v1826 = vld [vmem:[%s1779 + $0x170] sm:$0xff]
        %v1827 = vld [vmem:[%s1779 + $0x178] sm:$0xff]
        %v1828 = vld [vmem:[%s1779 + $0x180] sm:$0xff]
        %v1829 = vld [vmem:[%s1779 + $0x188] sm:$0xff]
        %v1830 = vld [vmem:[%s1779 + $0x190] sm:$0xff]
        %v1831 = vld [vmem:[%s1779 + $0x198] sm:$0xff]
        %v1832 = vld [vmem:[%s1779 + $0x1a0] sm:$0xff]
        %v1833 = vld [vmem:[%s1779 + $0x1a8] sm:$0xff]
        %v1834 = vld [vmem:[%s1779 + $0x1b0] sm:$0xff]
        %v1835 = vld [vmem:[%s1779 + $0x1b8] sm:$0xff]
        %v1836 = vld [vmem:[%s1779 + $0x1c0] sm:$0xff]
        %v1837 = vld [vmem:[%s1779 + $0x1c8] sm:$0xff]
        %v1838 = vld [vmem:[%s1779 + $0x1d0] sm:$0xff]
        %v1839 = vld [vmem:[%s1779 + $0x1d8] sm:$0xff]
        %v1840 = vld [vmem:[%s1779 + $0x1e0] sm:$0xff]
        %v1841 = vld [vmem:[%s1779 + $0x1e8] sm:$0xff]
        %v1842 = vld [vmem:[%s1779 + $0x1f0] sm:$0xff]
        %v1843 = vld [vmem:[%s1779 + $0x1f8] sm:$0xff]
        %v1844 = vld [vmem:[%s1779 + $0x200] sm:$0xff]
        %v1845 = vld [vmem:[%s1779 + $0x208] sm:$0xff]
        %v1846 = vld [vmem:[%s1779 + $0x210] sm:$0xff]
        %v1847 = vld [vmem:[%s1779 + $0x218] sm:$0xff]
        %v1848 = vld [vmem:[%s1779 + $0x220] sm:$0xff]
        %v1849 = vld [vmem:[%s1779 + $0x228] sm:$0xff]
        %v1850 = vld [vmem:[%s1779 + $0x230] sm:$0xff]
        %v1851 = vld [vmem:[%s1779 + $0x238] sm:$0xff]
        %v1852 = vld [vmem:[%s1779 + $0x240] sm:$0xff]
        %v1853 = vld [vmem:[%s1779 + $0x248] sm:$0xff]
        %v1854 = vld [vmem:[%s1779 + $0x250] sm:$0xff]
        %v1855 = vld [vmem:[%s1779 + $0x258] sm:$0xff]
        %v1856 = vld [vmem:[%s1779 + $0x260] sm:$0xff]
        %v1857 = vld [vmem:[%s1779 + $0x268] sm:$0xff]
        %v1858 = vld [vmem:[%s1779 + $0x270] sm:$0xff]
        %v1859 = vld [vmem:[%s1779 + $0x278] sm:$0xff]
        %v1860 = vld [vmem:[%s1779 + $0x280] sm:$0xff]
        %v1861 = vld [vmem:[%s1779 + $0x288] sm:$0xff]
        %v1862 = vld [vmem:[%s1779 + $0x290] sm:$0xff]
        %v1863 = vld [vmem:[%s1779 + $0x298] sm:$0xff]
        %v1864 = vld [vmem:[%s1779 + $0x2a0] sm:$0xff]
        %v1865 = vld [vmem:[%s1779 + $0x2a8] sm:$0xff]
        %v1866 = vld [vmem:[%s1779 + $0x2b0] sm:$0xff]
        %v1867 = vld [vmem:[%s1779 + $0x2b8] sm:$0xff]
        %v1868 = vld [vmem:[%s1779 + $0x2c0] sm:$0xff]
        %v1869 = vld [vmem:[%s1779 + $0x2c8] sm:$0xff]
        %v1870 = vld [vmem:[%s1779 + $0x2d0] sm:$0xff]
        %v1871 = vld [vmem:[%s1779 + $0x2d8] sm:$0xff]
        %v1872 = vld [vmem:[%s1779 + $0x2e0] sm:$0xff]
        %v1873 = vld [vmem:[%s1779 + $0x2e8] sm:$0xff]
        %v1874 = vld [vmem:[%s1779 + $0x2f0] sm:$0xff]
        %v1875 = vld [vmem:[%s1779 + $0x2f8] sm:$0xff]
        %v1876 = vld [vmem:[%s1779 + $0x300] sm:$0xff]
        %v1877 = vld [vmem:[%s1779 + $0x308] sm:$0xff]
        %v1878 = vld [vmem:[%s1779 + $0x310] sm:$0xff]
        %v1879 = vld [vmem:[%s1779 + $0x318] sm:$0xff]
        %v1880 = vld [vmem:[%s1779 + $0x320] sm:$0xff]
        %v1881 = vld [vmem:[%s1779 + $0x328] sm:$0xff]
        %v1882 = vld [vmem:[%s1779 + $0x330] sm:$0xff]
        %v1883 = vld [vmem:[%s1779 + $0x338] sm:$0xff]
        %v1884 = vld [vmem:[%s1779 + $0x340] sm:$0xff]
        %v1885 = vld [vmem:[%s1779 + $0x348] sm:$0xff]
        %v1886 = vld [vmem:[%s1779 + $0x350] sm:$0xff]
        %v1887 = vld [vmem:[%s1779 + $0x358] sm:$0xff]
        %v1888 = vld [vmem:[%s1779 + $0x360] sm:$0xff]
        %v1889 = vld [vmem:[%s1779 + $0x368] sm:$0xff]
        %v1890 = vld [vmem:[%s1779 + $0x370] sm:$0xff]
        %v1891 = vld [vmem:[%s1779 + $0x378] sm:$0xff]
        %v1892 = vld [vmem:[%s1779 + $0x380] sm:$0xff]
        %v1893 = vld [vmem:[%s1779 + $0x388] sm:$0xff]
        %v1894 = vld [vmem:[%s1779 + $0x390] sm:$0xff]
        %v1895 = vld [vmem:[%s1779 + $0x398] sm:$0xff]
        %v1896 = vld [vmem:[%s1779 + $0x3a0] sm:$0xff]
        %v1897 = vld [vmem:[%s1779 + $0x3a8] sm:$0xff]
        %v1898 = vld [vmem:[%s1779 + $0x3b0] sm:$0xff]
        %v1899 = vld [vmem:[%s1779 + $0x3b8] sm:$0xff]
        %v1900 = vld [vmem:[%s1779 + $0x3c0] sm:$0xff]
        %v1901 = vld [vmem:[%s1779 + $0x3c8] sm:$0xff]
        %v1902 = vld [vmem:[%s1779 + $0x3d0] sm:$0xff]
        %v1903 = vld [vmem:[%s1779 + $0x3d8] sm:$0xff]
        %v1904 = vld [vmem:[%s1779 + $0x3e0] sm:$0xff]
        %v1905 = vld [vmem:[%s1779 + $0x3e8] sm:$0xff]
        %v1906 = vld [vmem:[%s1779 + $0x3f0] sm:$0xff]
        %v1907 = vld [vmem:[%s1779 + $0x3f8] sm:$0xff]
        %s1908 = scalar_lea.vmem %s7, 8
        %v1909 = vld [vmem:[%s1908] sm:$0xff]
        %v1911 = vlaneseq
        %v1912 = vshrl.u32 %v1911, 7
        %v1913 = vsub.s32 0, %v1912
        %v1914 = vrot.slane %v1909, %v1913
        %v1915 = vlaneseq
        %v1916 = vshrl.u32 %v1915, 7
        %v1917 = vsub.s32 1, %v1916
        %v1918 = vrot.slane %v1909, %v1917
        %v1919 = vlaneseq
        %v1920 = vshrl.u32 %v1919, 7
        %v1921 = vsub.s32 2, %v1920
        %v1922 = vrot.slane %v1909, %v1921
        %v1923 = vlaneseq
        %v1924 = vshrl.u32 %v1923, 7
        %v1925 = vsub.s32 3, %v1924
        %v1926 = vrot.slane %v1909, %v1925
        %v1927 = vlaneseq
        %v1928 = vshrl.u32 %v1927, 7
        %v1929 = vsub.s32 4, %v1928
        %v1930 = vrot.slane %v1909, %v1929
        %v1931 = vlaneseq
        %v1932 = vshrl.u32 %v1931, 7
        %v1933 = vsub.s32 5, %v1932
        %v1934 = vrot.slane %v1909, %v1933
        %v1935 = vlaneseq
        %v1936 = vshrl.u32 %v1935, 7
        %v1937 = vsub.s32 6, %v1936
        %v1938 = vrot.slane %v1909, %v1937
        %v1939 = vlaneseq
        %v1940 = vshrl.u32 %v1939, 7
        %v1941 = vsub.s32 7, %v1940
        %v1942 = vrot.slane %v1909, %v1941
        %1951 = vmatprep.subr.mxu0 %v1781
        %1952 = vmatpush1.msra.mxu0 %v1780
        %1953 = vmatprep.subr.mxu0 %v1789
        %1954 = vmatpush1.msra.mxu0 %v1788
        %1955 = vmatprep.subr.mxu0 %v1797
        %1956 = vmatpush1.msra.mxu0 %v1796
        %1957 = vmatprep.subr.mxu0 %v1805
        %1958 = vmatpush1.msra.mxu0 %v1804
        %1959 = vmatprep.subr.mxu0 %v1813
        %1960 = vmatpush1.msra.mxu0 %v1812
        %1961 = vmatprep.subr.mxu0 %v1821
        %1962 = vmatpush1.msra.mxu0 %v1820
        %1963 = vmatprep.subr.mxu0 %v1829
        %1964 = vmatpush1.msra.mxu0 %v1828
        %1965 = vmatprep.subr.mxu0 %v1837
        %1966 = vmatpush1.msra.mxu0 %v1836
        %1967 = vmatprep.subr.mxu0 %v1845
        %1968 = vmatpush1.msra.mxu0 %v1844
        %1969 = vmatprep.subr.mxu0 %v1853
        %1970 = vmatpush1.msra.mxu0 %v1852
        %1971 = vmatprep.subr.mxu0 %v1861
        %1972 = vmatpush1.msra.mxu0 %v1860
        %1973 = vmatprep.subr.mxu0 %v1869
        %1974 = vmatpush1.msra.mxu0 %v1868
        %1975 = vmatprep.subr.mxu0 %v1877
        %1976 = vmatpush1.msra.mxu0 %v1876
        %1977 = vmatprep.subr.mxu0 %v1885
        %1978 = vmatpush1.msra.mxu0 %v1884
        %1979 = vmatprep.subr.mxu0 %v1893
        %1980 = vmatpush1.msra.mxu0 %v1892
        %1981 = vmatprep.subr.mxu0 %v1901
        %1982 = vmatpush1.msra.mxu0 %v1900
        %1983 = vmatprep.subr.mxu0 0.0
        %1984 = vmatpush1.msra.mxu0 0.0
        %1985 = vmatprep.subr.mxu0 0.0
        %1986 = vmatpush1.msra.mxu0 0.0
        %1987 = vmatprep.subr.mxu0 0.0
        %1988 = vmatpush1.msra.mxu0 0.0
        %1989 = vmatprep.subr.mxu0 0.0
        %1990 = vmatpush1.msra.mxu0 0.0
        %1991 = vmatprep.subr.mxu0 0.0
        %1992 = vmatpush1.msra.mxu0 0.0
        %1993 = vmatprep.subr.mxu0 0.0
        %1994 = vmatpush1.msra.mxu0 0.0
        %1995 = vmatprep.subr.mxu0 0.0
        %1996 = vmatpush1.msra.mxu0 0.0
        %1997 = vmatprep.subr.mxu0 0.0
        %1998 = vmatpush1.msra.mxu0 0.0
        %1999 = vmatprep.subr.mxu0 0.0
        %2000 = vmatpush1.msra.mxu0 0.0
        %2001 = vmatprep.subr.mxu0 0.0
        %2002 = vmatpush1.msra.mxu0 0.0
        %2003 = vmatprep.subr.mxu0 0.0
        %2004 = vmatpush1.msra.mxu0 0.0
        %2005 = vmatprep.subr.mxu0 0.0
        %2006 = vmatpush1.msra.mxu0 0.0
        %2007 = vmatprep.subr.mxu0 0.0
        %2008 = vmatpush1.msra.mxu0 0.0
        %2009 = vmatprep.subr.mxu0 0.0
        %2010 = vmatpush1.msra.mxu0 0.0
        %2011 = vmatprep.subr.mxu0 0.0
        %2012 = vmatpush1.msra.mxu0 0.0
        %2013 = vmatprep.subr.mxu0 0.0
        %2014 = vmatpush1.msra.mxu0 0.0
        %2015 = vmatprep.mubr.f32.mxu0 0.0
        %2016 = vmatmul.mubr.f32.gmra.mrb[0].mxu0 %v1777
        %v2017 = vpop.f32.mrb[0].mxu0
        %v2018 = vadd.f32 %v1914, %v2017
        %v2019 = vpop.f32.mrb[0].mxu0
        %v2020 = vadd.f32 %v1918, %v2019
        %2021 = vmatprep.mubr.f32.mxu0 0.0
        %2022 = vmatmul.mubr.f32.gmra.mrb[0].mxu0 %v1778
        %v2023 = vpop.f32.mrb[0].mxu0
        %v2024 = vadd.f32 %v1914, %v2023
        %v2025 = vpop.f32.mrb[0].mxu0
        %v2026 = vadd.f32 %v1918, %v2025
        %2027 = vdwg.mxu0
        %2028 = vmatprep.subr.mxu0 %v1783
        %2029 = vmatpush1.msra.mxu0 %v1782
        %2030 = vmatprep.subr.mxu0 %v1791
        %2031 = vmatpush1.msra.mxu0 %v1790
        %2032 = vmatprep.subr.mxu0 %v1799
        %2033 = vmatpush1.msra.mxu0 %v1798
        %2034 = vmatprep.subr.mxu0 %v1807
        %2035 = vmatpush1.msra.mxu0 %v1806
        %2036 = vmatprep.subr.mxu0 %v1815
        %2037 = vmatpush1.msra.mxu0 %v1814
        %2038 = vmatprep.subr.mxu0 %v1823
        %2039 = vmatpush1.msra.mxu0 %v1822
        %2040 = vmatprep.subr.mxu0 %v1831
        %2041 = vmatpush1.msra.mxu0 %v1830
        %2042 = vmatprep.subr.mxu0 %v1839
        %2043 = vmatpush1.msra.mxu0 %v1838
        %2044 = vmatprep.subr.mxu0 %v1847
        %2045 = vmatpush1.msra.mxu0 %v1846
        %2046 = vmatprep.subr.mxu0 %v1855
        %2047 = vmatpush1.msra.mxu0 %v1854
        %2048 = vmatprep.subr.mxu0 %v1863
        %2049 = vmatpush1.msra.mxu0 %v1862
        %2050 = vmatprep.subr.mxu0 %v1871
        %2051 = vmatpush1.msra.mxu0 %v1870
        %2052 = vmatprep.subr.mxu0 %v1879
        %2053 = vmatpush1.msra.mxu0 %v1878
        %2054 = vmatprep.subr.mxu0 %v1887
        %2055 = vmatpush1.msra.mxu0 %v1886
        %2056 = vmatprep.subr.mxu0 %v1895
        %2057 = vmatpush1.msra.mxu0 %v1894
        %2058 = vmatprep.subr.mxu0 %v1903
        %2059 = vmatpush1.msra.mxu0 %v1902
        %2060 = vmatprep.subr.mxu0 0.0
        %2061 = vmatpush1.msra.mxu0 0.0
        %2062 = vmatprep.subr.mxu0 0.0
        %2063 = vmatpush1.msra.mxu0 0.0
        %2064 = vmatprep.subr.mxu0 0.0
        %2065 = vmatpush1.msra.mxu0 0.0
        %2066 = vmatprep.subr.mxu0 0.0
        %2067 = vmatpush1.msra.mxu0 0.0
        %2068 = vmatprep.subr.mxu0 0.0
        %2069 = vmatpush1.msra.mxu0 0.0
        %2070 = vmatprep.subr.mxu0 0.0
        %2071 = vmatpush1.msra.mxu0 0.0
        %2072 = vmatprep.subr.mxu0 0.0
        %2073 = vmatpush1.msra.mxu0 0.0
        %2074 = vmatprep.subr.mxu0 0.0
        %2075 = vmatpush1.msra.mxu0 0.0
        %2076 = vmatprep.subr.mxu0 0.0
        %2077 = vmatpush1.msra.mxu0 0.0
        %2078 = vmatprep.subr.mxu0 0.0
        %2079 = vmatpush1.msra.mxu0 0.0
        %2080 = vmatprep.subr.mxu0 0.0
        %2081 = vmatpush1.msra.mxu0 0.0
        %2082 = vmatprep.subr.mxu0 0.0
        %2083 = vmatpush1.msra.mxu0 0.0
        %2084 = vmatprep.subr.mxu0 0.0
        %2085 = vmatpush1.msra.mxu0 0.0
        %2086 = vmatprep.subr.mxu0 0.0
        %2087 = vmatpush1.msra.mxu0 0.0
        %2088 = vmatprep.subr.mxu0 0.0
        %2089 = vmatpush1.msra.mxu0 0.0
        %2090 = vmatprep.subr.mxu0 0.0
        %2091 = vmatpush1.msra.mxu0 0.0
        %2092 = vmatprep.mubr.f32.mxu0 0.0
        %2093 = vmatmul.mubr.f32.gmra.mrb[0].mxu0 %v1777
        %v2094 = vpop.f32.mrb[0].mxu0
        %v2095 = vadd.f32 %v1922, %v2094
        %v2096 = vpop.f32.mrb[0].mxu0
        %v2097 = vadd.f32 %v1926, %v2096
        %2098 = vmatprep.mubr.f32.mxu0 0.0
        %2099 = vmatmul.mubr.f32.gmra.mrb[0].mxu0 %v1778
        %v2100 = vpop.f32.mrb[0].mxu0
        %v2101 = vadd.f32 %v1922, %v2100
        %v2102 = vpop.f32.mrb[0].mxu0
        %v2103 = vadd.f32 %v1926, %v2102
        %2104 = vdwg.mxu0
        %2105 = vmatprep.subr.mxu0 %v1785
        %2106 = vmatpush1.msra.mxu0 %v1784
        %2107 = vmatprep.subr.mxu0 %v1793
        %2108 = vmatpush1.msra.mxu0 %v1792
        %2109 = vmatprep.subr.mxu0 %v1801
        %2110 = vmatpush1.msra.mxu0 %v1800
        %2111 = vmatprep.subr.mxu0 %v1809
        %2112 = vmatpush1.msra.mxu0 %v1808
        %2113 = vmatprep.subr.mxu0 %v1817
        %2114 = vmatpush1.msra.mxu0 %v1816
        %2115 = vmatprep.subr.mxu0 %v1825
        %2116 = vmatpush1.msra.mxu0 %v1824
        %2117 = vmatprep.subr.mxu0 %v1833
        %2118 = vmatpush1.msra.mxu0 %v1832
        %2119 = vmatprep.subr.mxu0 %v1841
        %2120 = vmatpush1.msra.mxu0 %v1840
        %2121 = vmatprep.subr.mxu0 %v1849
        %2122 = vmatpush1.msra.mxu0 %v1848
        %2123 = vmatprep.subr.mxu0 %v1857
        %2124 = vmatpush1.msra.mxu0 %v1856
        %2125 = vmatprep.subr.mxu0 %v1865
        %2126 = vmatpush1.msra.mxu0 %v1864
        %2127 = vmatprep.subr.mxu0 %v1873
        %2128 = vmatpush1.msra.mxu0 %v1872
        %2129 = vmatprep.subr.mxu0 %v1881
        %2130 = vmatpush1.msra.mxu0 %v1880
        %2131 = vmatprep.subr.mxu0 %v1889
        %2132 = vmatpush1.msra.mxu0 %v1888
        %2133 = vmatprep.subr.mxu0 %v1897
        %2134 = vmatpush1.msra.mxu0 %v1896
        %2135 = vmatprep.subr.mxu0 %v1905
        %2136 = vmatpush1.msra.mxu0 %v1904
        %2137 = vmatprep.subr.mxu0 0.0
        %2138 = vmatpush1.msra.mxu0 0.0
        %2139 = vmatprep.subr.mxu0 0.0
        %2140 = vmatpush1.msra.mxu0 0.0
        %2141 = vmatprep.subr.mxu0 0.0
        %2142 = vmatpush1.msra.mxu0 0.0
        %2143 = vmatprep.subr.mxu0 0.0
        %2144 = vmatpush1.msra.mxu0 0.0
        %2145 = vmatprep.subr.mxu0 0.0
        %2146 = vmatpush1.msra.mxu0 0.0
        %2147 = vmatprep.subr.mxu0 0.0
        %2148 = vmatpush1.msra.mxu0 0.0
        %2149 = vmatprep.subr.mxu0 0.0
        %2150 = vmatpush1.msra.mxu0 0.0
        %2151 = vmatprep.subr.mxu0 0.0
        %2152 = vmatpush1.msra.mxu0 0.0
        %2153 = vmatprep.subr.mxu0 0.0
        %2154 = vmatpush1.msra.mxu0 0.0
        %2155 = vmatprep.subr.mxu0 0.0
        %2156 = vmatpush1.msra.mxu0 0.0
        %2157 = vmatprep.subr.mxu0 0.0
        %2158 = vmatpush1.msra.mxu0 0.0
        %2159 = vmatprep.subr.mxu0 0.0
        %2160 = vmatpush1.msra.mxu0 0.0
        %2161 = vmatprep.subr.mxu0 0.0
        %2162 = vmatpush1.msra.mxu0 0.0
        %2163 = vmatprep.subr.mxu0 0.0
        %2164 = vmatpush1.msra.mxu0 0.0
        %2165 = vmatprep.subr.mxu0 0.0
        %2166 = vmatpush1.msra.mxu0 0.0
        %2167 = vmatprep.subr.mxu0 0.0
        %2168 = vmatpush1.msra.mxu0 0.0
        %2169 = vmatprep.mubr.f32.mxu0 0.0
        %2170 = vmatmul.mubr.f32.gmra.mrb[0].mxu0 %v1777
        %v2171 = vpop.f32.mrb[0].mxu0
        %v2172 = vadd.f32 %v1930, %v2171
        %v2173 = vpop.f32.mrb[0].mxu0
        %v2174 = vadd.f32 %v1934, %v2173
        %2175 = vmatprep.mubr.f32.mxu0 0.0
        %2176 = vmatmul.mubr.f32.gmra.mrb[0].mxu0 %v1778
        %v2177 = vpop.f32.mrb[0].mxu0
        %v2178 = vadd.f32 %v1930, %v2177
        %v2179 = vpop.f32.mrb[0].mxu0
        %v2180 = vadd.f32 %v1934, %v2179
        %2181 = vdwg.mxu0
        %2182 = vmatprep.subr.mxu0 %v1787
        %2183 = vmatpush1.msra.mxu0 %v1786
        %2184 = vmatprep.subr.mxu0 %v1795
        %2185 = vmatpush1.msra.mxu0 %v1794
        %2186 = vmatprep.subr.mxu0 %v1803
        %2187 = vmatpush1.msra.mxu0 %v1802
        %2188 = vmatprep.subr.mxu0 %v1811
        %2189 = vmatpush1.msra.mxu0 %v1810
        %2190 = vmatprep.subr.mxu0 %v1819
        %2191 = vmatpush1.msra.mxu0 %v1818
        %2192 = vmatprep.subr.mxu0 %v1827
        %2193 = vmatpush1.msra.mxu0 %v1826
        %2194 = vmatprep.subr.mxu0 %v1835
        %2195 = vmatpush1.msra.mxu0 %v1834
        %2196 = vmatprep.subr.mxu0 %v1843
        %2197 = vmatpush1.msra.mxu0 %v1842
        %2198 = vmatprep.subr.mxu0 %v1851
        %2199 = vmatpush1.msra.mxu0 %v1850
        %2200 = vmatprep.subr.mxu0 %v1859
        %2201 = vmatpush1.msra.mxu0 %v1858
        %2202 = vmatprep.subr.mxu0 %v1867
        %2203 = vmatpush1.msra.mxu0 %v1866
        %2204 = vmatprep.subr.mxu0 %v1875
        %2205 = vmatpush1.msra.mxu0 %v1874
        %2206 = vmatprep.subr.mxu0 %v1883
        %2207 = vmatpush1.msra.mxu0 %v1882
        %2208 = vmatprep.subr.mxu0 %v1891
        %2209 = vmatpush1.msra.mxu0 %v1890
        %2210 = vmatprep.subr.mxu0 %v1899
        %2211 = vmatpush1.msra.mxu0 %v1898
        %2212 = vmatprep.subr.mxu0 %v1907
        %2213 = vmatpush1.msra.mxu0 %v1906
        %2214 = vmatprep.subr.mxu0 0.0
        %2215 = vmatpush1.msra.mxu0 0.0
        %2216 = vmatprep.subr.mxu0 0.0
        %2217 = vmatpush1.msra.mxu0 0.0
        %2218 = vmatprep.subr.mxu0 0.0
        %2219 = vmatpush1.msra.mxu0 0.0
        %2220 = vmatprep.subr.mxu0 0.0
        %2221 = vmatpush1.msra.mxu0 0.0
        %2222 = vmatprep.subr.mxu0 0.0
        %2223 = vmatpush1.msra.mxu0 0.0
        %2224 = vmatprep.subr.mxu0 0.0
        %2225 = vmatpush1.msra.mxu0 0.0
        %2226 = vmatprep.subr.mxu0 0.0
        %2227 = vmatpush1.msra.mxu0 0.0
        %2228 = vmatprep.subr.mxu0 0.0
        %2229 = vmatpush1.msra.mxu0 0.0
        %2230 = vmatprep.subr.mxu0 0.0
        %2231 = vmatpush1.msra.mxu0 0.0
        %2232 = vmatprep.subr.mxu0 0.0
        %2233 = vmatpush1.msra.mxu0 0.0
        %2234 = vmatprep.subr.mxu0 0.0
        %2235 = vmatpush1.msra.mxu0 0.0
        %2236 = vmatprep.subr.mxu0 0.0
        %2237 = vmatpush1.msra.mxu0 0.0
        %2238 = vmatprep.subr.mxu0 0.0
        %2239 = vmatpush1.msra.mxu0 0.0
        %2240 = vmatprep.subr.mxu0 0.0
        %2241 = vmatpush1.msra.mxu0 0.0
        %2242 = vmatprep.subr.mxu0 0.0
        %2243 = vmatpush1.msra.mxu0 0.0
        %2244 = vmatprep.subr.mxu0 0.0
        %2245 = vmatpush1.msra.mxu0 0.0
        %2246 = vmatprep.mubr.f32.mxu0 0.0
        %2247 = vmatmul.mubr.f32.gmra.mrb[0].mxu0 %v1777
        %v2248 = vpop.f32.mrb[0].mxu0
        %v2249 = vadd.f32 %v1938, %v2248
        %v2250 = vpop.f32.mrb[0].mxu0
        %v2251 = vadd.f32 %v1942, %v2250
        %2252 = vmatprep.mubr.f32.mxu0 0.0
        %2253 = vmatmul.mubr.f32.gmra.mrb[0].mxu0 %v1778
        %v2254 = vpop.f32.mrb[0].mxu0
        %v2255 = vadd.f32 %v1938, %v2254
        %v2256 = vpop.f32.mrb[0].mxu0
        %v2257 = vadd.f32 %v1942, %v2256
        %2258 = vdwg.mxu0
        %v2259 = vmax.f32 %v2018, 0.0
        %v2260 = vmax.f32 %v2020, 0.0
        %v2261 = vmax.f32 %v2095, 0.0
        %v2262 = vmax.f32 %v2097, 0.0
        %v2263 = vmax.f32 %v2172, 0.0
        %v2264 = vmax.f32 %v2174, 0.0
        %v2265 = vmax.f32 %v2249, 0.0
        %v2266 = vmax.f32 %v2251, 0.0
        %v2267 = vmax.f32 %v2024, 0.0
        %v2268 = vmax.f32 %v2026, 0.0
        %v2269 = vmax.f32 %v2101, 0.0
        %v2270 = vmax.f32 %v2103, 0.0
        %v2271 = vmax.f32 %v2178, 0.0
        %v2272 = vmax.f32 %v2180, 0.0
        %v2273 = vmax.f32 %v2255, 0.0
        %v2274 = vmax.f32 %v2257, 0.0
        %s2275 = scalar_lea.vmem [#allocation14], 1024
        %v2276 = vld [vmem:[%s2275] sm:$0xff]
        %v2277 = vld [vmem:[%s2275 + $0x8] sm:$0xff]
        %v2278 = vld [vmem:[%s2275 + $0x10] sm:$0xff]
        %v2279 = vld [vmem:[%s2275 + $0x18] sm:$0xff]
        %v2280 = vld [vmem:[%s2275 + $0x20] sm:$0xff]
        %v2281 = vld [vmem:[%s2275 + $0x28] sm:$0xff]
        %v2282 = vld [vmem:[%s2275 + $0x30] sm:$0xff]
        %v2283 = vld [vmem:[%s2275 + $0x38] sm:$0xff]
        %v2284 = vld [vmem:[%s2275 + $0x40] sm:$0xff]
        %v2285 = vld [vmem:[%s2275 + $0x48] sm:$0xff]
        %v2286 = vld [vmem:[%s2275 + $0x50] sm:$0xff]
        %v2287 = vld [vmem:[%s2275 + $0x58] sm:$0xff]
        %v2288 = vld [vmem:[%s2275 + $0x60] sm:$0xff]
        %v2289 = vld [vmem:[%s2275 + $0x68] sm:$0xff]
        %v2290 = vld [vmem:[%s2275 + $0x70] sm:$0xff]
        %v2291 = vld [vmem:[%s2275 + $0x78] sm:$0xff]
        %v2292 = vld [vmem:[%s2275 + $0x80] sm:$0xff]
        %v2293 = vld [vmem:[%s2275 + $0x88] sm:$0xff]
        %v2294 = vld [vmem:[%s2275 + $0x90] sm:$0xff]
        %v2295 = vld [vmem:[%s2275 + $0x98] sm:$0xff]
        %v2296 = vld [vmem:[%s2275 + $0xa0] sm:$0xff]
        %v2297 = vld [vmem:[%s2275 + $0xa8] sm:$0xff]
        %v2298 = vld [vmem:[%s2275 + $0xb0] sm:$0xff]
        %v2299 = vld [vmem:[%s2275 + $0xb8] sm:$0xff]
        %v2300 = vld [vmem:[%s2275 + $0xc0] sm:$0xff]
        %v2301 = vld [vmem:[%s2275 + $0xc8] sm:$0xff]
        %v2302 = vld [vmem:[%s2275 + $0xd0] sm:$0xff]
        %v2303 = vld [vmem:[%s2275 + $0xd8] sm:$0xff]
        %v2304 = vld [vmem:[%s2275 + $0xe0] sm:$0xff]
        %v2305 = vld [vmem:[%s2275 + $0xe8] sm:$0xff]
        %v2306 = vld [vmem:[%s2275 + $0xf0] sm:$0xff]
        %v2307 = vld [vmem:[%s2275 + $0xf8] sm:$0xff]
        %v2308 = vld [vmem:[%s2275 + $0x100] sm:$0xff]
        %v2309 = vld [vmem:[%s2275 + $0x108] sm:$0xff]
        %v2310 = vld [vmem:[%s2275 + $0x110] sm:$0xff]
        %v2311 = vld [vmem:[%s2275 + $0x118] sm:$0xff]
        %v2312 = vld [vmem:[%s2275 + $0x120] sm:$0xff]
        %v2313 = vld [vmem:[%s2275 + $0x128] sm:$0xff]
        %v2314 = vld [vmem:[%s2275 + $0x130] sm:$0xff]
        %v2315 = vld [vmem:[%s2275 + $0x138] sm:$0xff]
        %v2316 = vld [vmem:[%s2275 + $0x140] sm:$0xff]
        %v2317 = vld [vmem:[%s2275 + $0x148] sm:$0xff]
        %v2318 = vld [vmem:[%s2275 + $0x150] sm:$0xff]
        %v2319 = vld [vmem:[%s2275 + $0x158] sm:$0xff]
        %v2320 = vld [vmem:[%s2275 + $0x160] sm:$0xff]
        %v2321 = vld [vmem:[%s2275 + $0x168] sm:$0xff]
        %v2322 = vld [vmem:[%s2275 + $0x170] sm:$0xff]
        %v2323 = vld [vmem:[%s2275 + $0x178] sm:$0xff]
        %v2324 = vld [vmem:[%s2275 + $0x180] sm:$0xff]
        %v2325 = vld [vmem:[%s2275 + $0x188] sm:$0xff]
        %v2326 = vld [vmem:[%s2275 + $0x190] sm:$0xff]
        %v2327 = vld [vmem:[%s2275 + $0x198] sm:$0xff]
        %v2328 = vld [vmem:[%s2275 + $0x1a0] sm:$0xff]
        %v2329 = vld [vmem:[%s2275 + $0x1a8] sm:$0xff]
        %v2330 = vld [vmem:[%s2275 + $0x1b0] sm:$0xff]
        %v2331 = vld [vmem:[%s2275 + $0x1b8] sm:$0xff]
        %v2332 = vld [vmem:[%s2275 + $0x1c0] sm:$0xff]
        %v2333 = vld [vmem:[%s2275 + $0x1c8] sm:$0xff]
        %v2334 = vld [vmem:[%s2275 + $0x1d0] sm:$0xff]
        %v2335 = vld [vmem:[%s2275 + $0x1d8] sm:$0xff]
        %v2336 = vld [vmem:[%s2275 + $0x1e0] sm:$0xff]
        %v2337 = vld [vmem:[%s2275 + $0x1e8] sm:$0xff]
        %v2338 = vld [vmem:[%s2275 + $0x1f0] sm:$0xff]
        %v2339 = vld [vmem:[%s2275 + $0x1f8] sm:$0xff]
        %v2340 = vld [vmem:[%s2275 + $0x200] sm:$0xff]
        %v2341 = vld [vmem:[%s2275 + $0x208] sm:$0xff]
        %v2342 = vld [vmem:[%s2275 + $0x210] sm:$0xff]
        %v2343 = vld [vmem:[%s2275 + $0x218] sm:$0xff]
        %v2344 = vld [vmem:[%s2275 + $0x220] sm:$0xff]
        %v2345 = vld [vmem:[%s2275 + $0x228] sm:$0xff]
        %v2346 = vld [vmem:[%s2275 + $0x230] sm:$0xff]
        %v2347 = vld [vmem:[%s2275 + $0x238] sm:$0xff]
        %v2348 = vld [vmem:[%s2275 + $0x240] sm:$0xff]
        %v2349 = vld [vmem:[%s2275 + $0x248] sm:$0xff]
        %v2350 = vld [vmem:[%s2275 + $0x250] sm:$0xff]
        %v2351 = vld [vmem:[%s2275 + $0x258] sm:$0xff]
        %v2352 = vld [vmem:[%s2275 + $0x260] sm:$0xff]
        %v2353 = vld [vmem:[%s2275 + $0x268] sm:$0xff]
        %v2354 = vld [vmem:[%s2275 + $0x270] sm:$0xff]
        %v2355 = vld [vmem:[%s2275 + $0x278] sm:$0xff]
        %v2356 = vld [vmem:[%s2275 + $0x280] sm:$0xff]
        %v2357 = vld [vmem:[%s2275 + $0x288] sm:$0xff]
        %v2358 = vld [vmem:[%s2275 + $0x290] sm:$0xff]
        %v2359 = vld [vmem:[%s2275 + $0x298] sm:$0xff]
        %v2360 = vld [vmem:[%s2275 + $0x2a0] sm:$0xff]
        %v2361 = vld [vmem:[%s2275 + $0x2a8] sm:$0xff]
        %v2362 = vld [vmem:[%s2275 + $0x2b0] sm:$0xff]
        %v2363 = vld [vmem:[%s2275 + $0x2b8] sm:$0xff]
        %v2364 = vld [vmem:[%s2275 + $0x2c0] sm:$0xff]
        %v2365 = vld [vmem:[%s2275 + $0x2c8] sm:$0xff]
        %v2366 = vld [vmem:[%s2275 + $0x2d0] sm:$0xff]
        %v2367 = vld [vmem:[%s2275 + $0x2d8] sm:$0xff]
        %v2368 = vld [vmem:[%s2275 + $0x2e0] sm:$0xff]
        %v2369 = vld [vmem:[%s2275 + $0x2e8] sm:$0xff]
        %v2370 = vld [vmem:[%s2275 + $0x2f0] sm:$0xff]
        %v2371 = vld [vmem:[%s2275 + $0x2f8] sm:$0xff]
        %v2372 = vld [vmem:[%s2275 + $0x300] sm:$0xff]
        %v2373 = vld [vmem:[%s2275 + $0x308] sm:$0xff]
        %v2374 = vld [vmem:[%s2275 + $0x310] sm:$0xff]
        %v2375 = vld [vmem:[%s2275 + $0x318] sm:$0xff]
        %v2376 = vld [vmem:[%s2275 + $0x320] sm:$0xff]
        %v2377 = vld [vmem:[%s2275 + $0x328] sm:$0xff]
        %v2378 = vld [vmem:[%s2275 + $0x330] sm:$0xff]
        %v2379 = vld [vmem:[%s2275 + $0x338] sm:$0xff]
        %v2380 = vld [vmem:[%s2275 + $0x340] sm:$0xff]
        %v2381 = vld [vmem:[%s2275 + $0x348] sm:$0xff]
        %v2382 = vld [vmem:[%s2275 + $0x350] sm:$0xff]
        %v2383 = vld [vmem:[%s2275 + $0x358] sm:$0xff]
        %v2384 = vld [vmem:[%s2275 + $0x360] sm:$0xff]
        %v2385 = vld [vmem:[%s2275 + $0x368] sm:$0xff]
        %v2386 = vld [vmem:[%s2275 + $0x370] sm:$0xff]
        %v2387 = vld [vmem:[%s2275 + $0x378] sm:$0xff]
        %v2388 = vld [vmem:[%s2275 + $0x380] sm:$0xff]
        %v2389 = vld [vmem:[%s2275 + $0x388] sm:$0xff]
        %v2390 = vld [vmem:[%s2275 + $0x390] sm:$0xff]
        %v2391 = vld [vmem:[%s2275 + $0x398] sm:$0xff]
        %v2392 = vld [vmem:[%s2275 + $0x3a0] sm:$0xff]
        %v2393 = vld [vmem:[%s2275 + $0x3a8] sm:$0xff]
        %v2394 = vld [vmem:[%s2275 + $0x3b0] sm:$0xff]
        %v2395 = vld [vmem:[%s2275 + $0x3b8] sm:$0xff]
        %v2396 = vld [vmem:[%s2275 + $0x3c0] sm:$0xff]
        %v2397 = vld [vmem:[%s2275 + $0x3c8] sm:$0xff]
        %v2398 = vld [vmem:[%s2275 + $0x3d0] sm:$0xff]
        %v2399 = vld [vmem:[%s2275 + $0x3d8] sm:$0xff]
        %v2400 = vld [vmem:[%s2275 + $0x3e0] sm:$0xff]
        %v2401 = vld [vmem:[%s2275 + $0x3e8] sm:$0xff]
        %v2402 = vld [vmem:[%s2275 + $0x3f0] sm:$0xff]
        %v2403 = vld [vmem:[%s2275 + $0x3f8] sm:$0xff]
        %s2404 = scalar_lea.vmem %s9, 1
        %v2405 = vld [vmem:[%s2404] sm:$0x1]
        %v2407 = vlaneseq
        %v2408 = vshrl.u32 %v2407, 7
        %v2409 = vsub.s32 0, %v2408
        %v2410 = vrot.slane %v2405, %v2409
        %2412 = vmatprep.subr.mxu0 0.0
        %2413 = vmatpush1.msra.mxu0 %v2276
        %2414 = vmatprep.subr.mxu0 0.0
        %2415 = vmatpush1.msra.mxu0 %v2277
        %2416 = vmatprep.subr.mxu0 0.0
        %2417 = vmatpush1.msra.mxu0 %v2278
        %2418 = vmatprep.subr.mxu0 0.0
        %2419 = vmatpush1.msra.mxu0 %v2279
        %2420 = vmatprep.subr.mxu0 0.0
        %2421 = vmatpush1.msra.mxu0 %v2280
        %2422 = vmatprep.subr.mxu0 0.0
        %2423 = vmatpush1.msra.mxu0 %v2281
        %2424 = vmatprep.subr.mxu0 0.0
        %2425 = vmatpush1.msra.mxu0 %v2282
        %2426 = vmatprep.subr.mxu0 0.0
        %2427 = vmatpush1.msra.mxu0 %v2283
        %2428 = vmatprep.subr.mxu0 0.0
        %2429 = vmatpush1.msra.mxu0 %v2284
        %2430 = vmatprep.subr.mxu0 0.0
        %2431 = vmatpush1.msra.mxu0 %v2285
        %2432 = vmatprep.subr.mxu0 0.0
        %2433 = vmatpush1.msra.mxu0 %v2286
        %2434 = vmatprep.subr.mxu0 0.0
        %2435 = vmatpush1.msra.mxu0 %v2287
        %2436 = vmatprep.subr.mxu0 0.0
        %2437 = vmatpush1.msra.mxu0 %v2288
        %2438 = vmatprep.subr.mxu0 0.0
        %2439 = vmatpush1.msra.mxu0 %v2289
        %2440 = vmatprep.subr.mxu0 0.0
        %2441 = vmatpush1.msra.mxu0 %v2290
        %2442 = vmatprep.subr.mxu0 0.0
        %2443 = vmatpush1.msra.mxu0 %v2291
        %2444 = vmatprep.subr.mxu0 0.0
        %2445 = vmatpush1.msra.mxu0 %v2292
        %2446 = vmatprep.subr.mxu0 0.0
        %2447 = vmatpush1.msra.mxu0 %v2293
        %2448 = vmatprep.subr.mxu0 0.0
        %2449 = vmatpush1.msra.mxu0 %v2294
        %2450 = vmatprep.subr.mxu0 0.0
        %2451 = vmatpush1.msra.mxu0 %v2295
        %2452 = vmatprep.subr.mxu0 0.0
        %2453 = vmatpush1.msra.mxu0 %v2296
        %2454 = vmatprep.subr.mxu0 0.0
        %2455 = vmatpush1.msra.mxu0 %v2297
        %2456 = vmatprep.subr.mxu0 0.0
        %2457 = vmatpush1.msra.mxu0 %v2298
        %2458 = vmatprep.subr.mxu0 0.0
        %2459 = vmatpush1.msra.mxu0 %v2299
        %2460 = vmatprep.subr.mxu0 0.0
        %2461 = vmatpush1.msra.mxu0 %v2300
        %2462 = vmatprep.subr.mxu0 0.0
        %2463 = vmatpush1.msra.mxu0 %v2301
        %2464 = vmatprep.subr.mxu0 0.0
        %2465 = vmatpush1.msra.mxu0 %v2302
        %2466 = vmatprep.subr.mxu0 0.0
        %2467 = vmatpush1.msra.mxu0 %v2303
        %2468 = vmatprep.subr.mxu0 0.0
        %2469 = vmatpush1.msra.mxu0 %v2304
        %2470 = vmatprep.subr.mxu0 0.0
        %2471 = vmatpush1.msra.mxu0 %v2305
        %2472 = vmatprep.subr.mxu0 0.0
        %2473 = vmatpush1.msra.mxu0 %v2306
        %2474 = vmatprep.subr.mxu0 0.0
        %2475 = vmatpush1.msra.mxu0 %v2307
        %2476 = vmatprep.mubr.f32.mxu0 %v2260
        %2477 = vmatmul.mubr.f32.gmra.mrb[0].mxu0 %v2259
        %v2478 = vpop.f32.mrb[0].mxu0
        %v2479 = vadd.f32 %v2410, %v2478
        %v2480 = vpop.f32.mrb[0].mxu0
        %2481 = vmatprep.mubr.f32.mxu0 %v2268
        %2482 = vmatmul.mubr.f32.gmra.mrb[0].mxu0 %v2267
        %v2483 = vpop.f32.mrb[0].mxu0
        %v2484 = vadd.f32 %v2410, %v2483
        %v2485 = vpop.f32.mrb[0].mxu0
        %2486 = vdwg.mxu0
        %2487 = vmatprep.subr.mxu0 0.0
        %2488 = vmatpush1.msra.mxu0 %v2308
        %2489 = vmatprep.subr.mxu0 0.0
        %2490 = vmatpush1.msra.mxu0 %v2309
        %2491 = vmatprep.subr.mxu0 0.0
        %2492 = vmatpush1.msra.mxu0 %v2310
        %2493 = vmatprep.subr.mxu0 0.0
        %2494 = vmatpush1.msra.mxu0 %v2311
        %2495 = vmatprep.subr.mxu0 0.0
        %2496 = vmatpush1.msra.mxu0 %v2312
        %2497 = vmatprep.subr.mxu0 0.0
        %2498 = vmatpush1.msra.mxu0 %v2313
        %2499 = vmatprep.subr.mxu0 0.0
        %2500 = vmatpush1.msra.mxu0 %v2314
        %2501 = vmatprep.subr.mxu0 0.0
        %2502 = vmatpush1.msra.mxu0 %v2315
        %2503 = vmatprep.subr.mxu0 0.0
        %2504 = vmatpush1.msra.mxu0 %v2316
        %2505 = vmatprep.subr.mxu0 0.0
        %2506 = vmatpush1.msra.mxu0 %v2317
        %2507 = vmatprep.subr.mxu0 0.0
        %2508 = vmatpush1.msra.mxu0 %v2318
        %2509 = vmatprep.subr.mxu0 0.0
        %2510 = vmatpush1.msra.mxu0 %v2319
        %2511 = vmatprep.subr.mxu0 0.0
        %2512 = vmatpush1.msra.mxu0 %v2320
        %2513 = vmatprep.subr.mxu0 0.0
        %2514 = vmatpush1.msra.mxu0 %v2321
        %2515 = vmatprep.subr.mxu0 0.0
        %2516 = vmatpush1.msra.mxu0 %v2322
        %2517 = vmatprep.subr.mxu0 0.0
        %2518 = vmatpush1.msra.mxu0 %v2323
        %2519 = vmatprep.subr.mxu0 0.0
        %2520 = vmatpush1.msra.mxu0 %v2324
        %2521 = vmatprep.subr.mxu0 0.0
        %2522 = vmatpush1.msra.mxu0 %v2325
        %2523 = vmatprep.subr.mxu0 0.0
        %2524 = vmatpush1.msra.mxu0 %v2326
        %2525 = vmatprep.subr.mxu0 0.0
        %2526 = vmatpush1.msra.mxu0 %v2327
        %2527 = vmatprep.subr.mxu0 0.0
        %2528 = vmatpush1.msra.mxu0 %v2328
        %2529 = vmatprep.subr.mxu0 0.0
        %2530 = vmatpush1.msra.mxu0 %v2329
        %2531 = vmatprep.subr.mxu0 0.0
        %2532 = vmatpush1.msra.mxu0 %v2330
        %2533 = vmatprep.subr.mxu0 0.0
        %2534 = vmatpush1.msra.mxu0 %v2331
        %2535 = vmatprep.subr.mxu0 0.0
        %2536 = vmatpush1.msra.mxu0 %v2332
        %2537 = vmatprep.subr.mxu0 0.0
        %2538 = vmatpush1.msra.mxu0 %v2333
        %2539 = vmatprep.subr.mxu0 0.0
        %2540 = vmatpush1.msra.mxu0 %v2334
        %2541 = vmatprep.subr.mxu0 0.0
        %2542 = vmatpush1.msra.mxu0 %v2335
        %2543 = vmatprep.subr.mxu0 0.0
        %2544 = vmatpush1.msra.mxu0 %v2336
        %2545 = vmatprep.subr.mxu0 0.0
        %2546 = vmatpush1.msra.mxu0 %v2337
        %2547 = vmatprep.subr.mxu0 0.0
        %2548 = vmatpush1.msra.mxu0 %v2338
        %2549 = vmatprep.subr.mxu0 0.0
        %2550 = vmatpush1.msra.mxu0 %v2339
        %2551 = vmatprep.mubr.f32.mxu0 %v2262
        %2552 = vmatmul.mubr.f32.gmra.mrb[0].mxu0 %v2261
        %v2553 = vpop.f32.mrb[0].mxu0
        %v2554 = vadd.f32 %v2479, %v2553
        %v2555 = vpop.f32.mrb[0].mxu0
        %2556 = vmatprep.mubr.f32.mxu0 %v2270
        %2557 = vmatmul.mubr.f32.gmra.mrb[0].mxu0 %v2269
        %v2558 = vpop.f32.mrb[0].mxu0
        %v2559 = vadd.f32 %v2484, %v2558
        %v2560 = vpop.f32.mrb[0].mxu0
        %2561 = vdwg.mxu0
        %2562 = vmatprep.subr.mxu0 0.0
        %2563 = vmatpush1.msra.mxu0 %v2340
        %2564 = vmatprep.subr.mxu0 0.0
        %2565 = vmatpush1.msra.mxu0 %v2341
        %2566 = vmatprep.subr.mxu0 0.0
        %2567 = vmatpush1.msra.mxu0 %v2342
        %2568 = vmatprep.subr.mxu0 0.0
        %2569 = vmatpush1.msra.mxu0 %v2343
        %2570 = vmatprep.subr.mxu0 0.0
        %2571 = vmatpush1.msra.mxu0 %v2344
        %2572 = vmatprep.subr.mxu0 0.0
        %2573 = vmatpush1.msra.mxu0 %v2345
        %2574 = vmatprep.subr.mxu0 0.0
        %2575 = vmatpush1.msra.mxu0 %v2346
        %2576 = vmatprep.subr.mxu0 0.0
        %2577 = vmatpush1.msra.mxu0 %v2347
        %2578 = vmatprep.subr.mxu0 0.0
        %2579 = vmatpush1.msra.mxu0 %v2348
        %2580 = vmatprep.subr.mxu0 0.0
        %2581 = vmatpush1.msra.mxu0 %v2349
        %2582 = vmatprep.subr.mxu0 0.0
        %2583 = vmatpush1.msra.mxu0 %v2350
        %2584 = vmatprep.subr.mxu0 0.0
        %2585 = vmatpush1.msra.mxu0 %v2351
        %2586 = vmatprep.subr.mxu0 0.0
        %2587 = vmatpush1.msra.mxu0 %v2352
        %2588 = vmatprep.subr.mxu0 0.0
        %2589 = vmatpush1.msra.mxu0 %v2353
        %2590 = vmatprep.subr.mxu0 0.0
        %2591 = vmatpush1.msra.mxu0 %v2354
        %2592 = vmatprep.subr.mxu0 0.0
        %2593 = vmatpush1.msra.mxu0 %v2355
        %2594 = vmatprep.subr.mxu0 0.0
        %2595 = vmatpush1.msra.mxu0 %v2356
        %2596 = vmatprep.subr.mxu0 0.0
        %2597 = vmatpush1.msra.mxu0 %v2357
        %2598 = vmatprep.subr.mxu0 0.0
        %2599 = vmatpush1.msra.mxu0 %v2358
        %2600 = vmatprep.subr.mxu0 0.0
        %2601 = vmatpush1.msra.mxu0 %v2359
        %2602 = vmatprep.subr.mxu0 0.0
        %2603 = vmatpush1.msra.mxu0 %v2360
        %2604 = vmatprep.subr.mxu0 0.0
        %2605 = vmatpush1.msra.mxu0 %v2361
        %2606 = vmatprep.subr.mxu0 0.0
        %2607 = vmatpush1.msra.mxu0 %v2362
        %2608 = vmatprep.subr.mxu0 0.0
        %2609 = vmatpush1.msra.mxu0 %v2363
        %2610 = vmatprep.subr.mxu0 0.0
        %2611 = vmatpush1.msra.mxu0 %v2364
        %2612 = vmatprep.subr.mxu0 0.0
        %2613 = vmatpush1.msra.mxu0 %v2365
        %2614 = vmatprep.subr.mxu0 0.0
        %2615 = vmatpush1.msra.mxu0 %v2366
        %2616 = vmatprep.subr.mxu0 0.0
        %2617 = vmatpush1.msra.mxu0 %v2367
        %2618 = vmatprep.subr.mxu0 0.0
        %2619 = vmatpush1.msra.mxu0 %v2368
        %2620 = vmatprep.subr.mxu0 0.0
        %2621 = vmatpush1.msra.mxu0 %v2369
        %2622 = vmatprep.subr.mxu0 0.0
        %2623 = vmatpush1.msra.mxu0 %v2370
        %2624 = vmatprep.subr.mxu0 0.0
        %2625 = vmatpush1.msra.mxu0 %v2371
        %2626 = vmatprep.mubr.f32.mxu0 %v2264
        %2627 = vmatmul.mubr.f32.gmra.mrb[0].mxu0 %v2263
        %v2628 = vpop.f32.mrb[0].mxu0
        %v2629 = vadd.f32 %v2554, %v2628
        %v2630 = vpop.f32.mrb[0].mxu0
        %2631 = vmatprep.mubr.f32.mxu0 %v2272
        %2632 = vmatmul.mubr.f32.gmra.mrb[0].mxu0 %v2271
        %v2633 = vpop.f32.mrb[0].mxu0
        %v2634 = vadd.f32 %v2559, %v2633
        %v2635 = vpop.f32.mrb[0].mxu0
        %2636 = vdwg.mxu0
        %2637 = vmatprep.subr.mxu0 0.0
        %2638 = vmatpush1.msra.mxu0 %v2372
        %2639 = vmatprep.subr.mxu0 0.0
        %2640 = vmatpush1.msra.mxu0 %v2373
        %2641 = vmatprep.subr.mxu0 0.0
        %2642 = vmatpush1.msra.mxu0 %v2374
        %2643 = vmatprep.subr.mxu0 0.0
        %2644 = vmatpush1.msra.mxu0 %v2375
        %2645 = vmatprep.subr.mxu0 0.0
        %2646 = vmatpush1.msra.mxu0 %v2376
        %2647 = vmatprep.subr.mxu0 0.0
        %2648 = vmatpush1.msra.mxu0 %v2377
        %2649 = vmatprep.subr.mxu0 0.0
        %2650 = vmatpush1.msra.mxu0 %v2378
        %2651 = vmatprep.subr.mxu0 0.0
        %2652 = vmatpush1.msra.mxu0 %v2379
        %2653 = vmatprep.subr.mxu0 0.0
        %2654 = vmatpush1.msra.mxu0 %v2380
        %2655 = vmatprep.subr.mxu0 0.0
        %2656 = vmatpush1.msra.mxu0 %v2381
        %2657 = vmatprep.subr.mxu0 0.0
        %2658 = vmatpush1.msra.mxu0 %v2382
        %2659 = vmatprep.subr.mxu0 0.0
        %2660 = vmatpush1.msra.mxu0 %v2383
        %2661 = vmatprep.subr.mxu0 0.0
        %2662 = vmatpush1.msra.mxu0 %v2384
        %2663 = vmatprep.subr.mxu0 0.0
        %2664 = vmatpush1.msra.mxu0 %v2385
        %2665 = vmatprep.subr.mxu0 0.0
        %2666 = vmatpush1.msra.mxu0 %v2386
        %2667 = vmatprep.subr.mxu0 0.0
        %2668 = vmatpush1.msra.mxu0 %v2387
        %2669 = vmatprep.subr.mxu0 0.0
        %2670 = vmatpush1.msra.mxu0 %v2388
        %2671 = vmatprep.subr.mxu0 0.0
        %2672 = vmatpush1.msra.mxu0 %v2389
        %2673 = vmatprep.subr.mxu0 0.0
        %2674 = vmatpush1.msra.mxu0 %v2390
        %2675 = vmatprep.subr.mxu0 0.0
        %2676 = vmatpush1.msra.mxu0 %v2391
        %2677 = vmatprep.subr.mxu0 0.0
        %2678 = vmatpush1.msra.mxu0 %v2392
        %2679 = vmatprep.subr.mxu0 0.0
        %2680 = vmatpush1.msra.mxu0 %v2393
        %2681 = vmatprep.subr.mxu0 0.0
        %2682 = vmatpush1.msra.mxu0 %v2394
        %2683 = vmatprep.subr.mxu0 0.0
        %2684 = vmatpush1.msra.mxu0 %v2395
        %2685 = vmatprep.subr.mxu0 0.0
        %2686 = vmatpush1.msra.mxu0 %v2396
        %2687 = vmatprep.subr.mxu0 0.0
        %2688 = vmatpush1.msra.mxu0 %v2397
        %2689 = vmatprep.subr.mxu0 0.0
        %2690 = vmatpush1.msra.mxu0 %v2398
        %2691 = vmatprep.subr.mxu0 0.0
        %2692 = vmatpush1.msra.mxu0 %v2399
        %2693 = vmatprep.subr.mxu0 0.0
        %2694 = vmatpush1.msra.mxu0 %v2400
        %2695 = vmatprep.subr.mxu0 0.0
        %2696 = vmatpush1.msra.mxu0 %v2401
        %2697 = vmatprep.subr.mxu0 0.0
        %2698 = vmatpush1.msra.mxu0 %v2402
        %2699 = vmatprep.subr.mxu0 0.0
        %2700 = vmatpush1.msra.mxu0 %v2403
        %2701 = vmatprep.mubr.f32.mxu0 %v2266
        %2702 = vmatmul.mubr.f32.gmra.mrb[0].mxu0 %v2265
        %v2703 = vpop.f32.mrb[0].mxu0
        %v2704 = vadd.f32 %v2629, %v2703
        %v2705 = vpop.f32.mrb[0].mxu0
        %2706 = vmatprep.mubr.f32.mxu0 %v2274
        %2707 = vmatmul.mubr.f32.gmra.mrb[0].mxu0 %v2273
        %v2708 = vpop.f32.mrb[0].mxu0
        %v2709 = vadd.f32 %v2634, %v2708
        %v2710 = vpop.f32.mrb[0].mxu0
        %2711 = vdwg.mxu0
        %v2712 = vadd.f32 %v2704, %v1767
        %v2713 = vadd.f32 %v2709, %v1768
        %v2714 = vld [vmem:[%s10] sm:$0xff]
        %v2715 = vld [vmem:[%s11] sm:$0xff]
        %v2717 = vsel %vm648, %v2714, 0
        %2719 = vmatprep.subr.mxu0 0.0
        %2720 = vmatpush1.msra.mxu0 %v2712
        %2721 = vmatprep.subr.mxu0 0.0
        %2722 = vmatpush1.msra.mxu0 %v2713
        %2723 = vmatprep.subr.mxu0 0.0
        %2724 = vmatpush1.msra.mxu0 0.0
        %2725 = vmatprep.subr.mxu0 0.0
        %2726 = vmatpush1.msra.mxu0 0.0
        %2727 = vmatprep.subr.mxu0 0.0
        %2728 = vmatpush1.msra.mxu0 0.0
        %2729 = vmatprep.subr.mxu0 0.0
        %2730 = vmatpush1.msra.mxu0 0.0
        %2731 = vmatprep.subr.mxu0 0.0
        %2732 = vmatpush1.msra.mxu0 0.0
        %2733 = vmatprep.subr.mxu0 0.0
        %2734 = vmatpush1.msra.mxu0 0.0
        %2735 = vmatprep.subr.mxu0 0.0
        %2736 = vmatpush1.msra.mxu0 0.0
        %2737 = vmatprep.subr.mxu0 0.0
        %2738 = vmatpush1.msra.mxu0 0.0
        %2739 = vmatprep.subr.mxu0 0.0
        %2740 = vmatpush1.msra.mxu0 0.0
        %2741 = vmatprep.subr.mxu0 0.0
        %2742 = vmatpush1.msra.mxu0 0.0
        %2743 = vmatprep.subr.mxu0 0.0
        %2744 = vmatpush1.msra.mxu0 0.0
        %2745 = vmatprep.subr.mxu0 0.0
        %2746 = vmatpush1.msra.mxu0 0.0
        %2747 = vmatprep.subr.mxu0 0.0
        %2748 = vmatpush1.msra.mxu0 0.0
        %2749 = vmatprep.subr.mxu0 0.0
        %2750 = vmatpush1.msra.mxu0 0.0
        %2751 = vmatprep.subr.mxu0 0.0
        %2752 = vmatpush1.msra.mxu0 0.0
        %2753 = vmatprep.subr.mxu0 0.0
        %2754 = vmatpush1.msra.mxu0 0.0
        %2755 = vmatprep.subr.mxu0 0.0
        %2756 = vmatpush1.msra.mxu0 0.0
        %2757 = vmatprep.subr.mxu0 0.0
        %2758 = vmatpush1.msra.mxu0 0.0
        %2759 = vmatprep.subr.mxu0 0.0
        %2760 = vmatpush1.msra.mxu0 0.0
        %2761 = vmatprep.subr.mxu0 0.0
        %2762 = vmatpush1.msra.mxu0 0.0
        %2763 = vmatprep.subr.mxu0 0.0
        %2764 = vmatpush1.msra.mxu0 0.0
        %2765 = vmatprep.subr.mxu0 0.0
        %2766 = vmatpush1.msra.mxu0 0.0
        %2767 = vmatprep.subr.mxu0 0.0
        %2768 = vmatpush1.msra.mxu0 0.0
        %2769 = vmatprep.subr.mxu0 0.0
        %2770 = vmatpush1.msra.mxu0 0.0
        %2771 = vmatprep.subr.mxu0 0.0
        %2772 = vmatpush1.msra.mxu0 0.0
        %2773 = vmatprep.subr.mxu0 0.0
        %2774 = vmatpush1.msra.mxu0 0.0
        %2775 = vmatprep.subr.mxu0 0.0
        %2776 = vmatpush1.msra.mxu0 0.0
        %2777 = vmatprep.subr.mxu0 0.0
        %2778 = vmatpush1.msra.mxu0 0.0
        %2779 = vmatprep.subr.mxu0 0.0
        %2780 = vmatpush1.msra.mxu0 0.0
        %2781 = vmatprep.subr.mxu0 0.0
        %2782 = vmatpush1.msra.mxu0 0.0
        %2783 = vmatprep.mubr.f32.mxu0 0.0
        %2784 = vmatmul.mubr.f32.gmra.mrb[0].mxu0 %v2717
        %v2785 = vpop.f32.mrb[0].mxu0
        %v2786 = vadd.f32 %v2715, %v2785
        %v2787 = vpop.f32.mrb[0].mxu0
        %2788 = vdwg.mxu0
        %v2789 = vadd.f32 %v589, 1e-10
        %v2790 = vrcp.pop %v2789
        %v2791 = vmul.f32 %v619, %v2790
        %v2792 = vmul.f32 %v590, %v2791
        %v2793 = vsub.f32 %v599, %v2792
        %v2794 = vlaneseq
        %v2795 = vshrl.u32 %v2794, 7
        %v2796 = vsub.s32 0, %v2795
        %v2797 = vrot.slane %v2791, %v2796
        %v2798 = vmul.f32 %v2786, %v2797
        %v2799 = vlaneseq
        %v2800 = vshrl.u32 %v2799, 7
        %v2801 = vsub.s32 0, %v2800
        %v2802 = vrot.slane %v2793, %v2801
        %v2803 = vadd.f32 %v2798, %v2802
        %2804 = vst [vmem:[%s586] sm:$0xff] %v2803
        %s2805 = sand.u32 %s342, 1
        %s2806 = scalar_lea.sflag [#allocation4], %s2805
        %s2807 = sand.u32 %s342, 1
        %s2808 = smul.addr %s2807, 8
        %s2809 = scalar_lea.vmem [#allocation16], %s2808
        // Predicated region
        $region109: #{tpu_custom_call.1} parent=75 // pred_check
          %p2810 = pneg %p352
        $region110: #{tpu_custom_call.1} parent=75 // pred_check_branch
          %2812 = sbr.rel (%p2810) target = $region112
        $region111: #{tpu_custom_call.1} parent=75 // pred_region
          %s2814 = ssub.s32 128, 128
          %2815 = vsyncadd %s2806, %s2814
          %s2816 = smul.addr %s35, 128
          %s2817 = scalar_lea.hbm %s14, %s2816
          %s2819 = sshll.u32 %s2809, 4
          %s2820 = int_to_ptr.vmem [resolvable:$true] %s2819
          %2822 = dma.vmem_to_hbm [thread:$0]  %s2820, 128, %s2817, %s2806
        $region112: #{tpu_custom_call.1} parent=75 // pred_fallthru
          _
      $region76: #{tpu_custom_call.1} parent=5 // pred_fallthru
        _
      %p2823 = scmp.le.s32.totalorder 2, %s30
      // Predicated region
      $region113: #{tpu_custom_call.1} parent=5 // pred_check
        %p2824 = pneg %p2823
      $region114: #{tpu_custom_call.1} parent=5 // pred_check_branch
        %2826 = sbr.rel (%p2824) target = $region116
      $region115: #{tpu_custom_call.1} parent=5 // pred_region
        %s2827 = ssub.s32 %s30, 2
        // Predicated region
        $region117: #{tpu_custom_call.1} parent=115 // pred_check
          %p2828 = pneg %p358
        $region118: #{tpu_custom_call.1} parent=115 // pred_check_branch
          %2830 = sbr.rel (%p2828) target = $region120
        $region119: #{tpu_custom_call.1} parent=115 // pred_region
          %s2831 = sand.u32 %s343, 1
          %s2832 = scalar_lea.sflag [#allocation4], %s2831
          %s2833 = sand.u32 %s343, 1
          %s2834 = smul.addr %s2833, 8
          %s2835 = scalar_lea.vmem [#allocation16], %s2834
          %2836 = dma.done %s2832, 128
        $region120: #{tpu_custom_call.1} parent=115 // pred_fallthru
          _
      $region116: #{tpu_custom_call.1} parent=5 // pred_fallthru
        _
    $region6: #{tpu_custom_call.1} parent=1 // loop_footer
      %s34 = sadd.s32 1, %s30
    $region7: #{tpu_custom_call.1} parent=1 // loop_footer_branch
      %29 = sbr.rel target = $region3
    $region8: #{tpu_custom_call.1} parent=1 // loop_exit
      _
    %2837 = vsyncpa [#allocation3], 1
    %s2838 = scalar_lea.sflag [#allocation3], 1
    %2839 = vsyncpa %s2838, 1
    %2840 = vsyncpa [#allocation6], 1
    %2841 = vsyncpa [#allocation9], 1
    %2842 = vsyncpa [#allocation12], 1
    %2843 = vsyncpa [#allocation15], 1
    %2844 = vsyncpa [#allocation4], 1
    %s2845 = scalar_lea.sflag [#allocation4], 1
    %2846 = vsyncpa %s2845, 1

</llo_original>
